<compile_context>
chip_gen: v6e
topology: v6e:2x2x1
jax: 0.10.0
libtpu: 0.0.40
codegen_flags: <defaults>
</compile_context>

<pallas_src>
import functools
import math

import jax
import jax.numpy as jnp
from jax.experimental import pallas as pl
from jax.experimental.pallas import tpu as pltpu

_BN_EPS = 1e-5


def _round_up(x, m):
    return (x + m - 1) // m * m


# ---------------------------------------------------------------------------
# Kernel 1: fused 1x1-conv-as-matmul
#     out = leaky_relu( x @ w + shift )
# (per-channel BN scale is already folded into the weight columns).
# bf16 operands on the MXU, f32 accumulate + epilogue, single K step.
# ---------------------------------------------------------------------------
def _matmul_shift_act_kernel(x_ref, w_ref, sh_ref, o_ref, *, neg_slope):
    y = jnp.dot(x_ref[...], w_ref[...], preferred_element_type=jnp.float32)
    y = y + sh_ref[...]
    if neg_slope is not None:
        y = jnp.where(y > 0, y, neg_slope * y)
    o_ref[...] = y.astype(o_ref.dtype)


def matmul_shift_act(x, w, shift, *, neg_slope=None, out_dtype=None):
    """y = leaky_relu?(x @ w + shift).  x:(M,K)  w:(K,N)  shift:(N,)."""
    M, K = x.shape
    K2, N = w.shape
    assert K == K2
    out_dtype = out_dtype or x.dtype

    # K always fits in VMEM for Fire-sized layers -> one K step, o_ref written
    # directly from the dot (no accumulator scratch, no revisits).
    tm = min(512, _round_up(M, 8))
    Mp = _round_up(M, tm)
    xp = x if Mp == M else jnp.pad(x, ((0, Mp - M), (0, 0)))
    xb = xp.astype(jnp.bfloat16)
    wb = w.astype(jnp.bfloat16)
    sh = shift.reshape(1, N).astype(jnp.float32)

    flops = 2 * Mp * K * N
    bytes_accessed = int((Mp * K + K * N) * 2 + N * 4 +
                         Mp * N * jnp.dtype(out_dtype).itemsize)

    out = pl.pallas_call(
        functools.partial(_matmul_shift_act_kernel, neg_slope=neg_slope),
        out_shape=jax.ShapeDtypeStruct((Mp, N), out_dtype),
        grid_spec=pltpu.PrefetchScalarGridSpec(
            num_scalar_prefetch=0,
            grid=(Mp // tm,),
            in_specs=[
                pl.BlockSpec((tm, K), lambda i: (i, 0)),
                pl.BlockSpec((K, N), lambda i: (0, 0)),
                pl.BlockSpec((1, N), lambda i: (0, 0)),
            ],
            out_specs=pl.BlockSpec((tm, N), lambda i: (i, 0)),
        ),
        compiler_params=pltpu.CompilerParams(
            dimension_semantics=("parallel",)),
        cost_estimate=pl.CostEstimate(flops=flops, transcendentals=0,
                                      bytes_accessed=bytes_accessed),
    )(xb, wb, sh)
    return out[:M] if Mp != M else out


# ---------------------------------------------------------------------------
# Kernel 2: fused "expand" block (one grid step per image)
#     o1 = leaky( x @ W1 + shift1 )                                (1x1 branch)
#     o3 = leaky( sum_{9 taps} shift_dh_dw(x) @ W3[tap] + shift3 ) (3x3 branch)
#     out[..., :E1] = o1 ; out[..., E1:] = o3                      (concat)
# The 3x3 taps are accumulated over in-VMEM shifted slices of the zero-padded
# activation (no HBM im2col).  BN1x1/BN3x3 and BN2 are pre-folded into the
# weights (scale) and the shift vectors by the caller.
# ---------------------------------------------------------------------------
def _expand_kernel(xp_ref, w1_ref, w3_ref, sh1_ref, sh3_ref, o_ref, xf_ref,
                   *, H, W, Cs, E1, E3, neg_slope):
    # xp_ref : (1, H+2, W+2, Cs) bf16 zero-padded squeezed activation
    # w1_ref : (Cs, E1) bf16      w3_ref : (9, Cs, E3) bf16 (tap = dh*3 + dw)
    # sh1/sh3: (1, E1) / (1, E3) f32
    # o_ref  : (1, H*W, E1+E3)
    # xf_ref : VMEM scratch (H+2, W+2, Cs) f32 — unpacked copy so the shifted
    #          tap views are plain 32-bit slices.
    xf_ref[...] = xp_ref[0].astype(jnp.float32)

    def tap(dh, dw):
        v = xf_ref[dh:dh + H, dw:dw + W, :]          # (H, W, Cs)
        return v.reshape(H * W, Cs).astype(jnp.bfloat16)

    # 1x1 expand branch on the centre window.
    o1 = jnp.dot(tap(1, 1), w1_ref[...], preferred_element_type=jnp.float32)
    o1 = o1 + sh1_ref[...]
    o1 = jnp.where(o1 > 0, o1, neg_slope * o1)
    o_ref[0, :, 0:E1] = o1.astype(o_ref.dtype)

    # 3x3 expand branch: accumulate the 9 taps on the MXU, f32 accumulator.
    acc = jnp.zeros((H * W, E3), jnp.float32)
    for t in range(9):
        dh, dw = t // 3, t % 3
        acc = acc + jnp.dot(tap(dh, dw), w3_ref[t],
                            preferred_element_type=jnp.float32)
    o3 = acc + sh3_ref[...]
    o3 = jnp.where(o3 > 0, o3, neg_slope * o3)
    o_ref[0, :, E1:E1 + E3] = o3.astype(o_ref.dtype)


def expand_block(s_nhwc, w1, sh1, w3, sh3, *, neg_slope, out_dtype=jnp.float32):
    """Fused Expand + BN2 + LeakyReLU.  s_nhwc:(N,H,W,Cs) -> (N,H,W,E1+E3)."""
    N, H, W, Cs = s_nhwc.shape
    E1 = w1.shape[-1]
    E3 = w3.shape[-1]

    # +1 spatial zero-halo: the only XLA-side copy of the (tiny, bf16)
    # intermediate, versus the 9x im2col inflation this kernel removes.
    sp = jnp.pad(s_nhwc, ((0, 0), (1, 1), (1, 1), (0, 0)))
    w1b = w1.astype(jnp.bfloat16)
    w3b = w3.astype(jnp.bfloat16)
    sh1v = sh1.reshape(1, E1).astype(jnp.float32)
    sh3v = sh3.reshape(1, E3).astype(jnp.float32)

    flops = 2 * N * H * W * Cs * (E1 + 9 * E3)
    bytes_accessed = int(sp.size * 2 + (w1b.size + w3b.size) * 2 +
                         N * H * W * (E1 + E3) * jnp.dtype(out_dtype).itemsize)

    out = pl.pallas_call(
        functools.partial(_expand_kernel, H=H, W=W, Cs=Cs, E1=E1, E3=E3,
                          neg_slope=neg_slope),
        out_shape=jax.ShapeDtypeStruct((N, H * W, E1 + E3), out_dtype),
        grid_spec=pltpu.PrefetchScalarGridSpec(
            num_scalar_prefetch=0,
            grid=(N,),
            in_specs=[
                pl.BlockSpec((1, H + 2, W + 2, Cs), lambda n: (n, 0, 0, 0)),
                pl.BlockSpec((Cs, E1), lambda n: (0, 0)),
                pl.BlockSpec((9, Cs, E3), lambda n: (0, 0, 0)),
                pl.BlockSpec((1, E1), lambda n: (0, 0)),
                pl.BlockSpec((1, E3), lambda n: (0, 0)),
            ],
            out_specs=pl.BlockSpec((1, H * W, E1 + E3), lambda n: (n, 0, 0)),
            scratch_shapes=[pltpu.VMEM((H + 2, W + 2, Cs), jnp.float32)],
        ),
        compiler_params=pltpu.CompilerParams(
            dimension_semantics=("parallel",)),
        cost_estimate=pl.CostEstimate(flops=flops, transcendentals=0,
                                      bytes_accessed=bytes_accessed),
    )(sp, w1b, w3b, sh1v, sh3v)
    return out.reshape(N, H, W, E1 + E3)


# ---------------------------------------------------------------------------
# Fire module: parameter init, BN folding, forward
# ---------------------------------------------------------------------------
def _bn_scale_shift(bn, eps=_BN_EPS):
    scale = bn['gamma'] / jnp.sqrt(bn['rvar'] + eps)
    shift = bn['beta'] - bn['rmean'] * scale
    return scale, shift


def fire_forward(params, x_nchw, *, neg_slope=0.1):
    """Fire(x) = LeakyReLU(BN2(Expand(LeakyReLU(BN1(squeeze(x)))))), eval BN."""
    p = params
    e1 = p['w_e1'].shape[0]
    cs = p['w_sq'].shape[0]

    # Fold conv bias + BN chain(s) into per-channel (scale, shift); bake the
    # scale into the weight columns so the kernel epilogue is shift + act only.
    s_sq, t_sq = _bn_scale_shift(p['bn1'])
    w_sq = p['w_sq'][:, :, 0, 0].T * s_sq[None, :]               # (Cin, Cs)
    sh_sq = p['b_sq'] * s_sq + t_sq

    s2, t2 = _bn_scale_shift(p['bn2'])
    sA, tA = _bn_scale_shift(p['bn1x1'])
    w_e1 = p['w_e1'][:, :, 0, 0].T * (sA * s2[:e1])[None, :]     # (Cs, E1)
    sh_e1 = (p['b_e1'] * sA + tA) * s2[:e1] + t2[:e1]

    sB, tB = _bn_scale_shift(p['bn3x3'])
    w_e3 = jnp.transpose(p['w_e3'], (2, 3, 1, 0)).reshape(9, cs, -1)
    w_e3 = w_e3 * (sB * s2[e1:])[None, None, :]                  # (9, Cs, E3)
    sh_e3 = (p['b_e3'] * sB + tB) * s2[e1:] + t2[e1:]

    # NCHW -> NHWC; squeeze 1x1 conv + BN1 + LeakyReLU as one fused matmul.
    x = jnp.transpose(x_nchw, (0, 2, 3, 1))
    N, H, W, Cin = x.shape
    s = matmul_shift_act(x.reshape(N * H * W, Cin), w_sq, sh_sq,
                         neg_slope=neg_slope, out_dtype=jnp.bfloat16)
    s = s.reshape(N, H, W, cs)

    # Fused expand: 1x1 + 3x3 (9 in-kernel taps) + concat + BN2 + LeakyReLU.
    out = expand_block(s, w_e1, sh_e1, w_e3, sh_e3, neg_slope=neg_slope)

    # TODO(synk): train-mode BatchNorm (batch statistics / running-stat
    # updates) is not implemented; this reproduces eval/inference semantics.
    return jnp.transpose(out, (0, 3, 1, 2))                      # back to NCHW


def fire_reference(params, x_nchw, *, neg_slope=0.1, eps=_BN_EPS):
    """Pure-JAX (XLA) reference mirroring the PyTorch module in eval mode."""
    p = params

    def conv(x, w, b, pad):
        y = jax.lax.conv_general_dilated(
            x, w, window_strides=(1, 1), padding=pad,
            dimension_numbers=('NCHW', 'OIHW', 'NCHW'))
        return y + b[None, :, None, None]

    def bn(x, q):
        scale = q['gamma'] / jnp.sqrt(q['rvar'] + eps)
        shift = q['beta'] - q['rmean'] * scale
        return x * scale[None, :, None, None] + shift[None, :, None, None]

    def act(x):
        return jnp.where(x > 0, x, neg_slope * x)

    s = act(bn(conv(x_nchw, p['w_sq'], p['b_sq'], 'VALID'), p['bn1']))
    o1 = bn(conv(s, p['w_e1'], p['b_e1'], 'VALID'), p['bn1x1'])
    o3 = bn(conv(s, p['w_e3'], p['b_e3'], [(1, 1), (1, 1)]), p['bn3x3'])
    return act(bn(jnp.concatenate([o1, o3], axis=1), p['bn2']))


def init_fire_params(key, in_channels, s1x1, e1x1, e3x3):
    def conv_init(k, cout, cin, kh, kw):
        bound = 1.0 / math.sqrt(cin * kh * kw)
        kw_key, kb_key = jax.random.split(k)
        w = jax.random.uniform(kw_key, (cout, cin, kh, kw), jnp.float32,
                               -bound, bound)
        b = jax.random.uniform(kb_key, (cout,), jnp.float32, -bound, bound)
        return w, b

    def bn_init(k, c):
        kg, kb, km, kv = jax.random.split(k, 4)
        return dict(
            gamma=1.0 + 0.1 * jax.random.normal(kg, (c,), jnp.float32),
            beta=0.1 * jax.random.normal(kb, (c,), jnp.float32),
            rmean=0.1 * jax.random.normal(km, (c,), jnp.float32),
            rvar=jax.random.uniform(kv, (c,), jnp.float32, 0.5, 1.5))

    ks = jax.random.split(key, 7)
    w_sq, b_sq = conv_init(ks[0], s1x1, in_channels, 1, 1)
    w_e1, b_e1 = conv_init(ks[1], e1x1, s1x1, 1, 1)
    w_e3, b_e3 = conv_init(ks[2], e3x3, s1x1, 3, 3)
    return dict(w_sq=w_sq, b_sq=b_sq, bn1=bn_init(ks[3], s1x1),
                w_e1=w_e1, b_e1=b_e1, bn1x1=bn_init(ks[4], e1x1),
                w_e3=w_e3, b_e3=b_e3, bn3x3=bn_init(ks[5], e3x3),
                bn2=bn_init(ks[6], e1x1 + e3x3))


if __name__ == "__main__":
    key = jax.random.PRNGKey(0)
    pkey, xkey = jax.random.split(key)

    # Small Fire config: in=4 channels, squeeze=16, expand = 128 (1x1) + 128 (3x3)
    # (lane-aligned expand widths -> unmasked lane-dense output stores).
    N, Cin, H, W = 2, 4, 16, 16
    s1x1, e1x1, e3x3 = 16, 128, 128

    params = init_fire_params(pkey, Cin, s1x1, e1x1, e3x3)
    x = jax.random.normal(xkey, (N, Cin, H, W), jnp.float32)

    fwd = jax.jit(fire_forward)
    out = jax.block_until_ready(fwd(params, x))
    assert out.shape == (N, e1x1 + e3x3, H, W), out.shape
    assert bool(jnp.all(jnp.isfinite(out)))

    # Validate against a pure-JAX reference (loose tolerance: bf16 MXU inputs).
    ref = jax.block_until_ready(jax.jit(fire_reference)(params, x))
    ok = bool(jnp.allclose(out, ref, rtol=0.05, atol=0.1))
    assert ok, f"max |out - ref| = {float(jnp.max(jnp.abs(out - ref)))}"

    print("KERNEL_OK")
</pallas_src>

<mosaic_0001>
module attributes {stable_mosaic.version = 11 : i64} {
  func.func @_matmul_shift_act_kernel(%arg0: i32, %arg1: memref<512x4xbf16, #tpu.memory_space<vmem>>, %arg2: memref<4x16xbf16, #tpu.memory_space<vmem>>, %arg3: memref<1x16xf32, #tpu.memory_space<vmem>>, %arg4: memref<512x16xbf16, #tpu.memory_space<vmem>>) attributes {dimension_semantics = [#tpu.dimension_semantics<parallel>], iteration_bounds = array<i64: 1>, scalar_prefetch = 0 : i64, scratch_operands = 0 : i64, tpu.core_type = #tpu.core_type<tc>, window_params = [{transform_indices = @transform_0, window_bounds = array<i64: 512, 4>}, {pipeline_mode = #tpu.pipeline_mode<synchronous>, transform_indices = @transform_1, window_bounds = array<i64: 4, 16>}, {pipeline_mode = #tpu.pipeline_mode<synchronous>, transform_indices = @transform_2, window_bounds = array<i64: 1, 16>}, {transform_indices = @transform_3, window_bounds = array<i64: 512, 16>}]} {
    %c0 = arith.constant 0 : index
    %c0_0 = arith.constant 0 : index
    %0 = vector.load %arg1[%c0, %c0_0] : memref<512x4xbf16, #tpu.memory_space<vmem>>, vector<512x4xbf16>
    %c0_1 = arith.constant 0 : index
    %c0_2 = arith.constant 0 : index
    %1 = vector.load %arg2[%c0_1, %c0_2] : memref<4x16xbf16, #tpu.memory_space<vmem>>, vector<4x16xbf16>
    %cst = arith.constant dense<0.000000e+00> : vector<512x16xf32>
    %2 = tpu.matmul %0, %1, %cst {dimension_numbers = #tpu.dot_dimension_numbers<[1], [0], [0], [1], [0, 0, 1, 1], [], []>} : vector<512x4xbf16>, vector<4x16xbf16>, vector<512x16xf32> -> vector<512x16xf32>
    %c0_3 = arith.constant 0 : index
    %c0_4 = arith.constant 0 : index
    %3 = vector.load %arg3[%c0_3, %c0_4] : memref<1x16xf32, #tpu.memory_space<vmem>>, vector<1x16xf32>
    %4 = vector.broadcast %3 : vector<1x16xf32> to vector<512x16xf32>
    %5 = arith.addf %2, %4 : vector<512x16xf32>
    %cst_5 = arith.constant 0.000000e+00 : f32
    %6 = vector.broadcast %cst_5 : f32 to vector<512x16xf32>
    %7 = arith.cmpf ogt, %5, %6 : vector<512x16xf32>
    %cst_6 = arith.constant 1.000000e-01 : f32
    %8 = vector.broadcast %cst_6 : f32 to vector<512x16xf32>
    %9 = arith.mulf %8, %5 : vector<512x16xf32>
    %10 = arith.select %7, %5, %9 : vector<512x16xi1>, vector<512x16xf32>
    %11 = arith.truncf %10 : vector<512x16xf32> to vector<512x16xbf16>
    %c0_7 = arith.constant 0 : index
    %c0_8 = arith.constant 0 : index
    %12 = vector.load %arg4[%c0_7, %c0_8] : memref<512x16xbf16, #tpu.memory_space<vmem>>, vector<512x16xbf16>
    tpu.vector_store %arg4[%c0_7, %c0_8], %11 {strides = array<i32>} : memref<512x16xbf16, #tpu.memory_space<vmem>>, vector<512x16xbf16>,
    return
  }
  func.func @transform_0(%arg0: i32) -> (i32, i32) {
    %c0_i32 = arith.constant 0 : i32
    %c0_i32_0 = arith.constant 0 : i32
    return %arg0, %c0_i32 : i32, i32
  }
  func.func @transform_1(%arg0: i32) -> (i32, i32) {
    %c0_i32 = arith.constant 0 : i32
    %c0_i32_0 = arith.constant 0 : i32
    %c0_i32_1 = arith.constant 0 : i32
    return %c0_i32, %c0_i32_0 : i32, i32
  }
  func.func @transform_2(%arg0: i32) -> (i32, i32) {
    %c0_i32 = arith.constant 0 : i32
    %c0_i32_0 = arith.constant 0 : i32
    %c0_i32_1 = arith.constant 0 : i32
    return %c0_i32, %c0_i32_0 : i32, i32
  }
  func.func @transform_3(%arg0: i32) -> (i32, i32) {
    %c0_i32 = arith.constant 0 : i32
    %c0_i32_0 = arith.constant 0 : i32
    return %arg0, %c0_i32 : i32, i32
  }
}

module attributes {stable_mosaic.version = 11 : i64} {
  func.func @_expand_kernel(%arg0: i32, %arg1: memref<1x18x18x16xbf16, #tpu.memory_space<vmem>>, %arg2: memref<16x128xbf16, #tpu.memory_space<vmem>>, %arg3: memref<9x16x128xbf16, #tpu.memory_space<vmem>>, %arg4: memref<1x128xf32, #tpu.memory_space<vmem>>, %arg5: memref<1x128xf32, #tpu.memory_space<vmem>>, %arg6: memref<1x256x256xf32, #tpu.memory_space<vmem>>, %arg7: memref<18x18x16xf32, #tpu.memory_space<vmem>>) attributes {dimension_semantics = [#tpu.dimension_semantics<parallel>], iteration_bounds = array<i64: 2>, scalar_prefetch = 0 : i64, scratch_operands = 1 : i64, tpu.core_type = #tpu.core_type<tc>, window_params = [{transform_indices = @transform_0, window_bounds = array<i64: 1, 18, 18, 16>}, {pipeline_mode = #tpu.pipeline_mode<synchronous>, transform_indices = @transform_1, window_bounds = array<i64: 16, 128>}, {pipeline_mode = #tpu.pipeline_mode<synchronous>, transform_indices = @transform_2, window_bounds = array<i64: 9, 16, 128>}, {pipeline_mode = #tpu.pipeline_mode<synchronous>, transform_indices = @transform_3, window_bounds = array<i64: 1, 128>}, {pipeline_mode = #tpu.pipeline_mode<synchronous>, transform_indices = @transform_4, window_bounds = array<i64: 1, 128>}, {transform_indices = @transform_5, window_bounds = array<i64: 1, 256, 256>}]} {
    %c0 = arith.constant 0 : index
    %c0_0 = arith.constant 0 : index
    %c0_1 = arith.constant 0 : index
    %c0_2 = arith.constant 0 : index
    %0 = vector.load %arg1[%c0, %c0_0, %c0_1, %c0_2] : memref<1x18x18x16xbf16, #tpu.memory_space<vmem>>, vector<1x18x18x16xbf16>
    %1 = vector.shape_cast %0 : vector<1x18x18x16xbf16> to vector<18x18x16xbf16>
    %2 = arith.extf %1 : vector<18x18x16xbf16> to vector<18x18x16xf32>
    %c0_3 = arith.constant 0 : index
    %c0_4 = arith.constant 0 : index
    %c0_5 = arith.constant 0 : index
    %3 = vector.load %arg7[%c0_3, %c0_4, %c0_5] : memref<18x18x16xf32, #tpu.memory_space<vmem>>, vector<18x18x16xf32>
    tpu.vector_store %arg7[%c0_3, %c0_4, %c0_5], %2 {strides = array<i32>} : memref<18x18x16xf32, #tpu.memory_space<vmem>>, vector<18x18x16xf32>,
    %c1 = arith.constant 1 : index
    %c1_6 = arith.constant 1 : index
    %c0_7 = arith.constant 0 : index
    %4 = vector.load %arg7[%c1, %c1_6, %c0_7] : memref<18x18x16xf32, #tpu.memory_space<vmem>>, vector<16x16x16xf32>
    %5 = vector.shape_cast %4 : vector<16x16x16xf32> to vector<256x16xf32>
    %6 = arith.truncf %5 : vector<256x16xf32> to vector<256x16xbf16>
    %c0_8 = arith.constant 0 : index
    %c0_9 = arith.constant 0 : index
    %7 = vector.load %arg2[%c0_8, %c0_9] : memref<16x128xbf16, #tpu.memory_space<vmem>>, vector<16x128xbf16>
    %cst = arith.constant dense<0.000000e+00> : vector<256x128xf32>
    %8 = tpu.matmul %6, %7, %cst {dimension_numbers = #tpu.dot_dimension_numbers<[1], [0], [0], [1], [0, 0, 1, 1], [], []>} : vector<256x16xbf16>, vector<16x128xbf16>, vector<256x128xf32> -> vector<256x128xf32>
    %c0_10 = arith.constant 0 : index
    %c0_11 = arith.constant 0 : index
    %9 = vector.load %arg4[%c0_10, %c0_11] : memref<1x128xf32, #tpu.memory_space<vmem>>, vector<1x128xf32>
    %10 = vector.broadcast %9 : vector<1x128xf32> to vector<256x128xf32>
    %11 = arith.addf %8, %10 : vector<256x128xf32>
    %cst_12 = arith.constant 0.000000e+00 : f32
    %12 = vector.broadcast %cst_12 : f32 to vector<256x128xf32>
    %13 = arith.cmpf ogt, %11, %12 : vector<256x128xf32>
    %cst_13 = arith.constant 1.000000e-01 : f32
    %14 = vector.broadcast %cst_13 : f32 to vector<256x128xf32>
    %15 = arith.mulf %14, %11 : vector<256x128xf32>
    %16 = arith.select %13, %11, %15 : vector<256x128xi1>, vector<256x128xf32>
    %c0_14 = arith.constant 0 : index
    %c0_15 = arith.constant 0 : index
    %c0_16 = arith.constant 0 : index
    %17 = vector.load %arg6[%c0_14, %c0_15, %c0_16] : memref<1x256x256xf32, #tpu.memory_space<vmem>>, vector<1x256x128xf32>
    %18 = vector.shape_cast %17 : vector<1x256x128xf32> to vector<256x128xf32>
    %19 = vector.shape_cast %16 : vector<256x128xf32> to vector<1x256x128xf32>
    tpu.vector_store %arg6[%c0_14, %c0_15, %c0_16], %19 {strides = array<i32>} : memref<1x256x256xf32, #tpu.memory_space<vmem>>, vector<1x256x128xf32>,
    %cst_17 = arith.constant 0.000000e+00 : f32
    %20 = vector.broadcast %cst_17 : f32 to vector<256x128xf32>
    %c0_18 = arith.constant 0 : index
    %c0_19 = arith.constant 0 : index
    %c0_20 = arith.constant 0 : index
    %21 = vector.load %arg7[%c0_18, %c0_19, %c0_20] : memref<18x18x16xf32, #tpu.memory_space<vmem>>, vector<16x16x16xf32>
    %22 = vector.shape_cast %21 : vector<16x16x16xf32> to vector<256x16xf32>
    %23 = arith.truncf %22 : vector<256x16xf32> to vector<256x16xbf16>
    %c0_21 = arith.constant 0 : index
    %c0_22 = arith.constant 0 : index
    %c0_23 = arith.constant 0 : index
    %24 = vector.load %arg3[%c0_21, %c0_22, %c0_23] : memref<9x16x128xbf16, #tpu.memory_space<vmem>>, vector<1x16x128xbf16>
    %25 = vector.shape_cast %24 : vector<1x16x128xbf16> to vector<16x128xbf16>
    %cst_24 = arith.constant dense<0.000000e+00> : vector<256x128xf32>
    %26 = tpu.matmul %23, %25, %cst_24 {dimension_numbers = #tpu.dot_dimension_numbers<[1], [0], [0], [1], [0, 0, 1, 1], [], []>} : vector<256x16xbf16>, vector<16x128xbf16>, vector<256x128xf32> -> vector<256x128xf32>
    %27 = arith.addf %20, %26 : vector<256x128xf32>
    %c0_25 = arith.constant 0 : index
    %c1_26 = arith.constant 1 : index
    %c0_27 = arith.constant 0 : index
    %28 = vector.load %arg7[%c0_25, %c1_26, %c0_27] : memref<18x18x16xf32, #tpu.memory_space<vmem>>, vector<16x16x16xf32>
    %29 = vector.shape_cast %28 : vector<16x16x16xf32> to vector<256x16xf32>
    %30 = arith.truncf %29 : vector<256x16xf32> to vector<256x16xbf16>
    %c1_28 = arith.constant 1 : index
    %c0_29 = arith.constant 0 : index
    %c0_30 = arith.constant 0 : index
    %31 = vector.load %arg3[%c1_28, %c0_29, %c0_30] : memref<9x16x128xbf16, #tpu.memory_space<vmem>>, vector<1x16x128xbf16>
    %32 = vector.shape_cast %31 : vector<1x16x128xbf16> to vector<16x128xbf16>
    %cst_31 = arith.constant dense<0.000000e+00> : vector<256x128xf32>
    %33 = tpu.matmul %30, %32, %cst_31 {dimension_numbers = #tpu.dot_dimension_numbers<[1], [0], [0], [1], [0, 0, 1, 1], [], []>} : vector<256x16xbf16>, vector<16x128xbf16>, vector<256x128xf32> -> vector<256x128xf32>
    %34 = arith.addf %27, %33 : vector<256x128xf32>
    %c0_32 = arith.constant 0 : index
    %c2 = arith.constant 2 : index
    %c0_33 = arith.constant 0 : index
    %35 = vector.load %arg7[%c0_32, %c2, %c0_33] : memref<18x18x16xf32, #tpu.memory_space<vmem>>, vector<16x16x16xf32>
    %36 = vector.shape_cast %35 : vector<16x16x16xf32> to vector<256x16xf32>
    %37 = arith.truncf %36 : vector<256x16xf32> to vector<256x16xbf16>
    %c2_34 = arith.constant 2 : index
    %c0_35 = arith.constant 0 : index
    %c0_36 = arith.constant 0 : index
    %38 = vector.load %arg3[%c2_34, %c0_35, %c0_36] : memref<9x16x128xbf16, #tpu.memory_space<vmem>>, vector<1x16x128xbf16>
    %39 = vector.shape_cast %38 : vector<1x16x128xbf16> to vector<16x128xbf16>
    %cst_37 = arith.constant dense<0.000000e+00> : vector<256x128xf32>
    %40 = tpu.matmul %37, %39, %cst_37 {dimension_numbers = #tpu.dot_dimension_numbers<[1], [0], [0], [1], [0, 0, 1, 1], [], []>} : vector<256x16xbf16>, vector<16x128xbf16>, vector<256x128xf32> -> vector<256x128xf32>
    %41 = arith.addf %34, %40 : vector<256x128xf32>
    %c1_38 = arith.constant 1 : index
    %c0_39 = arith.constant 0 : index
    %c0_40 = arith.constant 0 : index
    %42 = vector.load %arg7[%c1_38, %c0_39, %c0_40] : memref<18x18x16xf32, #tpu.memory_space<vmem>>, vector<16x16x16xf32>
    %43 = vector.shape_cast %42 : vector<16x16x16xf32> to vector<256x16xf32>
    %44 = arith.truncf %43 : vector<256x16xf32> to vector<256x16xbf16>
    %c3 = arith.constant 3 : index
    %c0_41 = arith.constant 0 : index
    %c0_42 = arith.constant 0 : index
    %45 = vector.load %arg3[%c3, %c0_41, %c0_42] : memref<9x16x128xbf16, #tpu.memory_space<vmem>>, vector<1x16x128xbf16>
    %46 = vector.shape_cast %45 : vector<1x16x128xbf16> to vector<16x128xbf16>
    %cst_43 = arith.constant dense<0.000000e+00> : vector<256x128xf32>
    %47 = tpu.matmul %44, %46, %cst_43 {dimension_numbers = #tpu.dot_dimension_numbers<[1], [0], [0], [1], [0, 0, 1, 1], [], []>} : vector<256x16xbf16>, vector<16x128xbf16>, vector<256x128xf32> -> vector<256x128xf32>
    %48 = arith.addf %41, %47 : vector<256x128xf32>
    %c1_44 = arith.constant 1 : index
    %c1_45 = arith.constant 1 : index
    %c0_46 = arith.constant 0 : index
    %49 = vector.load %arg7[%c1_44, %c1_45, %c0_46] : memref<18x18x16xf32, #tpu.memory_space<vmem>>, vector<16x16x16xf32>
    %50 = vector.shape_cast %49 : vector<16x16x16xf32> to vector<256x16xf32>
    %51 = arith.truncf %50 : vector<256x16xf32> to vector<256x16xbf16>
    %c4 = arith.constant 4 : index
    %c0_47 = arith.constant 0 : index
    %c0_48 = arith.constant 0 : index
    %52 = vector.load %arg3[%c4, %c0_47, %c0_48] : memref<9x16x128xbf16, #tpu.memory_space<vmem>>, vector<1x16x128xbf16>
    %53 = vector.shape_cast %52 : vector<1x16x128xbf16> to vector<16x128xbf16>
    %cst_49 = arith.constant dense<0.000000e+00> : vector<256x128xf32>
    %54 = tpu.matmul %51, %53, %cst_49 {dimension_numbers = #tpu.dot_dimension_numbers<[1], [0], [0], [1], [0, 0, 1, 1], [], []>} : vector<256x16xbf16>, vector<16x128xbf16>, vector<256x128xf32> -> vector<256x128xf32>
    %55 = arith.addf %48, %54 : vector<256x128xf32>
    %c1_50 = arith.constant 1 : index
    %c2_51 = arith.constant 2 : index
    %c0_52 = arith.constant 0 : index
    %56 = vector.load %arg7[%c1_50, %c2_51, %c0_52] : memref<18x18x16xf32, #tpu.memory_space<vmem>>, vector<16x16x16xf32>
    %57 = vector.shape_cast %56 : vector<16x16x16xf32> to vector<256x16xf32>
    %58 = arith.truncf %57 : vector<256x16xf32> to vector<256x16xbf16>
    %c5 = arith.constant 5 : index
    %c0_53 = arith.constant 0 : index
    %c0_54 = arith.constant 0 : index
    %59 = vector.load %arg3[%c5, %c0_53, %c0_54] : memref<9x16x128xbf16, #tpu.memory_space<vmem>>, vector<1x16x128xbf16>
    %60 = vector.shape_cast %59 : vector<1x16x128xbf16> to vector<16x128xbf16>
    %cst_55 = arith.constant dense<0.000000e+00> : vector<256x128xf32>
    %61 = tpu.matmul %58, %60, %cst_55 {dimension_numbers = #tpu.dot_dimension_numbers<[1], [0], [0], [1], [0, 0, 1, 1], [], []>} : vector<256x16xbf16>, vector<16x128xbf16>, vector<256x128xf32> -> vector<256x128xf32>
    %62 = arith.addf %55, %61 : vector<256x128xf32>
    %c2_56 = arith.constant 2 : index
    %c0_57 = arith.constant 0 : index
    %c0_58 = arith.constant 0 : index
    %63 = vector.load %arg7[%c2_56, %c0_57, %c0_58] : memref<18x18x16xf32, #tpu.memory_space<vmem>>, vector<16x16x16xf32>
    %64 = vector.shape_cast %63 : vector<16x16x16xf32> to vector<256x16xf32>
    %65 = arith.truncf %64 : vector<256x16xf32> to vector<256x16xbf16>
    %c6 = arith.constant 6 : index
    %c0_59 = arith.constant 0 : index
    %c0_60 = arith.constant 0 : index
    %66 = vector.load %arg3[%c6, %c0_59, %c0_60] : memref<9x16x128xbf16, #tpu.memory_space<vmem>>, vector<1x16x128xbf16>
    %67 = vector.shape_cast %66 : vector<1x16x128xbf16> to vector<16x128xbf16>
    %cst_61 = arith.constant dense<0.000000e+00> : vector<256x128xf32>
    %68 = tpu.matmul %65, %67, %cst_61 {dimension_numbers = #tpu.dot_dimension_numbers<[1], [0], [0], [1], [0, 0, 1, 1], [], []>} : vector<256x16xbf16>, vector<16x128xbf16>, vector<256x128xf32> -> vector<256x128xf32>
    %69 = arith.addf %62, %68 : vector<256x128xf32>
    %c2_62 = arith.constant 2 : index
    %c1_63 = arith.constant 1 : index
    %c0_64 = arith.constant 0 : index
    %70 = vector.load %arg7[%c2_62, %c1_63, %c0_64] : memref<18x18x16xf32, #tpu.memory_space<vmem>>, vector<16x16x16xf32>
    %71 = vector.shape_cast %70 : vector<16x16x16xf32> to vector<256x16xf32>
    %72 = arith.truncf %71 : vector<256x16xf32> to vector<256x16xbf16>
    %c7 = arith.constant 7 : index
    %c0_65 = arith.constant 0 : index
    %c0_66 = arith.constant 0 : index
    %73 = vector.load %arg3[%c7, %c0_65, %c0_66] : memref<9x16x128xbf16, #tpu.memory_space<vmem>>, vector<1x16x128xbf16>
    %74 = vector.shape_cast %73 : vector<1x16x128xbf16> to vector<16x128xbf16>
    %cst_67 = arith.constant dense<0.000000e+00> : vector<256x128xf32>
    %75 = tpu.matmul %72, %74, %cst_67 {dimension_numbers = #tpu.dot_dimension_numbers<[1], [0], [0], [1], [0, 0, 1, 1], [], []>} : vector<256x16xbf16>, vector<16x128xbf16>, vector<256x128xf32> -> vector<256x128xf32>
    %76 = arith.addf %69, %75 : vector<256x128xf32>
    %c2_68 = arith.constant 2 : index
    %c2_69 = arith.constant 2 : index
    %c0_70 = arith.constant 0 : index
    %77 = vector.load %arg7[%c2_68, %c2_69, %c0_70] : memref<18x18x16xf32, #tpu.memory_space<vmem>>, vector<16x16x16xf32>
    %78 = vector.shape_cast %77 : vector<16x16x16xf32> to vector<256x16xf32>
    %79 = arith.truncf %78 : vector<256x16xf32> to vector<256x16xbf16>
    %c8 = arith.constant 8 : index
    %c0_71 = arith.constant 0 : index
    %c0_72 = arith.constant 0 : index
    %80 = vector.load %arg3[%c8, %c0_71, %c0_72] : memref<9x16x128xbf16, #tpu.memory_space<vmem>>, vector<1x16x128xbf16>
    %81 = vector.shape_cast %80 : vector<1x16x128xbf16> to vector<16x128xbf16>
    %cst_73 = arith.constant dense<0.000000e+00> : vector<256x128xf32>
    %82 = tpu.matmul %79, %81, %cst_73 {dimension_numbers = #tpu.dot_dimension_numbers<[1], [0], [0], [1], [0, 0, 1, 1], [], []>} : vector<256x16xbf16>, vector<16x128xbf16>, vector<256x128xf32> -> vector<256x128xf32>
    %83 = arith.addf %76, %82 : vector<256x128xf32>
    %c0_74 = arith.constant 0 : index
    %c0_75 = arith.constant 0 : index
    %84 = vector.load %arg5[%c0_74, %c0_75] : memref<1x128xf32, #tpu.memory_space<vmem>>, vector<1x128xf32>
    %85 = vector.broadcast %84 : vector<1x128xf32> to vector<256x128xf32>
    %86 = arith.addf %83, %85 : vector<256x128xf32>
    %cst_76 = arith.constant 0.000000e+00 : f32
    %87 = vector.broadcast %cst_76 : f32 to vector<256x128xf32>
    %88 = arith.cmpf ogt, %86, %87 : vector<256x128xf32>
    %cst_77 = arith.constant 1.000000e-01 : f32
    %89 = vector.broadcast %cst_77 : f32 to vector<256x128xf32>
    %90 = arith.mulf %89, %86 : vector<256x128xf32>
    %91 = arith.select %88, %86, %90 : vector<256x128xi1>, vector<256x128xf32>
    %c0_78 = arith.constant 0 : index
    %c0_79 = arith.constant 0 : index
    %c128 = arith.constant 128 : index
    %92 = vector.load %arg6[%c0_78, %c0_79, %c128] : memref<1x256x256xf32, #tpu.memory_space<vmem>>, vector<1x256x128xf32>
    %93 = vector.shape_cast %92 : vector<1x256x128xf32> to vector<256x128xf32>
    %94 = vector.shape_cast %91 : vector<256x128xf32> to vector<1x256x128xf32>
    tpu.vector_store %arg6[%c0_78, %c0_79, %c128], %94 {strides = array<i32>} : memref<1x256x256xf32, #tpu.memory_space<vmem>>, vector<1x256x128xf32>,
    return
  }
  func.func @transform_0(%arg0: i32) -> (i32, i32, i32, i32) {
    %c0_i32 = arith.constant 0 : i32
    %c0_i32_0 = arith.constant 0 : i32
    %c0_i32_1 = arith.constant 0 : i32
    %c0_i32_2 = arith.constant 0 : i32
    return %arg0, %c0_i32, %c0_i32_0, %c0_i32_1 : i32, i32, i32, i32
  }
  func.func @transform_1(%arg0: i32) -> (i32, i32) {
    %c0_i32 = arith.constant 0 : i32
    %c0_i32_0 = arith.constant 0 : i32
    %c0_i32_1 = arith.constant 0 : i32
    return %c0_i32, %c0_i32_0 : i32, i32
  }
  func.func @transform_2(%arg0: i32) -> (i32, i32, i32) {
    %c0_i32 = arith.constant 0 : i32
    %c0_i32_0 = arith.constant 0 : i32
    %c0_i32_1 = arith.constant 0 : i32
    %c0_i32_2 = arith.constant 0 : i32
    return %c0_i32, %c0_i32_0, %c0_i32_1 : i32, i32, i32
  }
  func.func @transform_3(%arg0: i32) -> (i32, i32) {
    %c0_i32 = arith.constant 0 : i32
    %c0_i32_0 = arith.constant 0 : i32
    %c0_i32_1 = arith.constant 0 : i32
    return %c0_i32, %c0_i32_0 : i32, i32
  }
  func.func @transform_4(%arg0: i32) -> (i32, i32) {
    %c0_i32 = arith.constant 0 : i32
    %c0_i32_0 = arith.constant 0 : i32
    %c0_i32_1 = arith.constant 0 : i32
    return %c0_i32, %c0_i32_0 : i32, i32
  }
  func.func @transform_5(%arg0: i32) -> (i32, i32, i32) {
    %c0_i32 = arith.constant 0 : i32
    %c0_i32_0 = arith.constant 0 : i32
    %c0_i32_1 = arith.constant 0 : i32
    return %arg0, %c0_i32, %c0_i32_0 : i32, i32, i32
  }
}

</mosaic_0001>

<llo_original>
// kernel: fire_forward.2
$region0: #{fire_forward.2}
  #allocation0 [shape = 'u32[]', space=smem, size = 0x4, offset = 0x4, fixed_abs, tag = 'smem constant byte address 0x4 - core index']
  #allocation1 [shape = 'u32[144,128]{1,0:T(1,128)}', space=vmem, size = 0x12000, scoped, tag = 'internal scratch']
  %s0 = inlined_call_operand.vmem [shape: bf16[512,4], index: 0, kind: input, shape index: {}]
  %s1 = inlined_call_operand.vmem [shape: bf16[4,16], index: 1, kind: input, shape index: {}]
  %s2 = inlined_call_operand.vmem [shape: f32[1,16], index: 2, kind: input, shape index: {}]
  %s3 = inlined_call_operand.vmem [shape: bf16[512,16], index: 3, kind: output, shape index: {}]
  %s4 = sld [smem:[#allocation0]]
  $region22: #{fire_forward.2} parent=0
    _
  %s6 = ssub.s32 1, %s4
  %s7 = scalar_select 0, %s6, %s4
  // Predicated region
  $region2: #{fire_forward.2} parent=0 // pred_check
    _
  $region3: #{fire_forward.2} parent=0 // pred_check_branch
    %9 = sbr.rel (0) target = $region5
  $region4: #{fire_forward.2} parent=0 // pred_region
    _
  $region5: #{fire_forward.2} parent=0 // pred_fallthru
    _
  // Predicated region
  $region6: #{fire_forward.2} parent=0 // pred_check
    _
  $region7: #{fire_forward.2} parent=0 // pred_check_branch
    %11 = sbr.rel (0) target = $region9
  $region8: #{fire_forward.2} parent=0 // pred_region
    _
  $region9: #{fire_forward.2} parent=0 // pred_fallthru
    _
  // Predicated region
  $region10: #{fire_forward.2} parent=0 // pred_check
    _
  $region11: #{fire_forward.2} parent=0 // pred_check_branch
    %13 = sbr.rel (0) target = $region13
  $region12: #{fire_forward.2} parent=0 // pred_region
    _
  $region13: #{fire_forward.2} parent=0 // pred_fallthru
    _
  %v15 = vld [vmem:[%s0] sm:$0xf]
  %v16 = vld [vmem:[%s0 + $0x4] sm:$0xf]
  %v17 = vld [vmem:[%s0 + $0x8] sm:$0xf]
  %v18 = vld [vmem:[%s0 + $0xc] sm:$0xf]
  %v19 = vld [vmem:[%s0 + $0x10] sm:$0xf]
  %v20 = vld [vmem:[%s0 + $0x14] sm:$0xf]
  %v21 = vld [vmem:[%s0 + $0x18] sm:$0xf]
  %v22 = vld [vmem:[%s0 + $0x1c] sm:$0xf]
  %v23 = vld [vmem:[%s0 + $0x20] sm:$0xf]
  %v24 = vld [vmem:[%s0 + $0x24] sm:$0xf]
  %v25 = vld [vmem:[%s0 + $0x28] sm:$0xf]
  %v26 = vld [vmem:[%s0 + $0x2c] sm:$0xf]
  %v27 = vld [vmem:[%s0 + $0x30] sm:$0xf]
  %v28 = vld [vmem:[%s0 + $0x34] sm:$0xf]
  %v29 = vld [vmem:[%s0 + $0x38] sm:$0xf]
  %v30 = vld [vmem:[%s0 + $0x3c] sm:$0xf]
  %v31 = vld [vmem:[%s0 + $0x40] sm:$0xf]
  %v32 = vld [vmem:[%s0 + $0x44] sm:$0xf]
  %v33 = vld [vmem:[%s0 + $0x48] sm:$0xf]
  %v34 = vld [vmem:[%s0 + $0x4c] sm:$0xf]
  %v35 = vld [vmem:[%s0 + $0x50] sm:$0xf]
  %v36 = vld [vmem:[%s0 + $0x54] sm:$0xf]
  %v37 = vld [vmem:[%s0 + $0x58] sm:$0xf]
  %v38 = vld [vmem:[%s0 + $0x5c] sm:$0xf]
  %v39 = vld [vmem:[%s0 + $0x60] sm:$0xf]
  %v40 = vld [vmem:[%s0 + $0x64] sm:$0xf]
  %v41 = vld [vmem:[%s0 + $0x68] sm:$0xf]
  %v42 = vld [vmem:[%s0 + $0x6c] sm:$0xf]
  %v43 = vld [vmem:[%s0 + $0x70] sm:$0xf]
  %v44 = vld [vmem:[%s0 + $0x74] sm:$0xf]
  %v45 = vld [vmem:[%s0 + $0x78] sm:$0xf]
  %v46 = vld [vmem:[%s0 + $0x7c] sm:$0xf]
  %v47 = vld [vmem:[%s0 + $0x80] sm:$0xf]
  %v48 = vld [vmem:[%s0 + $0x84] sm:$0xf]
  %v49 = vld [vmem:[%s0 + $0x88] sm:$0xf]
  %v50 = vld [vmem:[%s0 + $0x8c] sm:$0xf]
  %v51 = vld [vmem:[%s0 + $0x90] sm:$0xf]
  %v52 = vld [vmem:[%s0 + $0x94] sm:$0xf]
  %v53 = vld [vmem:[%s0 + $0x98] sm:$0xf]
  %v54 = vld [vmem:[%s0 + $0x9c] sm:$0xf]
  %v55 = vld [vmem:[%s0 + $0xa0] sm:$0xf]
  %v56 = vld [vmem:[%s0 + $0xa4] sm:$0xf]
  %v57 = vld [vmem:[%s0 + $0xa8] sm:$0xf]
  %v58 = vld [vmem:[%s0 + $0xac] sm:$0xf]
  %v59 = vld [vmem:[%s0 + $0xb0] sm:$0xf]
  %v60 = vld [vmem:[%s0 + $0xb4] sm:$0xf]
  %v61 = vld [vmem:[%s0 + $0xb8] sm:$0xf]
  %v62 = vld [vmem:[%s0 + $0xbc] sm:$0xf]
  %v63 = vld [vmem:[%s0 + $0xc0] sm:$0xf]
  %v64 = vld [vmem:[%s0 + $0xc4] sm:$0xf]
  %v65 = vld [vmem:[%s0 + $0xc8] sm:$0xf]
  %v66 = vld [vmem:[%s0 + $0xcc] sm:$0xf]
  %v67 = vld [vmem:[%s0 + $0xd0] sm:$0xf]
  %v68 = vld [vmem:[%s0 + $0xd4] sm:$0xf]
  %v69 = vld [vmem:[%s0 + $0xd8] sm:$0xf]
  %v70 = vld [vmem:[%s0 + $0xdc] sm:$0xf]
  %v71 = vld [vmem:[%s0 + $0xe0] sm:$0xf]
  %v72 = vld [vmem:[%s0 + $0xe4] sm:$0xf]
  %v73 = vld [vmem:[%s0 + $0xe8] sm:$0xf]
  %v74 = vld [vmem:[%s0 + $0xec] sm:$0xf]
  %v75 = vld [vmem:[%s0 + $0xf0] sm:$0xf]
  %v76 = vld [vmem:[%s0 + $0xf4] sm:$0xf]
  %v77 = vld [vmem:[%s0 + $0xf8] sm:$0xf]
  %v78 = vld [vmem:[%s0 + $0xfc] sm:$0xf]
  %v79 = vld [vmem:[%s1] sm:$0x3]
  %v80 = vld [vmem:[%s2] sm:$0x1]
  %v82 = vlaneseq
  %v83 = vshrl.u32 %v82, 7
  %v84 = vsub.s32 0, %v83
  %v85 = vrot.slane %v80, %v84
  %v151 = vunpack.c.l.b16 %v15
  %v152 = vunpack.c.l.b16 %v16
  %v153 = vunpack.c.l.b16 %v17
  %v154 = vunpack.c.l.b16 %v18
  %v155 = vunpack.c.l.b16 %v19
  %v156 = vunpack.c.l.b16 %v20
  %v157 = vunpack.c.l.b16 %v21
  %v158 = vunpack.c.l.b16 %v22
  %v159 = vunpack.c.l.b16 %v23
  %v160 = vunpack.c.l.b16 %v24
  %v161 = vunpack.c.l.b16 %v25
  %v162 = vunpack.c.l.b16 %v26
  %v163 = vunpack.c.l.b16 %v27
  %v164 = vunpack.c.l.b16 %v28
  %v165 = vunpack.c.l.b16 %v29
  %v166 = vunpack.c.l.b16 %v30
  %v167 = vunpack.c.l.b16 %v31
  %v168 = vunpack.c.l.b16 %v32
  %v169 = vunpack.c.l.b16 %v33
  %v170 = vunpack.c.l.b16 %v34
  %v171 = vunpack.c.l.b16 %v35
  %v172 = vunpack.c.l.b16 %v36
  %v173 = vunpack.c.l.b16 %v37
  %v174 = vunpack.c.l.b16 %v38
  %v175 = vunpack.c.l.b16 %v39
  %v176 = vunpack.c.l.b16 %v40
  %v177 = vunpack.c.l.b16 %v41
  %v178 = vunpack.c.l.b16 %v42
  %v179 = vunpack.c.l.b16 %v43
  %v180 = vunpack.c.l.b16 %v44
  %v181 = vunpack.c.l.b16 %v45
  %v182 = vunpack.c.l.b16 %v46
  %v183 = vunpack.c.l.b16 %v47
  %v184 = vunpack.c.l.b16 %v48
  %v185 = vunpack.c.l.b16 %v49
  %v186 = vunpack.c.l.b16 %v50
  %v187 = vunpack.c.l.b16 %v51
  %v188 = vunpack.c.l.b16 %v52
  %v189 = vunpack.c.l.b16 %v53
  %v190 = vunpack.c.l.b16 %v54
  %v191 = vunpack.c.l.b16 %v55
  %v192 = vunpack.c.l.b16 %v56
  %v193 = vunpack.c.l.b16 %v57
  %v194 = vunpack.c.l.b16 %v58
  %v195 = vunpack.c.l.b16 %v59
  %v196 = vunpack.c.l.b16 %v60
  %v197 = vunpack.c.l.b16 %v61
  %v198 = vunpack.c.l.b16 %v62
  %v199 = vunpack.c.l.b16 %v63
  %v200 = vunpack.c.l.b16 %v64
  %v201 = vunpack.c.l.b16 %v65
  %v202 = vunpack.c.l.b16 %v66
  %v203 = vunpack.c.l.b16 %v67
  %v204 = vunpack.c.l.b16 %v68
  %v205 = vunpack.c.l.b16 %v69
  %v206 = vunpack.c.l.b16 %v70
  %v207 = vunpack.c.l.b16 %v71
  %v208 = vunpack.c.l.b16 %v72
  %v209 = vunpack.c.l.b16 %v73
  %v210 = vunpack.c.l.b16 %v74
  %v211 = vunpack.c.l.b16 %v75
  %v212 = vunpack.c.l.b16 %v76
  %v213 = vunpack.c.l.b16 %v77
  %v214 = vunpack.c.l.b16 %v78
  %v215 = vpack.c.b16 %v152, %v151
  %v216 = vpack.c.b16 %v154, %v153
  %v217 = vpack.c.b16 %v156, %v155
  %v218 = vpack.c.b16 %v158, %v157
  %v219 = vpack.c.b16 %v160, %v159
  %v220 = vpack.c.b16 %v162, %v161
  %v221 = vpack.c.b16 %v164, %v163
  %v222 = vpack.c.b16 %v166, %v165
  %v223 = vpack.c.b16 %v168, %v167
  %v224 = vpack.c.b16 %v170, %v169
  %v225 = vpack.c.b16 %v172, %v171
  %v226 = vpack.c.b16 %v174, %v173
  %v227 = vpack.c.b16 %v176, %v175
  %v228 = vpack.c.b16 %v178, %v177
  %v229 = vpack.c.b16 %v180, %v179
  %v230 = vpack.c.b16 %v182, %v181
  %v231 = vpack.c.b16 %v184, %v183
  %v232 = vpack.c.b16 %v186, %v185
  %v233 = vpack.c.b16 %v188, %v187
  %v234 = vpack.c.b16 %v190, %v189
  %v235 = vpack.c.b16 %v192, %v191
  %v236 = vpack.c.b16 %v194, %v193
  %v237 = vpack.c.b16 %v196, %v195
  %v238 = vpack.c.b16 %v198, %v197
  %v239 = vpack.c.b16 %v200, %v199
  %v240 = vpack.c.b16 %v202, %v201
  %v241 = vpack.c.b16 %v204, %v203
  %v242 = vpack.c.b16 %v206, %v205
  %v243 = vpack.c.b16 %v208, %v207
  %v244 = vpack.c.b16 %v210, %v209
  %v245 = vpack.c.b16 %v212, %v211
  %v246 = vpack.c.b16 %v214, %v213
  %vm247 = vcmask 31744
  %v249 = vsel %vm247, %v215, 0
  %v252 = vsel %vm247, %v216, 0
  %v255 = vsel %vm247, %v217, 0
  %v258 = vsel %vm247, %v218, 0
  %v261 = vsel %vm247, %v219, 0
  %v264 = vsel %vm247, %v220, 0
  %v267 = vsel %vm247, %v221, 0
  %v270 = vsel %vm247, %v222, 0
  %v273 = vsel %vm247, %v223, 0
  %v276 = vsel %vm247, %v224, 0
  %v279 = vsel %vm247, %v225, 0
  %v282 = vsel %vm247, %v226, 0
  %v285 = vsel %vm247, %v227, 0
  %v288 = vsel %vm247, %v228, 0
  %v291 = vsel %vm247, %v229, 0
  %v294 = vsel %vm247, %v230, 0
  %v297 = vsel %vm247, %v231, 0
  %v300 = vsel %vm247, %v232, 0
  %v303 = vsel %vm247, %v233, 0
  %v306 = vsel %vm247, %v234, 0
  %v309 = vsel %vm247, %v235, 0
  %v312 = vsel %vm247, %v236, 0
  %v315 = vsel %vm247, %v237, 0
  %v318 = vsel %vm247, %v238, 0
  %v321 = vsel %vm247, %v239, 0
  %v324 = vsel %vm247, %v240, 0
  %v327 = vsel %vm247, %v241, 0
  %v330 = vsel %vm247, %v242, 0
  %v333 = vsel %vm247, %v243, 0
  %v336 = vsel %vm247, %v244, 0
  %v339 = vsel %vm247, %v245, 0
  %v342 = vsel %vm247, %v246, 0
  %vm344 = vcmask 1041408
  %v346 = vsel %vm344, %v79, 0
  %348 = vmatprep.subr.bf16.mxu0 0
  %349 = vmatpush1.bf16.msra.mxu0 0
  %350 = vmatprep.subr.bf16.mxu0 0
  %351 = vmatpush1.bf16.msra.mxu0 0
  %352 = vmatprep.subr.bf16.mxu0 0
  %353 = vmatpush1.bf16.msra.mxu0 0
  %354 = vmatprep.subr.bf16.mxu0 0
  %355 = vmatpush1.bf16.msra.mxu0 0
  %356 = vmatprep.subr.bf16.mxu0 0
  %357 = vmatpush1.bf16.msra.mxu0 0
  %358 = vmatprep.subr.bf16.mxu0 0
  %359 = vmatpush1.bf16.msra.mxu0 0
  %360 = vmatprep.subr.bf16.mxu0 0
  %361 = vmatpush1.bf16.msra.mxu0 0
  %362 = vmatprep.subr.bf16.mxu0 0
  %363 = vmatpush1.bf16.msra.mxu0 %v346
  %364 = vmatprep.subr.bf16.mxu0 0
  %365 = vmatpush2.bf16.msra.mxu0 0
  %366 = vmatprep.subr.bf16.mxu0 0
  %367 = vmatpush2.bf16.msra.mxu0 0
  %368 = vmatprep.subr.bf16.mxu0 0
  %369 = vmatpush2.bf16.msra.mxu0 0
  %370 = vmatprep.subr.bf16.mxu0 0
  %371 = vmatpush2.bf16.msra.mxu0 0
  %372 = vmatprep.subr.bf16.mxu0 0
  %373 = vmatpush2.bf16.msra.mxu0 0
  %374 = vmatprep.subr.bf16.mxu0 0
  %375 = vmatpush2.bf16.msra.mxu0 0
  %376 = vmatprep.subr.bf16.mxu0 0
  %377 = vmatpush2.bf16.msra.mxu0 0
  %378 = vmatprep.subr.bf16.mxu0 0
  %379 = vmatpush2.bf16.msra.mxu0 0
  %380 = vmatprep.mubr.bf16.mxu0 0
  %381 = vmatmul.mubr.bf16.gmra.mxu0 %v249
  %v382 = vpop.f32.mrf.mxu0
  %v383 = vadd.f32 %v85, %v382
  %v384 = vpop.f32.mrf.mxu0
  %v385 = vpop.f32.mrf.mxu0
  %v386 = vadd.f32 %v85, %v385
  %v387 = vpop.f32.mrf.mxu0
  %388 = vmatprep.mubr.bf16.mxu0 0
  %389 = vmatmul.mubr.bf16.gmra.mxu0 %v252
  %v390 = vpop.f32.mrf.mxu0
  %v391 = vadd.f32 %v85, %v390
  %v392 = vpop.f32.mrf.mxu0
  %v393 = vpop.f32.mrf.mxu0
  %v394 = vadd.f32 %v85, %v393
  %v395 = vpop.f32.mrf.mxu0
  %396 = vmatprep.mubr.bf16.mxu0 0
  %397 = vmatmul.mubr.bf16.gmra.mxu0 %v255
  %v398 = vpop.f32.mrf.mxu0
  %v399 = vadd.f32 %v85, %v398
  %v400 = vpop.f32.mrf.mxu0
  %v401 = vpop.f32.mrf.mxu0
  %v402 = vadd.f32 %v85, %v401
  %v403 = vpop.f32.mrf.mxu0
  %404 = vmatprep.mubr.bf16.mxu0 0
  %405 = vmatmul.mubr.bf16.gmra.mxu0 %v258
  %v406 = vpop.f32.mrf.mxu0
  %v407 = vadd.f32 %v85, %v406
  %v408 = vpop.f32.mrf.mxu0
  %v409 = vpop.f32.mrf.mxu0
  %v410 = vadd.f32 %v85, %v409
  %v411 = vpop.f32.mrf.mxu0
  %412 = vmatprep.mubr.bf16.mxu0 0
  %413 = vmatmul.mubr.bf16.gmra.mxu0 %v261
  %v414 = vpop.f32.mrf.mxu0
  %v415 = vadd.f32 %v85, %v414
  %v416 = vpop.f32.mrf.mxu0
  %v417 = vpop.f32.mrf.mxu0
  %v418 = vadd.f32 %v85, %v417
  %v419 = vpop.f32.mrf.mxu0
  %420 = vmatprep.mubr.bf16.mxu0 0
  %421 = vmatmul.mubr.bf16.gmra.mxu0 %v264
  %v422 = vpop.f32.mrf.mxu0
  %v423 = vadd.f32 %v85, %v422
  %v424 = vpop.f32.mrf.mxu0
  %v425 = vpop.f32.mrf.mxu0
  %v426 = vadd.f32 %v85, %v425
  %v427 = vpop.f32.mrf.mxu0
  %428 = vmatprep.mubr.bf16.mxu0 0
  %429 = vmatmul.mubr.bf16.gmra.mxu0 %v267
  %v430 = vpop.f32.mrf.mxu0
  %v431 = vadd.f32 %v85, %v430
  %v432 = vpop.f32.mrf.mxu0
  %v433 = vpop.f32.mrf.mxu0
  %v434 = vadd.f32 %v85, %v433
  %v435 = vpop.f32.mrf.mxu0
  %436 = vmatprep.mubr.bf16.mxu0 0
  %437 = vmatmul.mubr.bf16.gmra.mxu0 %v270
  %v438 = vpop.f32.mrf.mxu0
  %v439 = vadd.f32 %v85, %v438
  %v440 = vpop.f32.mrf.mxu0
  %v441 = vpop.f32.mrf.mxu0
  %v442 = vadd.f32 %v85, %v441
  %v443 = vpop.f32.mrf.mxu0
  %444 = vmatprep.mubr.bf16.mxu0 0
  %445 = vmatmul.mubr.bf16.gmra.mxu0 %v273
  %v446 = vpop.f32.mrf.mxu0
  %v447 = vadd.f32 %v85, %v446
  %v448 = vpop.f32.mrf.mxu0
  %v449 = vpop.f32.mrf.mxu0
  %v450 = vadd.f32 %v85, %v449
  %v451 = vpop.f32.mrf.mxu0
  %452 = vmatprep.mubr.bf16.mxu0 0
  %453 = vmatmul.mubr.bf16.gmra.mxu0 %v276
  %v454 = vpop.f32.mrf.mxu0
  %v455 = vadd.f32 %v85, %v454
  %v456 = vpop.f32.mrf.mxu0
  %v457 = vpop.f32.mrf.mxu0
  %v458 = vadd.f32 %v85, %v457
  %v459 = vpop.f32.mrf.mxu0
  %460 = vmatprep.mubr.bf16.mxu0 0
  %461 = vmatmul.mubr.bf16.gmra.mxu0 %v279
  %v462 = vpop.f32.mrf.mxu0
  %v463 = vadd.f32 %v85, %v462
  %v464 = vpop.f32.mrf.mxu0
  %v465 = vpop.f32.mrf.mxu0
  %v466 = vadd.f32 %v85, %v465
  %v467 = vpop.f32.mrf.mxu0
  %468 = vmatprep.mubr.bf16.mxu0 0
  %469 = vmatmul.mubr.bf16.gmra.mxu0 %v282
  %v470 = vpop.f32.mrf.mxu0
  %v471 = vadd.f32 %v85, %v470
  %v472 = vpop.f32.mrf.mxu0
  %v473 = vpop.f32.mrf.mxu0
  %v474 = vadd.f32 %v85, %v473
  %v475 = vpop.f32.mrf.mxu0
  %476 = vmatprep.mubr.bf16.mxu0 0
  %477 = vmatmul.mubr.bf16.gmra.mxu0 %v285
  %v478 = vpop.f32.mrf.mxu0
  %v479 = vadd.f32 %v85, %v478
  %v480 = vpop.f32.mrf.mxu0
  %v481 = vpop.f32.mrf.mxu0
  %v482 = vadd.f32 %v85, %v481
  %v483 = vpop.f32.mrf.mxu0
  %484 = vmatprep.mubr.bf16.mxu0 0
  %485 = vmatmul.mubr.bf16.gmra.mxu0 %v288
  %v486 = vpop.f32.mrf.mxu0
  %v487 = vadd.f32 %v85, %v486
  %v488 = vpop.f32.mrf.mxu0
  %v489 = vpop.f32.mrf.mxu0
  %v490 = vadd.f32 %v85, %v489
  %v491 = vpop.f32.mrf.mxu0
  %492 = vmatprep.mubr.bf16.mxu0 0
  %493 = vmatmul.mubr.bf16.gmra.mxu0 %v291
  %v494 = vpop.f32.mrf.mxu0
  %v495 = vadd.f32 %v85, %v494
  %v496 = vpop.f32.mrf.mxu0
  %v497 = vpop.f32.mrf.mxu0
  %v498 = vadd.f32 %v85, %v497
  %v499 = vpop.f32.mrf.mxu0
  %500 = vmatprep.mubr.bf16.mxu0 0
  %501 = vmatmul.mubr.bf16.gmra.mxu0 %v294
  %v502 = vpop.f32.mrf.mxu0
  %v503 = vadd.f32 %v85, %v502
  %v504 = vpop.f32.mrf.mxu0
  %v505 = vpop.f32.mrf.mxu0
  %v506 = vadd.f32 %v85, %v505
  %v507 = vpop.f32.mrf.mxu0
  %508 = vmatprep.mubr.bf16.mxu0 0
  %509 = vmatmul.mubr.bf16.gmra.mxu0 %v297
  %v510 = vpop.f32.mrf.mxu0
  %v511 = vadd.f32 %v85, %v510
  %v512 = vpop.f32.mrf.mxu0
  %v513 = vpop.f32.mrf.mxu0
  %v514 = vadd.f32 %v85, %v513
  %v515 = vpop.f32.mrf.mxu0
  %516 = vmatprep.mubr.bf16.mxu0 0
  %517 = vmatmul.mubr.bf16.gmra.mxu0 %v300
  %v518 = vpop.f32.mrf.mxu0
  %v519 = vadd.f32 %v85, %v518
  %v520 = vpop.f32.mrf.mxu0
  %v521 = vpop.f32.mrf.mxu0
  %v522 = vadd.f32 %v85, %v521
  %v523 = vpop.f32.mrf.mxu0
  %524 = vmatprep.mubr.bf16.mxu0 0
  %525 = vmatmul.mubr.bf16.gmra.mxu0 %v303
  %v526 = vpop.f32.mrf.mxu0
  %v527 = vadd.f32 %v85, %v526
  %v528 = vpop.f32.mrf.mxu0
  %v529 = vpop.f32.mrf.mxu0
  %v530 = vadd.f32 %v85, %v529
  %v531 = vpop.f32.mrf.mxu0
  %532 = vmatprep.mubr.bf16.mxu0 0
  %533 = vmatmul.mubr.bf16.gmra.mxu0 %v306
  %v534 = vpop.f32.mrf.mxu0
  %v535 = vadd.f32 %v85, %v534
  %v536 = vpop.f32.mrf.mxu0
  %v537 = vpop.f32.mrf.mxu0
  %v538 = vadd.f32 %v85, %v537
  %v539 = vpop.f32.mrf.mxu0
  %540 = vmatprep.mubr.bf16.mxu0 0
  %541 = vmatmul.mubr.bf16.gmra.mxu0 %v309
  %v542 = vpop.f32.mrf.mxu0
  %v543 = vadd.f32 %v85, %v542
  %v544 = vpop.f32.mrf.mxu0
  %v545 = vpop.f32.mrf.mxu0
  %v546 = vadd.f32 %v85, %v545
  %v547 = vpop.f32.mrf.mxu0
  %548 = vmatprep.mubr.bf16.mxu0 0
  %549 = vmatmul.mubr.bf16.gmra.mxu0 %v312
  %v550 = vpop.f32.mrf.mxu0
  %v551 = vadd.f32 %v85, %v550
  %v552 = vpop.f32.mrf.mxu0
  %v553 = vpop.f32.mrf.mxu0
  %v554 = vadd.f32 %v85, %v553
  %v555 = vpop.f32.mrf.mxu0
  %556 = vmatprep.mubr.bf16.mxu0 0
  %557 = vmatmul.mubr.bf16.gmra.mxu0 %v315
  %v558 = vpop.f32.mrf.mxu0
  %v559 = vadd.f32 %v85, %v558
  %v560 = vpop.f32.mrf.mxu0
  %v561 = vpop.f32.mrf.mxu0
  %v562 = vadd.f32 %v85, %v561
  %v563 = vpop.f32.mrf.mxu0
  %564 = vmatprep.mubr.bf16.mxu0 0
  %565 = vmatmul.mubr.bf16.gmra.mxu0 %v318
  %v566 = vpop.f32.mrf.mxu0
  %v567 = vadd.f32 %v85, %v566
  %v568 = vpop.f32.mrf.mxu0
  %v569 = vpop.f32.mrf.mxu0
  %v570 = vadd.f32 %v85, %v569
  %v571 = vpop.f32.mrf.mxu0
  %572 = vmatprep.mubr.bf16.mxu0 0
  %573 = vmatmul.mubr.bf16.gmra.mxu0 %v321
  %v574 = vpop.f32.mrf.mxu0
  %v575 = vadd.f32 %v85, %v574
  %v576 = vpop.f32.mrf.mxu0
  %v577 = vpop.f32.mrf.mxu0
  %v578 = vadd.f32 %v85, %v577
  %v579 = vpop.f32.mrf.mxu0
  %580 = vmatprep.mubr.bf16.mxu0 0
  %581 = vmatmul.mubr.bf16.gmra.mxu0 %v324
  %v582 = vpop.f32.mrf.mxu0
  %v583 = vadd.f32 %v85, %v582
  %v584 = vpop.f32.mrf.mxu0
  %v585 = vpop.f32.mrf.mxu0
  %v586 = vadd.f32 %v85, %v585
  %v587 = vpop.f32.mrf.mxu0
  %588 = vmatprep.mubr.bf16.mxu0 0
  %589 = vmatmul.mubr.bf16.gmra.mxu0 %v327
  %v590 = vpop.f32.mrf.mxu0
  %v591 = vadd.f32 %v85, %v590
  %v592 = vpop.f32.mrf.mxu0
  %v593 = vpop.f32.mrf.mxu0
  %v594 = vadd.f32 %v85, %v593
  %v595 = vpop.f32.mrf.mxu0
  %596 = vmatprep.mubr.bf16.mxu0 0
  %597 = vmatmul.mubr.bf16.gmra.mxu0 %v330
  %v598 = vpop.f32.mrf.mxu0
  %v599 = vadd.f32 %v85, %v598
  %v600 = vpop.f32.mrf.mxu0
  %v601 = vpop.f32.mrf.mxu0
  %v602 = vadd.f32 %v85, %v601
  %v603 = vpop.f32.mrf.mxu0
  %604 = vmatprep.mubr.bf16.mxu0 0
  %605 = vmatmul.mubr.bf16.gmra.mxu0 %v333
  %v606 = vpop.f32.mrf.mxu0
  %v607 = vadd.f32 %v85, %v606
  %v608 = vpop.f32.mrf.mxu0
  %v609 = vpop.f32.mrf.mxu0
  %v610 = vadd.f32 %v85, %v609
  %v611 = vpop.f32.mrf.mxu0
  %612 = vmatprep.mubr.bf16.mxu0 0
  %613 = vmatmul.mubr.bf16.gmra.mxu0 %v336
  %v614 = vpop.f32.mrf.mxu0
  %v615 = vadd.f32 %v85, %v614
  %v616 = vpop.f32.mrf.mxu0
  %v617 = vpop.f32.mrf.mxu0
  %v618 = vadd.f32 %v85, %v617
  %v619 = vpop.f32.mrf.mxu0
  %620 = vmatprep.mubr.bf16.mxu0 0
  %621 = vmatmul.mubr.bf16.gmra.mxu0 %v339
  %v622 = vpop.f32.mrf.mxu0
  %v623 = vadd.f32 %v85, %v622
  %v624 = vpop.f32.mrf.mxu0
  %v625 = vpop.f32.mrf.mxu0
  %v626 = vadd.f32 %v85, %v625
  %v627 = vpop.f32.mrf.mxu0
  %628 = vmatprep.mubr.bf16.mxu0 0
  %629 = vmatmul.mubr.bf16.gmra.mxu0 %v342
  %v630 = vpop.f32.mrf.mxu0
  %v631 = vadd.f32 %v85, %v630
  %v632 = vpop.f32.mrf.mxu0
  %v633 = vpop.f32.mrf.mxu0
  %v634 = vadd.f32 %v85, %v633
  %v635 = vpop.f32.mrf.mxu0
  %636 = vdwg.mxu0
  %vm637 = vcmp.gt.f32.partialorder %v383, 0.0
  %vm638 = vcmp.gt.f32.partialorder %v386, 0.0
  %vm639 = vcmp.gt.f32.partialorder %v391, 0.0
  %vm640 = vcmp.gt.f32.partialorder %v394, 0.0
  %vm641 = vcmp.gt.f32.partialorder %v399, 0.0
  %vm642 = vcmp.gt.f32.partialorder %v402, 0.0
  %vm643 = vcmp.gt.f32.partialorder %v407, 0.0
  %vm644 = vcmp.gt.f32.partialorder %v410, 0.0
  %vm645 = vcmp.gt.f32.partialorder %v415, 0.0
  %vm646 = vcmp.gt.f32.partialorder %v418, 0.0
  %vm647 = vcmp.gt.f32.partialorder %v423, 0.0
  %vm648 = vcmp.gt.f32.partialorder %v426, 0.0
  %vm649 = vcmp.gt.f32.partialorder %v431, 0.0
  %vm650 = vcmp.gt.f32.partialorder %v434, 0.0
  %vm651 = vcmp.gt.f32.partialorder %v439, 0.0
  %vm652 = vcmp.gt.f32.partialorder %v442, 0.0
  %vm653 = vcmp.gt.f32.partialorder %v447, 0.0
  %vm654 = vcmp.gt.f32.partialorder %v450, 0.0
  %vm655 = vcmp.gt.f32.partialorder %v455, 0.0
  %vm656 = vcmp.gt.f32.partialorder %v458, 0.0
  %vm657 = vcmp.gt.f32.partialorder %v463, 0.0
  %vm658 = vcmp.gt.f32.partialorder %v466, 0.0
  %vm659 = vcmp.gt.f32.partialorder %v471, 0.0
  %vm660 = vcmp.gt.f32.partialorder %v474, 0.0
  %vm661 = vcmp.gt.f32.partialorder %v479, 0.0
  %vm662 = vcmp.gt.f32.partialorder %v482, 0.0
  %vm663 = vcmp.gt.f32.partialorder %v487, 0.0
  %vm664 = vcmp.gt.f32.partialorder %v490, 0.0
  %vm665 = vcmp.gt.f32.partialorder %v495, 0.0
  %vm666 = vcmp.gt.f32.partialorder %v498, 0.0
  %vm667 = vcmp.gt.f32.partialorder %v503, 0.0
  %vm668 = vcmp.gt.f32.partialorder %v506, 0.0
  %vm669 = vcmp.gt.f32.partialorder %v511, 0.0
  %vm670 = vcmp.gt.f32.partialorder %v514, 0.0
  %vm671 = vcmp.gt.f32.partialorder %v519, 0.0
  %vm672 = vcmp.gt.f32.partialorder %v522, 0.0
  %vm673 = vcmp.gt.f32.partialorder %v527, 0.0
  %vm674 = vcmp.gt.f32.partialorder %v530, 0.0
  %vm675 = vcmp.gt.f32.partialorder %v535, 0.0
  %vm676 = vcmp.gt.f32.partialorder %v538, 0.0
  %vm677 = vcmp.gt.f32.partialorder %v543, 0.0
  %vm678 = vcmp.gt.f32.partialorder %v546, 0.0
  %vm679 = vcmp.gt.f32.partialorder %v551, 0.0
  %vm680 = vcmp.gt.f32.partialorder %v554, 0.0
  %vm681 = vcmp.gt.f32.partialorder %v559, 0.0
  %vm682 = vcmp.gt.f32.partialorder %v562, 0.0
  %vm683 = vcmp.gt.f32.partialorder %v567, 0.0
  %vm684 = vcmp.gt.f32.partialorder %v570, 0.0
  %vm685 = vcmp.gt.f32.partialorder %v575, 0.0
  %vm686 = vcmp.gt.f32.partialorder %v578, 0.0
  %vm687 = vcmp.gt.f32.partialorder %v583, 0.0
  %vm688 = vcmp.gt.f32.partialorder %v586, 0.0
  %vm689 = vcmp.gt.f32.partialorder %v591, 0.0
  %vm690 = vcmp.gt.f32.partialorder %v594, 0.0
  %vm691 = vcmp.gt.f32.partialorder %v599, 0.0
  %vm692 = vcmp.gt.f32.partialorder %v602, 0.0
  %vm693 = vcmp.gt.f32.partialorder %v607, 0.0
  %vm694 = vcmp.gt.f32.partialorder %v610, 0.0
  %vm695 = vcmp.gt.f32.partialorder %v615, 0.0
  %vm696 = vcmp.gt.f32.partialorder %v618, 0.0
  %vm697 = vcmp.gt.f32.partialorder %v623, 0.0
  %vm698 = vcmp.gt.f32.partialorder %v626, 0.0
  %vm699 = vcmp.gt.f32.partialorder %v631, 0.0
  %vm700 = vcmp.gt.f32.partialorder %v634, 0.0
  %v701 = vmul.f32 %v383, 0.1
  %v702 = vmul.f32 %v386, 0.1
  %v703 = vmul.f32 %v391, 0.1
  %v704 = vmul.f32 %v394, 0.1
  %v705 = vmul.f32 %v399, 0.1
  %v706 = vmul.f32 %v402, 0.1
  %v707 = vmul.f32 %v407, 0.1
  %v708 = vmul.f32 %v410, 0.1
  %v709 = vmul.f32 %v415, 0.1
  %v710 = vmul.f32 %v418, 0.1
  %v711 = vmul.f32 %v423, 0.1
  %v712 = vmul.f32 %v426, 0.1
  %v713 = vmul.f32 %v431, 0.1
  %v714 = vmul.f32 %v434, 0.1
  %v715 = vmul.f32 %v439, 0.1
  %v716 = vmul.f32 %v442, 0.1
  %v717 = vmul.f32 %v447, 0.1
  %v718 = vmul.f32 %v450, 0.1
  %v719 = vmul.f32 %v455, 0.1
  %v720 = vmul.f32 %v458, 0.1
  %v721 = vmul.f32 %v463, 0.1
  %v722 = vmul.f32 %v466, 0.1
  %v723 = vmul.f32 %v471, 0.1
  %v724 = vmul.f32 %v474, 0.1
  %v725 = vmul.f32 %v479, 0.1
  %v726 = vmul.f32 %v482, 0.1
  %v727 = vmul.f32 %v487, 0.1
  %v728 = vmul.f32 %v490, 0.1
  %v729 = vmul.f32 %v495, 0.1
  %v730 = vmul.f32 %v498, 0.1
  %v731 = vmul.f32 %v503, 0.1
  %v732 = vmul.f32 %v506, 0.1
  %v733 = vmul.f32 %v511, 0.1
  %v734 = vmul.f32 %v514, 0.1
  %v735 = vmul.f32 %v519, 0.1
  %v736 = vmul.f32 %v522, 0.1
  %v737 = vmul.f32 %v527, 0.1
  %v738 = vmul.f32 %v530, 0.1
  %v739 = vmul.f32 %v535, 0.1
  %v740 = vmul.f32 %v538, 0.1
  %v741 = vmul.f32 %v543, 0.1
  %v742 = vmul.f32 %v546, 0.1
  %v743 = vmul.f32 %v551, 0.1
  %v744 = vmul.f32 %v554, 0.1
  %v745 = vmul.f32 %v559, 0.1
  %v746 = vmul.f32 %v562, 0.1
  %v747 = vmul.f32 %v567, 0.1
  %v748 = vmul.f32 %v570, 0.1
  %v749 = vmul.f32 %v575, 0.1
  %v750 = vmul.f32 %v578, 0.1
  %v751 = vmul.f32 %v583, 0.1
  %v752 = vmul.f32 %v586, 0.1
  %v753 = vmul.f32 %v591, 0.1
  %v754 = vmul.f32 %v594, 0.1
  %v755 = vmul.f32 %v599, 0.1
  %v756 = vmul.f32 %v602, 0.1
  %v757 = vmul.f32 %v607, 0.1
  %v758 = vmul.f32 %v610, 0.1
  %v759 = vmul.f32 %v615, 0.1
  %v760 = vmul.f32 %v618, 0.1
  %v761 = vmul.f32 %v623, 0.1
  %v762 = vmul.f32 %v626, 0.1
  %v763 = vmul.f32 %v631, 0.1
  %v764 = vmul.f32 %v634, 0.1
  %v765 = vsel %vm637, %v383, %v701
  %v766 = vsel %vm638, %v386, %v702
  %v767 = vsel %vm639, %v391, %v703
  %v768 = vsel %vm640, %v394, %v704
  %v769 = vsel %vm641, %v399, %v705
  %v770 = vsel %vm642, %v402, %v706
  %v771 = vsel %vm643, %v407, %v707
  %v772 = vsel %vm644, %v410, %v708
  %v773 = vsel %vm645, %v415, %v709
  %v774 = vsel %vm646, %v418, %v710
  %v775 = vsel %vm647, %v423, %v711
  %v776 = vsel %vm648, %v426, %v712
  %v777 = vsel %vm649, %v431, %v713
  %v778 = vsel %vm650, %v434, %v714
  %v779 = vsel %vm651, %v439, %v715
  %v780 = vsel %vm652, %v442, %v716
  %v781 = vsel %vm653, %v447, %v717
  %v782 = vsel %vm654, %v450, %v718
  %v783 = vsel %vm655, %v455, %v719
  %v784 = vsel %vm656, %v458, %v720
  %v785 = vsel %vm657, %v463, %v721
  %v786 = vsel %vm658, %v466, %v722
  %v787 = vsel %vm659, %v471, %v723
  %v788 = vsel %vm660, %v474, %v724
  %v789 = vsel %vm661, %v479, %v725
  %v790 = vsel %vm662, %v482, %v726
  %v791 = vsel %vm663, %v487, %v727
  %v792 = vsel %vm664, %v490, %v728
  %v793 = vsel %vm665, %v495, %v729
  %v794 = vsel %vm666, %v498, %v730
  %v795 = vsel %vm667, %v503, %v731
  %v796 = vsel %vm668, %v506, %v732
  %v797 = vsel %vm669, %v511, %v733
  %v798 = vsel %vm670, %v514, %v734
  %v799 = vsel %vm671, %v519, %v735
  %v800 = vsel %vm672, %v522, %v736
  %v801 = vsel %vm673, %v527, %v737
  %v802 = vsel %vm674, %v530, %v738
  %v803 = vsel %vm675, %v535, %v739
  %v804 = vsel %vm676, %v538, %v740
  %v805 = vsel %vm677, %v543, %v741
  %v806 = vsel %vm678, %v546, %v742
  %v807 = vsel %vm679, %v551, %v743
  %v808 = vsel %vm680, %v554, %v744
  %v809 = vsel %vm681, %v559, %v745
  %v810 = vsel %vm682, %v562, %v746
  %v811 = vsel %vm683, %v567, %v747
  %v812 = vsel %vm684, %v570, %v748
  %v813 = vsel %vm685, %v575, %v749
  %v814 = vsel %vm686, %v578, %v750
  %v815 = vsel %vm687, %v583, %v751
  %v816 = vsel %vm688, %v586, %v752
  %v817 = vsel %vm689, %v591, %v753
  %v818 = vsel %vm690, %v594, %v754
  %v819 = vsel %vm691, %v599, %v755
  %v820 = vsel %vm692, %v602, %v756
  %v821 = vsel %vm693, %v607, %v757
  %v822 = vsel %vm694, %v610, %v758
  %v823 = vsel %vm695, %v615, %v759
  %v824 = vsel %vm696, %v618, %v760
  %v825 = vsel %vm697, %v623, %v761
  %v826 = vsel %vm698, %v626, %v762
  %v827 = vsel %vm699, %v631, %v763
  %v828 = vsel %vm700, %v634, %v764
  %v829 = vpack.c.bf16 %v766, %v765
  %v830 = vpack.c.bf16 %v768, %v767
  %v831 = vpack.c.bf16 %v770, %v769
  %v832 = vpack.c.bf16 %v772, %v771
  %v833 = vpack.c.bf16 %v774, %v773
  %v834 = vpack.c.bf16 %v776, %v775
  %v835 = vpack.c.bf16 %v778, %v777
  %v836 = vpack.c.bf16 %v780, %v779
  %v837 = vpack.c.bf16 %v782, %v781
  %v838 = vpack.c.bf16 %v784, %v783
  %v839 = vpack.c.bf16 %v786, %v785
  %v840 = vpack.c.bf16 %v788, %v787
  %v841 = vpack.c.bf16 %v790, %v789
  %v842 = vpack.c.bf16 %v792, %v791
  %v843 = vpack.c.bf16 %v794, %v793
  %v844 = vpack.c.bf16 %v796, %v795
  %v845 = vpack.c.bf16 %v798, %v797
  %v846 = vpack.c.bf16 %v800, %v799
  %v847 = vpack.c.bf16 %v802, %v801
  %v848 = vpack.c.bf16 %v804, %v803
  %v849 = vpack.c.bf16 %v806, %v805
  %v850 = vpack.c.bf16 %v808, %v807
  %v851 = vpack.c.bf16 %v810, %v809
  %v852 = vpack.c.bf16 %v812, %v811
  %v853 = vpack.c.bf16 %v814, %v813
  %v854 = vpack.c.bf16 %v816, %v815
  %v855 = vpack.c.bf16 %v818, %v817
  %v856 = vpack.c.bf16 %v820, %v819
  %v857 = vpack.c.bf16 %v822, %v821
  %v858 = vpack.c.bf16 %v824, %v823
  %v859 = vpack.c.bf16 %v826, %v825
  %v860 = vpack.c.bf16 %v828, %v827
  %v893 = vunpack.c.l.b16 %v829
  %v894 = vunpack.c.h.b16 %v829
  %v895 = vunpack.c.l.b16 %v830
  %v896 = vunpack.c.h.b16 %v830
  %v897 = vunpack.c.l.b16 %v831
  %v898 = vunpack.c.h.b16 %v831
  %v899 = vunpack.c.l.b16 %v832
  %v900 = vunpack.c.h.b16 %v832
  %v901 = vunpack.c.l.b16 %v833
  %v902 = vunpack.c.h.b16 %v833
  %v903 = vunpack.c.l.b16 %v834
  %v904 = vunpack.c.h.b16 %v834
  %v905 = vunpack.c.l.b16 %v835
  %v906 = vunpack.c.h.b16 %v835
  %v907 = vunpack.c.l.b16 %v836
  %v908 = vunpack.c.h.b16 %v836
  %v909 = vunpack.c.l.b16 %v837
  %v910 = vunpack.c.h.b16 %v837
  %v911 = vunpack.c.l.b16 %v838
  %v912 = vunpack.c.h.b16 %v838
  %v913 = vunpack.c.l.b16 %v839
  %v914 = vunpack.c.h.b16 %v839
  %v915 = vunpack.c.l.b16 %v840
  %v916 = vunpack.c.h.b16 %v840
  %v917 = vunpack.c.l.b16 %v841
  %v918 = vunpack.c.h.b16 %v841
  %v919 = vunpack.c.l.b16 %v842
  %v920 = vunpack.c.h.b16 %v842
  %v921 = vunpack.c.l.b16 %v843
  %v922 = vunpack.c.h.b16 %v843
  %v923 = vunpack.c.l.b16 %v844
  %v924 = vunpack.c.h.b16 %v844
  %v925 = vunpack.c.l.b16 %v845
  %v926 = vunpack.c.h.b16 %v845
  %v927 = vunpack.c.l.b16 %v846
  %v928 = vunpack.c.h.b16 %v846
  %v929 = vunpack.c.l.b16 %v847
  %v930 = vunpack.c.h.b16 %v847
  %v931 = vunpack.c.l.b16 %v848
  %v932 = vunpack.c.h.b16 %v848
  %v933 = vunpack.c.l.b16 %v849
  %v934 = vunpack.c.h.b16 %v849
  %v935 = vunpack.c.l.b16 %v850
  %v936 = vunpack.c.h.b16 %v850
  %v937 = vunpack.c.l.b16 %v851
  %v938 = vunpack.c.h.b16 %v851
  %v939 = vunpack.c.l.b16 %v852
  %v940 = vunpack.c.h.b16 %v852
  %v941 = vunpack.c.l.b16 %v853
  %v942 = vunpack.c.h.b16 %v853
  %v943 = vunpack.c.l.b16 %v854
  %v944 = vunpack.c.h.b16 %v854
  %v945 = vunpack.c.l.b16 %v855
  %v946 = vunpack.c.h.b16 %v855
  %v947 = vunpack.c.l.b16 %v856
  %v948 = vunpack.c.h.b16 %v856
  %v949 = vunpack.c.l.b16 %v857
  %v950 = vunpack.c.h.b16 %v857
  %v951 = vunpack.c.l.b16 %v858
  %v952 = vunpack.c.h.b16 %v858
  %v953 = vunpack.c.l.b16 %v859
  %v954 = vunpack.c.h.b16 %v859
  %v955 = vunpack.c.l.b16 %v860
  %v956 = vunpack.c.h.b16 %v860
  %v957 = vpack.c.b16 %v893, %v893
  %v958 = vpack.c.b16 %v894, %v894
  %v959 = vpack.c.b16 %v895, %v895
  %v960 = vpack.c.b16 %v896, %v896
  %v961 = vpack.c.b16 %v897, %v897
  %v962 = vpack.c.b16 %v898, %v898
  %v963 = vpack.c.b16 %v899, %v899
  %v964 = vpack.c.b16 %v900, %v900
  %v965 = vpack.c.b16 %v901, %v901
  %v966 = vpack.c.b16 %v902, %v902
  %v967 = vpack.c.b16 %v903, %v903
  %v968 = vpack.c.b16 %v904, %v904
  %v969 = vpack.c.b16 %v905, %v905
  %v970 = vpack.c.b16 %v906, %v906
  %v971 = vpack.c.b16 %v907, %v907
  %v972 = vpack.c.b16 %v908, %v908
  %v973 = vpack.c.b16 %v909, %v909
  %v974 = vpack.c.b16 %v910, %v910
  %v975 = vpack.c.b16 %v911, %v911
  %v976 = vpack.c.b16 %v912, %v912
  %v977 = vpack.c.b16 %v913, %v913
  %v978 = vpack.c.b16 %v914, %v914
  %v979 = vpack.c.b16 %v915, %v915
  %v980 = vpack.c.b16 %v916, %v916
  %v981 = vpack.c.b16 %v917, %v917
  %v982 = vpack.c.b16 %v918, %v918
  %v983 = vpack.c.b16 %v919, %v919
  %v984 = vpack.c.b16 %v920, %v920
  %v985 = vpack.c.b16 %v921, %v921
  %v986 = vpack.c.b16 %v922, %v922
  %v987 = vpack.c.b16 %v923, %v923
  %v988 = vpack.c.b16 %v924, %v924
  %v989 = vpack.c.b16 %v925, %v925
  %v990 = vpack.c.b16 %v926, %v926
  %v991 = vpack.c.b16 %v927, %v927
  %v992 = vpack.c.b16 %v928, %v928
  %v993 = vpack.c.b16 %v929, %v929
  %v994 = vpack.c.b16 %v930, %v930
  %v995 = vpack.c.b16 %v931, %v931
  %v996 = vpack.c.b16 %v932, %v932
  %v997 = vpack.c.b16 %v933, %v933
  %v998 = vpack.c.b16 %v934, %v934
  %v999 = vpack.c.b16 %v935, %v935
  %v1000 = vpack.c.b16 %v936, %v936
  %v1001 = vpack.c.b16 %v937, %v937
  %v1002 = vpack.c.b16 %v938, %v938
  %v1003 = vpack.c.b16 %v939, %v939
  %v1004 = vpack.c.b16 %v940, %v940
  %v1005 = vpack.c.b16 %v941, %v941
  %v1006 = vpack.c.b16 %v942, %v942
  %v1007 = vpack.c.b16 %v943, %v943
  %v1008 = vpack.c.b16 %v944, %v944
  %v1009 = vpack.c.b16 %v945, %v945
  %v1010 = vpack.c.b16 %v946, %v946
  %v1011 = vpack.c.b16 %v947, %v947
  %v1012 = vpack.c.b16 %v948, %v948
  %v1013 = vpack.c.b16 %v949, %v949
  %v1014 = vpack.c.b16 %v950, %v950
  %v1015 = vpack.c.b16 %v951, %v951
  %v1016 = vpack.c.b16 %v952, %v952
  %v1017 = vpack.c.b16 %v953, %v953
  %v1018 = vpack.c.b16 %v954, %v954
  %v1019 = vpack.c.b16 %v955, %v955
  %v1020 = vpack.c.b16 %v956, %v956
  %vm1085 = vcmask 125952
  %1086 = vst.msk [vmem:[%s3] sm:$0xf] %vm1085, %v957
  %1087 = vst.msk [vmem:[%s3 + $0x4] sm:$0xf] %vm1085, %v958
  %1088 = vst.msk [vmem:[%s3 + $0x8] sm:$0xf] %vm1085, %v959
  %1089 = vst.msk [vmem:[%s3 + $0xc] sm:$0xf] %vm1085, %v960
  %1090 = vst.msk [vmem:[%s3 + $0x10] sm:$0xf] %vm1085, %v961
  %1091 = vst.msk [vmem:[%s3 + $0x14] sm:$0xf] %vm1085, %v962
  %1092 = vst.msk [vmem:[%s3 + $0x18] sm:$0xf] %vm1085, %v963
  %1093 = vst.msk [vmem:[%s3 + $0x1c] sm:$0xf] %vm1085, %v964
  %1094 = vst.msk [vmem:[%s3 + $0x20] sm:$0xf] %vm1085, %v965
  %1095 = vst.msk [vmem:[%s3 + $0x24] sm:$0xf] %vm1085, %v966
  %1096 = vst.msk [vmem:[%s3 + $0x28] sm:$0xf] %vm1085, %v967
  %1097 = vst.msk [vmem:[%s3 + $0x2c] sm:$0xf] %vm1085, %v968
  %1098 = vst.msk [vmem:[%s3 + $0x30] sm:$0xf] %vm1085, %v969
  %1099 = vst.msk [vmem:[%s3 + $0x34] sm:$0xf] %vm1085, %v970
  %1100 = vst.msk [vmem:[%s3 + $0x38] sm:$0xf] %vm1085, %v971
  %1101 = vst.msk [vmem:[%s3 + $0x3c] sm:$0xf] %vm1085, %v972
  %1102 = vst.msk [vmem:[%s3 + $0x40] sm:$0xf] %vm1085, %v973
  %1103 = vst.msk [vmem:[%s3 + $0x44] sm:$0xf] %vm1085, %v974
  %1104 = vst.msk [vmem:[%s3 + $0x48] sm:$0xf] %vm1085, %v975
  %1105 = vst.msk [vmem:[%s3 + $0x4c] sm:$0xf] %vm1085, %v976
  %1106 = vst.msk [vmem:[%s3 + $0x50] sm:$0xf] %vm1085, %v977
  %1107 = vst.msk [vmem:[%s3 + $0x54] sm:$0xf] %vm1085, %v978
  %1108 = vst.msk [vmem:[%s3 + $0x58] sm:$0xf] %vm1085, %v979
  %1109 = vst.msk [vmem:[%s3 + $0x5c] sm:$0xf] %vm1085, %v980
  %1110 = vst.msk [vmem:[%s3 + $0x60] sm:$0xf] %vm1085, %v981
  %1111 = vst.msk [vmem:[%s3 + $0x64] sm:$0xf] %vm1085, %v982
  %1112 = vst.msk [vmem:[%s3 + $0x68] sm:$0xf] %vm1085, %v983
  %1113 = vst.msk [vmem:[%s3 + $0x6c] sm:$0xf] %vm1085, %v984
  %1114 = vst.msk [vmem:[%s3 + $0x70] sm:$0xf] %vm1085, %v985
  %1115 = vst.msk [vmem:[%s3 + $0x74] sm:$0xf] %vm1085, %v986
  %1116 = vst.msk [vmem:[%s3 + $0x78] sm:$0xf] %vm1085, %v987
  %1117 = vst.msk [vmem:[%s3 + $0x7c] sm:$0xf] %vm1085, %v988
  %1118 = vst.msk [vmem:[%s3 + $0x80] sm:$0xf] %vm1085, %v989
  %1119 = vst.msk [vmem:[%s3 + $0x84] sm:$0xf] %vm1085, %v990
  %1120 = vst.msk [vmem:[%s3 + $0x88] sm:$0xf] %vm1085, %v991
  %1121 = vst.msk [vmem:[%s3 + $0x8c] sm:$0xf] %vm1085, %v992
  %1122 = vst.msk [vmem:[%s3 + $0x90] sm:$0xf] %vm1085, %v993
  %1123 = vst.msk [vmem:[%s3 + $0x94] sm:$0xf] %vm1085, %v994
  %1124 = vst.msk [vmem:[%s3 + $0x98] sm:$0xf] %vm1085, %v995
  %1125 = vst.msk [vmem:[%s3 + $0x9c] sm:$0xf] %vm1085, %v996
  %1126 = vst.msk [vmem:[%s3 + $0xa0] sm:$0xf] %vm1085, %v997
  %1127 = vst.msk [vmem:[%s3 + $0xa4] sm:$0xf] %vm1085, %v998
  %1128 = vst.msk [vmem:[%s3 + $0xa8] sm:$0xf] %vm1085, %v999
  %1129 = vst.msk [vmem:[%s3 + $0xac] sm:$0xf] %vm1085, %v1000
  %1130 = vst.msk [vmem:[%s3 + $0xb0] sm:$0xf] %vm1085, %v1001
  %1131 = vst.msk [vmem:[%s3 + $0xb4] sm:$0xf] %vm1085, %v1002
  %1132 = vst.msk [vmem:[%s3 + $0xb8] sm:$0xf] %vm1085, %v1003
  %1133 = vst.msk [vmem:[%s3 + $0xbc] sm:$0xf] %vm1085, %v1004
  %1134 = vst.msk [vmem:[%s3 + $0xc0] sm:$0xf] %vm1085, %v1005
  %1135 = vst.msk [vmem:[%s3 + $0xc4] sm:$0xf] %vm1085, %v1006
  %1136 = vst.msk [vmem:[%s3 + $0xc8] sm:$0xf] %vm1085, %v1007
  %1137 = vst.msk [vmem:[%s3 + $0xcc] sm:$0xf] %vm1085, %v1008
  %1138 = vst.msk [vmem:[%s3 + $0xd0] sm:$0xf] %vm1085, %v1009
  %1139 = vst.msk [vmem:[%s3 + $0xd4] sm:$0xf] %vm1085, %v1010
  %1140 = vst.msk [vmem:[%s3 + $0xd8] sm:$0xf] %vm1085, %v1011
  %1141 = vst.msk [vmem:[%s3 + $0xdc] sm:$0xf] %vm1085, %v1012
  %1142 = vst.msk [vmem:[%s3 + $0xe0] sm:$0xf] %vm1085, %v1013
  %1143 = vst.msk [vmem:[%s3 + $0xe4] sm:$0xf] %vm1085, %v1014
  %1144 = vst.msk [vmem:[%s3 + $0xe8] sm:$0xf] %vm1085, %v1015
  %1145 = vst.msk [vmem:[%s3 + $0xec] sm:$0xf] %vm1085, %v1016
  %1146 = vst.msk [vmem:[%s3 + $0xf0] sm:$0xf] %vm1085, %v1017
  %1147 = vst.msk [vmem:[%s3 + $0xf4] sm:$0xf] %vm1085, %v1018
  %1148 = vst.msk [vmem:[%s3 + $0xf8] sm:$0xf] %vm1085, %v1019
  %1149 = vst.msk [vmem:[%s3 + $0xfc] sm:$0xf] %vm1085, %v1020
  // Predicated region
  $region14: #{fire_forward.2} parent=0 // pred_check
    _
  $region15: #{fire_forward.2} parent=0 // pred_check_branch
    %1151 = sbr.rel (0) target = $region17
  $region16: #{fire_forward.2} parent=0 // pred_region
    _
  $region17: #{fire_forward.2} parent=0 // pred_fallthru
    _
  // Predicated region
  $region18: #{fire_forward.2} parent=0 // pred_check
    _
  $region19: #{fire_forward.2} parent=0 // pred_check_branch
    %1153 = sbr.rel (0) target = $region21
  $region20: #{fire_forward.2} parent=0 // pred_region
    _
  $region21: #{fire_forward.2} parent=0 // pred_fallthru
    _

// kernel: fire_forward.3
$region0: #{fire_forward.3}
  #allocation0 [shape = 'u32[]', space=smem, size = 0x4, offset = 0x4, fixed_abs, tag = 'smem constant byte address 0x4 - core index']
  #allocation1 [shape = 'u32[144,128]{1,0:T(1,128)}', space=vmem, size = 0x12000, scoped, tag = 'internal scratch']
  #allocation2 [shape = 'f32[18,18,16]{2,1,0:T(8,128)}', space=vmem, size = 0x36000, scoped, tag = 'scratch operand']
  %s0 = inlined_call_operand.vmem [shape: bf16[2,18,18,16], index: 0, kind: input, shape index: {}]
  %s1 = inlined_call_operand.vmem [shape: bf16[16,128], index: 1, kind: input, shape index: {}]
  %s2 = inlined_call_operand.vmem [shape: bf16[9,16,128], index: 2, kind: input, shape index: {}]
  %s3 = inlined_call_operand.vmem [shape: f32[1,128], index: 3, kind: input, shape index: {}]
  %s4 = inlined_call_operand.vmem [shape: f32[1,128], index: 4, kind: input, shape index: {}]
  %s5 = inlined_call_operand.hbm [shape: f32[2,256,256], index: 5, kind: output, shape index: {}]
  %s6 = sld [smem:[#allocation0]]
  $region53: #{fire_forward.3} parent=0
    _
  %s8 = ssub.s32 1, %s6
  %s9 = scalar_select 0, %s8, %s6
  $region1: #{fire_forward.3} parent=0
    #allocation3 [shape = 'u8[524288]{0}', space=vmem, size = 0x80000, scoped, tag = 'output window, operand 0']
    #allocation4 [shape = 's32[2]{0}', space=sflag, size = 0x8, scoped, tag = 'scoped memory for fire_forward.3']
    %10 = vsyncpa [#allocation4], 0
    %s11 = scalar_lea.sflag [#allocation4], 1
    %12 = vsyncpa %s11, 0
    loop: start=0, step=1, limit=4
    $region2: #{fire_forward.3} parent=1 // loop_pre_header
      _
    $region3: #{fire_forward.3} parent=1 // loop_header
      %s14 = sphi 0, %s18
      %p15 = scmp.ge.s32.totalorder %s14, 4
      %s24 = sphi 0, %s26
      %s27 = sphi 0, %s24
      %s28 = sphi 0, %s27
      %s44 = sphi 0, %s28
      %s48 = sphi 0, %s48
      %s50 = sphi 0, %s48
      %s51 = sphi 0, %s50
      %s65 = sphi 0, %s51
      %s69 = sphi 0, %s69
      %s71 = sphi 0, %s69
      %s72 = sphi 0, %s71
      %s86 = sphi 0, %s72
      %s90 = sphi 0, %s90
      %s92 = sphi 0, %s90
      %s93 = sphi 0, %s92
      %s107 = sphi 0, %s93
      %s111 = sphi 0, %s111
      %s113 = sphi 0, %s111
      %s114 = sphi 0, %s113
      %s128 = sphi 0, %s114
      %s134 = sphi 0, %s136
      %s137 = sphi 0, %s134
      %s138 = sphi 0, %s137
      %s154 = sphi 0, %s138
    $region4: #{fire_forward.3} parent=1 // loop_header_branch
      %17 = sbr.rel (%p15) target = $region8
    $region5: #{fire_forward.3} parent=1 // loop_body
      %s19 = ssub.s32 %s14, 1
      %s20 = ssub.s32 %s14, 2
      %s21 = sadd.s32 %s14, 1
      %s22 = ssub.s32 %s14, %s21
      %p23 = scmp.eq.s32.totalorder %s22, 0
      %s25 = sadd.s32 %s24, 1
      %s26 = scalar_select %p23, %s24, %s25
      %p29 = pneg %p23
      %p30 = scmp.eq.s32.totalorder %s14, 1
      %p31 = por %p29, %p30
      %p32 = scmp.ne.s32.totalorder %s24, %s27
      %p33 = scmp.eq.s32.totalorder %s14, 0
      %p34 = por %p32, %p33
      %p35 = scmp.ne.s32.totalorder %s24, %s27
      %p36 = scmp.eq.s32.totalorder %s19, 1
      %p37 = por %p35, %p36
      %p38 = scmp.ne.s32.totalorder %s27, %s28
      %p39 = scmp.eq.s32.totalorder %s19, 0
      %p40 = por %p38, %p39
      %p41 = scmp.ne.s32.totalorder %s27, %s28
      %p42 = scmp.eq.s32.totalorder %s20, 1
      %p43 = por %p41, %p42
      %p45 = scmp.ne.s32.totalorder %s28, %s44
      %p46 = scmp.eq.s32.totalorder %s20, 0
      %p47 = por %p45, %p46
      %s49 = sadd.s32 %s48, 1
      %p52 = scmp.eq.s32.totalorder %s14, 1
      %p53 = scmp.ne.s32.totalorder %s48, %s50
      %p54 = scmp.eq.s32.totalorder %s14, 0
      %p55 = por %p53, %p54
      %p56 = scmp.ne.s32.totalorder %s48, %s50
      %p57 = scmp.eq.s32.totalorder %s19, 1
      %p58 = por %p56, %p57
      %p59 = scmp.ne.s32.totalorder %s50, %s51
      %p60 = scmp.eq.s32.totalorder %s19, 0
      %p61 = por %p59, %p60
      %p62 = scmp.ne.s32.totalorder %s50, %s51
      %p63 = scmp.eq.s32.totalorder %s20, 1
      %p64 = por %p62, %p63
      %p66 = scmp.ne.s32.totalorder %s51, %s65
      %p67 = scmp.eq.s32.totalorder %s20, 0
      %p68 = por %p66, %p67
      %s70 = sadd.s32 %s69, 1
      %p73 = scmp.eq.s32.totalorder %s14, 1
      %p74 = scmp.ne.s32.totalorder %s69, %s71
      %p75 = scmp.eq.s32.totalorder %s14, 0
      %p76 = por %p74, %p75
      %p77 = scmp.ne.s32.totalorder %s69, %s71
      %p78 = scmp.eq.s32.totalorder %s19, 1
      %p79 = por %p77, %p78
      %p80 = scmp.ne.s32.totalorder %s71, %s72
      %p81 = scmp.eq.s32.totalorder %s19, 0
      %p82 = por %p80, %p81
      %p83 = scmp.ne.s32.totalorder %s71, %s72
      %p84 = scmp.eq.s32.totalorder %s20, 1
      %p85 = por %p83, %p84
      %p87 = scmp.ne.s32.totalorder %s72, %s86
      %p88 = scmp.eq.s32.totalorder %s20, 0
      %p89 = por %p87, %p88
      %s91 = sadd.s32 %s90, 1
      %p94 = scmp.eq.s32.totalorder %s14, 1
      %p95 = scmp.ne.s32.totalorder %s90, %s92
      %p96 = scmp.eq.s32.totalorder %s14, 0
      %p97 = por %p95, %p96
      %p98 = scmp.ne.s32.totalorder %s90, %s92
      %p99 = scmp.eq.s32.totalorder %s19, 1
      %p100 = por %p98, %p99
      %p101 = scmp.ne.s32.totalorder %s92, %s93
      %p102 = scmp.eq.s32.totalorder %s19, 0
      %p103 = por %p101, %p102
      %p104 = scmp.ne.s32.totalorder %s92, %s93
      %p105 = scmp.eq.s32.totalorder %s20, 1
      %p106 = por %p104, %p105
      %p108 = scmp.ne.s32.totalorder %s93, %s107
      %p109 = scmp.eq.s32.totalorder %s20, 0
      %p110 = por %p108, %p109
      %s112 = sadd.s32 %s111, 1
      %p115 = scmp.eq.s32.totalorder %s14, 1
      %p116 = scmp.ne.s32.totalorder %s111, %s113
      %p117 = scmp.eq.s32.totalorder %s14, 0
      %p118 = por %p116, %p117
      %p119 = scmp.ne.s32.totalorder %s111, %s113
      %p120 = scmp.eq.s32.totalorder %s19, 1
      %p121 = por %p119, %p120
      %p122 = scmp.ne.s32.totalorder %s113, %s114
      %p123 = scmp.eq.s32.totalorder %s19, 0
      %p124 = por %p122, %p123
      %p125 = scmp.ne.s32.totalorder %s113, %s114
      %p126 = scmp.eq.s32.totalorder %s20, 1
      %p127 = por %p125, %p126
      %p129 = scmp.ne.s32.totalorder %s114, %s128
      %p130 = scmp.eq.s32.totalorder %s20, 0
      %p131 = por %p129, %p130
      %s132 = ssub.s32 %s14, %s21
      %p133 = scmp.eq.s32.totalorder %s132, 0
      %s135 = sadd.s32 %s134, 1
      %s136 = scalar_select %p133, %s134, %s135
      %p139 = pneg %p133
      %p140 = scmp.eq.s32.totalorder %s14, 1
      %p141 = por %p139, %p140
      %p142 = scmp.ne.s32.totalorder %s134, %s137
      %p143 = scmp.eq.s32.totalorder %s14, 0
      %p144 = por %p142, %p143
      %p145 = scmp.ne.s32.totalorder %s134, %s137
      %p146 = scmp.eq.s32.totalorder %s19, 1
      %p147 = por %p145, %p146
      %p148 = scmp.ne.s32.totalorder %s137, %s138
      %p149 = scmp.eq.s32.totalorder %s19, 0
      %p150 = por %p148, %p149
      %p151 = scmp.ne.s32.totalorder %s137, %s138
      %p152 = scmp.eq.s32.totalorder %s20, 1
      %p153 = por %p151, %p152
      %p155 = scmp.ne.s32.totalorder %s138, %s154
      %p156 = scmp.eq.s32.totalorder %s20, 0
      %p157 = por %p155, %p156
      %p158 = scmp.le.s32.totalorder 1, %s14
      %p159 = scmp.lt.s32.totalorder %s14, 3
      %p160 = pnand %p158, %p159
      %p161 = pneg %p160
      // Predicated region
      $region9: #{fire_forward.3} parent=5 // pred_check
        _
      $region10: #{fire_forward.3} parent=5 // pred_check_branch
        %163 = sbr.rel (%p160) target = $region12
      $region11: #{fire_forward.3} parent=5 // pred_region
        %s164 = ssub.s32 %s14, 1
        // Predicated region
        $region13: #{fire_forward.3} parent=11 // pred_check
          %p165 = pneg %p61
        $region14: #{fire_forward.3} parent=11 // pred_check_branch
          %167 = sbr.rel (%p165) target = $region16
        $region15: #{fire_forward.3} parent=11 // pred_region
          _
        $region16: #{fire_forward.3} parent=11 // pred_fallthru
          _
        // Predicated region
        $region17: #{fire_forward.3} parent=11 // pred_check
          %p168 = pneg %p82
        $region18: #{fire_forward.3} parent=11 // pred_check_branch
          %170 = sbr.rel (%p168) target = $region20
        $region19: #{fire_forward.3} parent=11 // pred_region
          _
        $region20: #{fire_forward.3} parent=11 // pred_fallthru
          _
        // Predicated region
        $region21: #{fire_forward.3} parent=11 // pred_check
          %p171 = pneg %p103
        $region22: #{fire_forward.3} parent=11 // pred_check_branch
          %173 = sbr.rel (%p171) target = $region24
        $region23: #{fire_forward.3} parent=11 // pred_region
          _
        $region24: #{fire_forward.3} parent=11 // pred_fallthru
          _
        // Predicated region
        $region25: #{fire_forward.3} parent=11 // pred_check
          %p174 = pneg %p124
        $region26: #{fire_forward.3} parent=11 // pred_check_branch
          %176 = sbr.rel (%p174) target = $region28
        $region27: #{fire_forward.3} parent=11 // pred_region
          _
        $region28: #{fire_forward.3} parent=11 // pred_fallthru
          _
      $region12: #{fire_forward.3} parent=5 // pred_fallthru
        _
      %p177 = scmp.lt.s32.totalorder %s14, 2
      // Predicated region
      $region29: #{fire_forward.3} parent=5 // pred_check
        %p178 = pneg %p177
      $region30: #{fire_forward.3} parent=5 // pred_check_branch
        %180 = sbr.rel (%p178) target = $region32
      $region31: #{fire_forward.3} parent=5 // pred_region
        // Predicated region
        $region33: #{fire_forward.3} parent=31 // pred_check
          %p181 = pneg %p34
        $region34: #{fire_forward.3} parent=31 // pred_check_branch
          %183 = sbr.rel (%p181) target = $region36
        $region35: #{fire_forward.3} parent=31 // pred_region
          %p184 = scmp.lt.s32.totalorder %s14, 1
          %s185 = scalar_select %p184, %s14, 1
          %s186 = smul.addr %s185, 54
          %s187 = smul.addr %s186, 4
          %s188 = scalar_lea.vmem %s0, %s187
        $region36: #{fire_forward.3} parent=31 // pred_fallthru
          _
      $region32: #{fire_forward.3} parent=5 // pred_fallthru
        _
      %p189 = scmp.le.s32.totalorder 1, %s14
      %p190 = scmp.lt.s32.totalorder %s14, 3
      %p191 = pnand %p189, %p190
      %p192 = pneg %p191
      // Predicated region
      $region37: #{fire_forward.3} parent=5 // pred_check
        _
      $region38: #{fire_forward.3} parent=5 // pred_check_branch
        %194 = sbr.rel (%p191) target = $region40
      $region39: #{fire_forward.3} parent=5 // pred_region
        %s195 = ssub.s32 %s14, 1
        %p196 = scmp.lt.s32.totalorder %s19, 1
        %s197 = scalar_select %p196, %s19, 1
        %s198 = smul.addr %s197, 54
        %s199 = smul.addr %s198, 4
        %s200 = scalar_lea.vmem %s0, %s199
        %p201 = pneg %p40
        %p202 = pneg %p37
        %p203 = pneg %p61
        %p204 = pneg %p58
        %p205 = pneg %p82
        %p206 = pneg %p79
        %p207 = pneg %p103
        %p208 = pneg %p100
        %p209 = pneg %p124
        %p210 = pneg %p121
        %p211 = pneg %p150
        %p212 = pneg %p147
        %s213 = sand.u32 %s137, 1
        %s214 = scalar_lea.sflag [#allocation4], %s213
        %s215 = sand.u32 %s137, 1
        %s216 = smul.addr %s215, 512
        %s217 = scalar_lea.vmem [#allocation3], %s216
        %p218 = scmp.lt.s32.totalorder %s19, 1
        %s219 = scalar_select %p218, %s19, 1
        %s220 = smul.addr %s219, 54
        %s221 = smul.addr %s220, 4
        %s222 = scalar_lea.vmem %s0, %s221
        %v224 = vld [vmem:[%s222] sm:$0xf]
        %v225 = vld [vmem:[%s222 + $0x4] sm:$0xf]
        %v226 = vld [vmem:[%s222 + $0x8] sm:$0x1]
        %v227 = vld [vmem:[%s222 + $0xc] sm:$0xf]
        %v228 = vld [vmem:[%s222 + $0x10] sm:$0xf]
        %v229 = vld [vmem:[%s222 + $0x14] sm:$0x1]
        %v230 = vld [vmem:[%s222 + $0x18] sm:$0xf]
        %v231 = vld [vmem:[%s222 + $0x1c] sm:$0xf]
        %v232 = vld [vmem:[%s222 + $0x20] sm:$0x1]
        %v233 = vld [vmem:[%s222 + $0x24] sm:$0xf]
        %v234 = vld [vmem:[%s222 + $0x28] sm:$0xf]
        %v235 = vld [vmem:[%s222 + $0x2c] sm:$0x1]
        %v236 = vld [vmem:[%s222 + $0x30] sm:$0xf]
        %v237 = vld [vmem:[%s222 + $0x34] sm:$0xf]
        %v238 = vld [vmem:[%s222 + $0x38] sm:$0x1]
        %v239 = vld [vmem:[%s222 + $0x3c] sm:$0xf]
        %v240 = vld [vmem:[%s222 + $0x40] sm:$0xf]
        %v241 = vld [vmem:[%s222 + $0x44] sm:$0x1]
        %v242 = vld [vmem:[%s222 + $0x48] sm:$0xf]
        %v243 = vld [vmem:[%s222 + $0x4c] sm:$0xf]
        %v244 = vld [vmem:[%s222 + $0x50] sm:$0x1]
        %v245 = vld [vmem:[%s222 + $0x54] sm:$0xf]
        %v246 = vld [vmem:[%s222 + $0x58] sm:$0xf]
        %v247 = vld [vmem:[%s222 + $0x5c] sm:$0x1]
        %v248 = vld [vmem:[%s222 + $0x60] sm:$0xf]
        %v249 = vld [vmem:[%s222 + $0x64] sm:$0xf]
        %v250 = vld [vmem:[%s222 + $0x68] sm:$0x1]
        %v251 = vld [vmem:[%s222 + $0x6c] sm:$0xf]
        %v252 = vld [vmem:[%s222 + $0x70] sm:$0xf]
        %v253 = vld [vmem:[%s222 + $0x74] sm:$0x1]
        %v254 = vld [vmem:[%s222 + $0x78] sm:$0xf]
        %v255 = vld [vmem:[%s222 + $0x7c] sm:$0xf]
        %v256 = vld [vmem:[%s222 + $0x80] sm:$0x1]
        %v257 = vld [vmem:[%s222 + $0x84] sm:$0xf]
        %v258 = vld [vmem:[%s222 + $0x88] sm:$0xf]
        %v259 = vld [vmem:[%s222 + $0x8c] sm:$0x1]
        %v260 = vld [vmem:[%s222 + $0x90] sm:$0xf]
        %v261 = vld [vmem:[%s222 + $0x94] sm:$0xf]
        %v262 = vld [vmem:[%s222 + $0x98] sm:$0x1]
        %v263 = vld [vmem:[%s222 + $0x9c] sm:$0xf]
        %v264 = vld [vmem:[%s222 + $0xa0] sm:$0xf]
        %v265 = vld [vmem:[%s222 + $0xa4] sm:$0x1]
        %v266 = vld [vmem:[%s222 + $0xa8] sm:$0xf]
        %v267 = vld [vmem:[%s222 + $0xac] sm:$0xf]
        %v268 = vld [vmem:[%s222 + $0xb0] sm:$0x1]
        %v269 = vld [vmem:[%s222 + $0xb4] sm:$0xf]
        %v270 = vld [vmem:[%s222 + $0xb8] sm:$0xf]
        %v271 = vld [vmem:[%s222 + $0xbc] sm:$0x1]
        %v272 = vld [vmem:[%s222 + $0xc0] sm:$0xf]
        %v273 = vld [vmem:[%s222 + $0xc4] sm:$0xf]
        %v274 = vld [vmem:[%s222 + $0xc8] sm:$0x1]
        %v275 = vld [vmem:[%s222 + $0xcc] sm:$0xf]
        %v276 = vld [vmem:[%s222 + $0xd0] sm:$0xf]
        %v277 = vld [vmem:[%s222 + $0xd4] sm:$0x1]
        %v278 = vunpack.c.l.bf16 %v224
        %v279 = vunpack.c.l.bf16 %v225
        %v280 = vunpack.c.l.bf16 %v226
        %v281 = vunpack.c.l.bf16 %v227
        %v282 = vunpack.c.l.bf16 %v228
        %v283 = vunpack.c.l.bf16 %v229
        %v284 = vunpack.c.l.bf16 %v230
        %v285 = vunpack.c.l.bf16 %v231
        %v286 = vunpack.c.l.bf16 %v232
        %v287 = vunpack.c.l.bf16 %v233
        %v288 = vunpack.c.l.bf16 %v234
        %v289 = vunpack.c.l.bf16 %v235
        %v290 = vunpack.c.l.bf16 %v236
        %v291 = vunpack.c.l.bf16 %v237
        %v292 = vunpack.c.l.bf16 %v238
        %v293 = vunpack.c.l.bf16 %v239
        %v294 = vunpack.c.l.bf16 %v240
        %v295 = vunpack.c.l.bf16 %v241
        %v296 = vunpack.c.l.bf16 %v242
        %v297 = vunpack.c.l.bf16 %v243
        %v298 = vunpack.c.l.bf16 %v244
        %v299 = vunpack.c.l.bf16 %v245
        %v300 = vunpack.c.l.bf16 %v246
        %v301 = vunpack.c.l.bf16 %v247
        %v302 = vunpack.c.l.bf16 %v248
        %v303 = vunpack.c.l.bf16 %v249
        %v304 = vunpack.c.l.bf16 %v250
        %v305 = vunpack.c.l.bf16 %v251
        %v306 = vunpack.c.l.bf16 %v252
        %v307 = vunpack.c.l.bf16 %v253
        %v308 = vunpack.c.l.bf16 %v254
        %v309 = vunpack.c.l.bf16 %v255
        %v310 = vunpack.c.l.bf16 %v256
        %v311 = vunpack.c.l.bf16 %v257
        %v312 = vunpack.c.l.bf16 %v258
        %v313 = vunpack.c.l.bf16 %v259
        %v314 = vunpack.c.l.bf16 %v260
        %v315 = vunpack.c.l.bf16 %v261
        %v316 = vunpack.c.l.bf16 %v262
        %v317 = vunpack.c.l.bf16 %v263
        %v318 = vunpack.c.l.bf16 %v264
        %v319 = vunpack.c.l.bf16 %v265
        %v320 = vunpack.c.l.bf16 %v266
        %v321 = vunpack.c.l.bf16 %v267
        %v322 = vunpack.c.l.bf16 %v268
        %v323 = vunpack.c.l.bf16 %v269
        %v324 = vunpack.c.l.bf16 %v270
        %v325 = vunpack.c.l.bf16 %v271
        %v326 = vunpack.c.l.bf16 %v272
        %v327 = vunpack.c.l.bf16 %v273
        %v328 = vunpack.c.l.bf16 %v274
        %v329 = vunpack.c.l.bf16 %v275
        %v330 = vunpack.c.l.bf16 %v276
        %v331 = vunpack.c.l.bf16 %v277
        %vm332 = vcmask 130048
        %333 = vst.msk [vmem:[#allocation2] sm:$0xff] %vm332, %v278
        %334 = vst.msk [vmem:[#allocation2 + $0x8] sm:$0xff] %vm332, %v279
        %vm335 = vcmask 123904
        %336 = vst.msk [vmem:[#allocation2 + $0x10] sm:$0x3] %vm335, %v280
        %337 = vst.msk [vmem:[#allocation2 + $0x18] sm:$0xff] %vm332, %v281
        %338 = vst.msk [vmem:[#allocation2 + $0x20] sm:$0xff] %vm332, %v282
        %339 = vst.msk [vmem:[#allocation2 + $0x28] sm:$0x3] %vm335, %v283
        %340 = vst.msk [vmem:[#allocation2 + $0x30] sm:$0xff] %vm332, %v284
        %341 = vst.msk [vmem:[#allocation2 + $0x38] sm:$0xff] %vm332, %v285
        %342 = vst.msk [vmem:[#allocation2 + $0x40] sm:$0x3] %vm335, %v286
        %343 = vst.msk [vmem:[#allocation2 + $0x48] sm:$0xff] %vm332, %v287
        %344 = vst.msk [vmem:[#allocation2 + $0x50] sm:$0xff] %vm332, %v288
        %345 = vst.msk [vmem:[#allocation2 + $0x58] sm:$0x3] %vm335, %v289
        %346 = vst.msk [vmem:[#allocation2 + $0x60] sm:$0xff] %vm332, %v290
        %347 = vst.msk [vmem:[#allocation2 + $0x68] sm:$0xff] %vm332, %v291
        %348 = vst.msk [vmem:[#allocation2 + $0x70] sm:$0x3] %vm335, %v292
        %349 = vst.msk [vmem:[#allocation2 + $0x78] sm:$0xff] %vm332, %v293
        %350 = vst.msk [vmem:[#allocation2 + $0x80] sm:$0xff] %vm332, %v294
        %351 = vst.msk [vmem:[#allocation2 + $0x88] sm:$0x3] %vm335, %v295
        %352 = vst.msk [vmem:[#allocation2 + $0x90] sm:$0xff] %vm332, %v296
        %353 = vst.msk [vmem:[#allocation2 + $0x98] sm:$0xff] %vm332, %v297
        %354 = vst.msk [vmem:[#allocation2 + $0xa0] sm:$0x3] %vm335, %v298
        %355 = vst.msk [vmem:[#allocation2 + $0xa8] sm:$0xff] %vm332, %v299
        %356 = vst.msk [vmem:[#allocation2 + $0xb0] sm:$0xff] %vm332, %v300
        %357 = vst.msk [vmem:[#allocation2 + $0xb8] sm:$0x3] %vm335, %v301
        %358 = vst.msk [vmem:[#allocation2 + $0xc0] sm:$0xff] %vm332, %v302
        %359 = vst.msk [vmem:[#allocation2 + $0xc8] sm:$0xff] %vm332, %v303
        %360 = vst.msk [vmem:[#allocation2 + $0xd0] sm:$0x3] %vm335, %v304
        %361 = vst.msk [vmem:[#allocation2 + $0xd8] sm:$0xff] %vm332, %v305
        %362 = vst.msk [vmem:[#allocation2 + $0xe0] sm:$0xff] %vm332, %v306
        %363 = vst.msk [vmem:[#allocation2 + $0xe8] sm:$0x3] %vm335, %v307
        %364 = vst.msk [vmem:[#allocation2 + $0xf0] sm:$0xff] %vm332, %v308
        %365 = vst.msk [vmem:[#allocation2 + $0xf8] sm:$0xff] %vm332, %v309
        %366 = vst.msk [vmem:[#allocation2 + $0x100] sm:$0x3] %vm335, %v310
        %367 = vst.msk [vmem:[#allocation2 + $0x108] sm:$0xff] %vm332, %v311
        %368 = vst.msk [vmem:[#allocation2 + $0x110] sm:$0xff] %vm332, %v312
        %369 = vst.msk [vmem:[#allocation2 + $0x118] sm:$0x3] %vm335, %v313
        %370 = vst.msk [vmem:[#allocation2 + $0x120] sm:$0xff] %vm332, %v314
        %371 = vst.msk [vmem:[#allocation2 + $0x128] sm:$0xff] %vm332, %v315
        %372 = vst.msk [vmem:[#allocation2 + $0x130] sm:$0x3] %vm335, %v316
        %373 = vst.msk [vmem:[#allocation2 + $0x138] sm:$0xff] %vm332, %v317
        %374 = vst.msk [vmem:[#allocation2 + $0x140] sm:$0xff] %vm332, %v318
        %375 = vst.msk [vmem:[#allocation2 + $0x148] sm:$0x3] %vm335, %v319
        %376 = vst.msk [vmem:[#allocation2 + $0x150] sm:$0xff] %vm332, %v320
        %377 = vst.msk [vmem:[#allocation2 + $0x158] sm:$0xff] %vm332, %v321
        %378 = vst.msk [vmem:[#allocation2 + $0x160] sm:$0x3] %vm335, %v322
        %379 = vst.msk [vmem:[#allocation2 + $0x168] sm:$0xff] %vm332, %v323
        %380 = vst.msk [vmem:[#allocation2 + $0x170] sm:$0xff] %vm332, %v324
        %381 = vst.msk [vmem:[#allocation2 + $0x178] sm:$0x3] %vm335, %v325
        %382 = vst.msk [vmem:[#allocation2 + $0x180] sm:$0xff] %vm332, %v326
        %383 = vst.msk [vmem:[#allocation2 + $0x188] sm:$0xff] %vm332, %v327
        %384 = vst.msk [vmem:[#allocation2 + $0x190] sm:$0x3] %vm335, %v328
        %385 = vst.msk [vmem:[#allocation2 + $0x198] sm:$0xff] %vm332, %v329
        %386 = vst.msk [vmem:[#allocation2 + $0x1a0] sm:$0xff] %vm332, %v330
        %387 = vst.msk [vmem:[#allocation2 + $0x1a8] sm:$0x3] %vm335, %v331
        %s388 = scalar_lea.vmem [#allocation2], 24
        %v389 = vld [vmem:[%s388 + $0x1] sm:$0xff]
        %v390 = vld [vmem:[%s388 + $0x9] sm:$0xff]
        %v391 = vld [vmem:[%s388 + $0x19] sm:$0xff]
        %v392 = vld [vmem:[%s388 + $0x21] sm:$0xff]
        %v393 = vld [vmem:[%s388 + $0x31] sm:$0xff]
        %v394 = vld [vmem:[%s388 + $0x39] sm:$0xff]
        %v395 = vld [vmem:[%s388 + $0x49] sm:$0xff]
        %v396 = vld [vmem:[%s388 + $0x51] sm:$0xff]
        %v397 = vld [vmem:[%s388 + $0x61] sm:$0xff]
        %v398 = vld [vmem:[%s388 + $0x69] sm:$0xff]
        %v399 = vld [vmem:[%s388 + $0x79] sm:$0xff]
        %v400 = vld [vmem:[%s388 + $0x81] sm:$0xff]
        %v401 = vld [vmem:[%s388 + $0x91] sm:$0xff]
        %v402 = vld [vmem:[%s388 + $0x99] sm:$0xff]
        %v403 = vld [vmem:[%s388 + $0xa9] sm:$0xff]
        %v404 = vld [vmem:[%s388 + $0xb1] sm:$0xff]
        %v405 = vld [vmem:[%s388 + $0xc1] sm:$0xff]
        %v406 = vld [vmem:[%s388 + $0xc9] sm:$0xff]
        %v407 = vld [vmem:[%s388 + $0xd9] sm:$0xff]
        %v408 = vld [vmem:[%s388 + $0xe1] sm:$0xff]
        %v409 = vld [vmem:[%s388 + $0xf1] sm:$0xff]
        %v410 = vld [vmem:[%s388 + $0xf9] sm:$0xff]
        %v411 = vld [vmem:[%s388 + $0x109] sm:$0xff]
        %v412 = vld [vmem:[%s388 + $0x111] sm:$0xff]
        %v413 = vld [vmem:[%s388 + $0x121] sm:$0xff]
        %v414 = vld [vmem:[%s388 + $0x129] sm:$0xff]
        %v415 = vld [vmem:[%s388 + $0x139] sm:$0xff]
        %v416 = vld [vmem:[%s388 + $0x141] sm:$0xff]
        %v417 = vld [vmem:[%s388 + $0x151] sm:$0xff]
        %v418 = vld [vmem:[%s388 + $0x159] sm:$0xff]
        %v419 = vld [vmem:[%s388 + $0x169] sm:$0xff]
        %v420 = vld [vmem:[%s388 + $0x171] sm:$0xff]
        %v421 = vpack.c.bf16 %v390, %v389
        %v422 = vpack.c.bf16 %v392, %v391
        %v423 = vpack.c.bf16 %v394, %v393
        %v424 = vpack.c.bf16 %v396, %v395
        %v425 = vpack.c.bf16 %v398, %v397
        %v426 = vpack.c.bf16 %v400, %v399
        %v427 = vpack.c.bf16 %v402, %v401
        %v428 = vpack.c.bf16 %v404, %v403
        %v429 = vpack.c.bf16 %v406, %v405
        %v430 = vpack.c.bf16 %v408, %v407
        %v431 = vpack.c.bf16 %v410, %v409
        %v432 = vpack.c.bf16 %v412, %v411
        %v433 = vpack.c.bf16 %v414, %v413
        %v434 = vpack.c.bf16 %v416, %v415
        %v435 = vpack.c.bf16 %v418, %v417
        %v436 = vpack.c.bf16 %v420, %v419
        %v437 = vld [vmem:[%s1] sm:$0xf]
        %v438 = vld [vmem:[%s1 + $0x4] sm:$0xf]
        %v439 = vld [vmem:[%s3] sm:$0x1]
        %v441 = vlaneseq
        %v442 = vshrl.u32 %v441, 7
        %v443 = vsub.s32 0, %v442
        %v444 = vrot.slane %v439, %v443
        %v448 = vunpack.c.l.b16 %v437
        %v449 = vunpack.c.l.b16 %v438
        %v450 = vpack.c.b16 %v449, %v448
        %v453 = vsel %vm332, %v421, 0
        %v456 = vsel %vm332, %v422, 0
        %v459 = vsel %vm332, %v423, 0
        %v462 = vsel %vm332, %v424, 0
        %v465 = vsel %vm332, %v425, 0
        %v468 = vsel %vm332, %v426, 0
        %v471 = vsel %vm332, %v427, 0
        %v474 = vsel %vm332, %v428, 0
        %v477 = vsel %vm332, %v429, 0
        %v480 = vsel %vm332, %v430, 0
        %v483 = vsel %vm332, %v431, 0
        %v486 = vsel %vm332, %v432, 0
        %v489 = vsel %vm332, %v433, 0
        %v492 = vsel %vm332, %v434, 0
        %v495 = vsel %vm332, %v435, 0
        %v498 = vsel %vm332, %v436, 0
        %500 = vmatprep.subr.bf16.mxu0 0
        %501 = vmatpush1.bf16.msra.mxu0 0
        %502 = vmatprep.subr.bf16.mxu0 0
        %503 = vmatpush1.bf16.msra.mxu0 0
        %504 = vmatprep.subr.bf16.mxu0 0
        %505 = vmatpush1.bf16.msra.mxu0 0
        %506 = vmatprep.subr.bf16.mxu0 0
        %507 = vmatpush1.bf16.msra.mxu0 0
        %508 = vmatprep.subr.bf16.mxu0 0
        %509 = vmatpush1.bf16.msra.mxu0 0
        %510 = vmatprep.subr.bf16.mxu0 0
        %511 = vmatpush1.bf16.msra.mxu0 0
        %512 = vmatprep.subr.bf16.mxu0 0
        %513 = vmatpush1.bf16.msra.mxu0 0
        %514 = vmatprep.subr.bf16.mxu0 0
        %515 = vmatpush1.bf16.msra.mxu0 %v450
        %516 = vmatprep.subr.bf16.mxu0 0
        %517 = vmatpush2.bf16.msra.mxu0 0
        %518 = vmatprep.subr.bf16.mxu0 0
        %519 = vmatpush2.bf16.msra.mxu0 0
        %520 = vmatprep.subr.bf16.mxu0 0
        %521 = vmatpush2.bf16.msra.mxu0 0
        %522 = vmatprep.subr.bf16.mxu0 0
        %523 = vmatpush2.bf16.msra.mxu0 0
        %524 = vmatprep.subr.bf16.mxu0 0
        %525 = vmatpush2.bf16.msra.mxu0 0
        %526 = vmatprep.subr.bf16.mxu0 0
        %527 = vmatpush2.bf16.msra.mxu0 0
        %528 = vmatprep.subr.bf16.mxu0 0
        %529 = vmatpush2.bf16.msra.mxu0 0
        %530 = vmatprep.subr.bf16.mxu0 0
        %531 = vmatpush2.bf16.msra.mxu0 0
        %532 = vmatprep.mubr.bf16.mxu0 0
        %533 = vmatmul.mubr.bf16.gmra.mxu0 %v453
        %v534 = vpop.f32.mrf.mxu0
        %v535 = vadd.f32 %v444, %v534
        %v536 = vpop.f32.mrf.mxu0
        %v537 = vpop.f32.mrf.mxu0
        %v538 = vadd.f32 %v444, %v537
        %v539 = vpop.f32.mrf.mxu0
        %540 = vmatprep.mubr.bf16.mxu0 0
        %541 = vmatmul.mubr.bf16.gmra.mxu0 %v456
        %v542 = vpop.f32.mrf.mxu0
        %v543 = vadd.f32 %v444, %v542
        %v544 = vpop.f32.mrf.mxu0
        %v545 = vpop.f32.mrf.mxu0
        %v546 = vadd.f32 %v444, %v545
        %v547 = vpop.f32.mrf.mxu0
        %548 = vmatprep.mubr.bf16.mxu0 0
        %549 = vmatmul.mubr.bf16.gmra.mxu0 %v459
        %v550 = vpop.f32.mrf.mxu0
        %v551 = vadd.f32 %v444, %v550
        %v552 = vpop.f32.mrf.mxu0
        %v553 = vpop.f32.mrf.mxu0
        %v554 = vadd.f32 %v444, %v553
        %v555 = vpop.f32.mrf.mxu0
        %556 = vmatprep.mubr.bf16.mxu0 0
        %557 = vmatmul.mubr.bf16.gmra.mxu0 %v462
        %v558 = vpop.f32.mrf.mxu0
        %v559 = vadd.f32 %v444, %v558
        %v560 = vpop.f32.mrf.mxu0
        %v561 = vpop.f32.mrf.mxu0
        %v562 = vadd.f32 %v444, %v561
        %v563 = vpop.f32.mrf.mxu0
        %564 = vmatprep.mubr.bf16.mxu0 0
        %565 = vmatmul.mubr.bf16.gmra.mxu0 %v465
        %v566 = vpop.f32.mrf.mxu0
        %v567 = vadd.f32 %v444, %v566
        %v568 = vpop.f32.mrf.mxu0
        %v569 = vpop.f32.mrf.mxu0
        %v570 = vadd.f32 %v444, %v569
        %v571 = vpop.f32.mrf.mxu0
        %572 = vmatprep.mubr.bf16.mxu0 0
        %573 = vmatmul.mubr.bf16.gmra.mxu0 %v468
        %v574 = vpop.f32.mrf.mxu0
        %v575 = vadd.f32 %v444, %v574
        %v576 = vpop.f32.mrf.mxu0
        %v577 = vpop.f32.mrf.mxu0
        %v578 = vadd.f32 %v444, %v577
        %v579 = vpop.f32.mrf.mxu0
        %580 = vmatprep.mubr.bf16.mxu0 0
        %581 = vmatmul.mubr.bf16.gmra.mxu0 %v471
        %v582 = vpop.f32.mrf.mxu0
        %v583 = vadd.f32 %v444, %v582
        %v584 = vpop.f32.mrf.mxu0
        %v585 = vpop.f32.mrf.mxu0
        %v586 = vadd.f32 %v444, %v585
        %v587 = vpop.f32.mrf.mxu0
        %588 = vmatprep.mubr.bf16.mxu0 0
        %589 = vmatmul.mubr.bf16.gmra.mxu0 %v474
        %v590 = vpop.f32.mrf.mxu0
        %v591 = vadd.f32 %v444, %v590
        %v592 = vpop.f32.mrf.mxu0
        %v593 = vpop.f32.mrf.mxu0
        %v594 = vadd.f32 %v444, %v593
        %v595 = vpop.f32.mrf.mxu0
        %596 = vmatprep.mubr.bf16.mxu0 0
        %597 = vmatmul.mubr.bf16.gmra.mxu0 %v477
        %v598 = vpop.f32.mrf.mxu0
        %v599 = vadd.f32 %v444, %v598
        %v600 = vpop.f32.mrf.mxu0
        %v601 = vpop.f32.mrf.mxu0
        %v602 = vadd.f32 %v444, %v601
        %v603 = vpop.f32.mrf.mxu0
        %604 = vmatprep.mubr.bf16.mxu0 0
        %605 = vmatmul.mubr.bf16.gmra.mxu0 %v480
        %v606 = vpop.f32.mrf.mxu0
        %v607 = vadd.f32 %v444, %v606
        %v608 = vpop.f32.mrf.mxu0
        %v609 = vpop.f32.mrf.mxu0
        %v610 = vadd.f32 %v444, %v609
        %v611 = vpop.f32.mrf.mxu0
        %612 = vmatprep.mubr.bf16.mxu0 0
        %613 = vmatmul.mubr.bf16.gmra.mxu0 %v483
        %v614 = vpop.f32.mrf.mxu0
        %v615 = vadd.f32 %v444, %v614
        %v616 = vpop.f32.mrf.mxu0
        %v617 = vpop.f32.mrf.mxu0
        %v618 = vadd.f32 %v444, %v617
        %v619 = vpop.f32.mrf.mxu0
        %620 = vmatprep.mubr.bf16.mxu0 0
        %621 = vmatmul.mubr.bf16.gmra.mxu0 %v486
        %v622 = vpop.f32.mrf.mxu0
        %v623 = vadd.f32 %v444, %v622
        %v624 = vpop.f32.mrf.mxu0
        %v625 = vpop.f32.mrf.mxu0
        %v626 = vadd.f32 %v444, %v625
        %v627 = vpop.f32.mrf.mxu0
        %628 = vmatprep.mubr.bf16.mxu0 0
        %629 = vmatmul.mubr.bf16.gmra.mxu0 %v489
        %v630 = vpop.f32.mrf.mxu0
        %v631 = vadd.f32 %v444, %v630
        %v632 = vpop.f32.mrf.mxu0
        %v633 = vpop.f32.mrf.mxu0
        %v634 = vadd.f32 %v444, %v633
        %v635 = vpop.f32.mrf.mxu0
        %636 = vmatprep.mubr.bf16.mxu0 0
        %637 = vmatmul.mubr.bf16.gmra.mxu0 %v492
        %v638 = vpop.f32.mrf.mxu0
        %v639 = vadd.f32 %v444, %v638
        %v640 = vpop.f32.mrf.mxu0
        %v641 = vpop.f32.mrf.mxu0
        %v642 = vadd.f32 %v444, %v641
        %v643 = vpop.f32.mrf.mxu0
        %644 = vmatprep.mubr.bf16.mxu0 0
        %645 = vmatmul.mubr.bf16.gmra.mxu0 %v495
        %v646 = vpop.f32.mrf.mxu0
        %v647 = vadd.f32 %v444, %v646
        %v648 = vpop.f32.mrf.mxu0
        %v649 = vpop.f32.mrf.mxu0
        %v650 = vadd.f32 %v444, %v649
        %v651 = vpop.f32.mrf.mxu0
        %652 = vmatprep.mubr.bf16.mxu0 0
        %653 = vmatmul.mubr.bf16.gmra.mxu0 %v498
        %v654 = vpop.f32.mrf.mxu0
        %v655 = vadd.f32 %v444, %v654
        %v656 = vpop.f32.mrf.mxu0
        %v657 = vpop.f32.mrf.mxu0
        %v658 = vadd.f32 %v444, %v657
        %v659 = vpop.f32.mrf.mxu0
        %660 = vdwg.mxu0
        %vm661 = vcmp.gt.f32.partialorder %v535, 0.0
        %vm662 = vcmp.gt.f32.partialorder %v538, 0.0
        %vm663 = vcmp.gt.f32.partialorder %v543, 0.0
        %vm664 = vcmp.gt.f32.partialorder %v546, 0.0
        %vm665 = vcmp.gt.f32.partialorder %v551, 0.0
        %vm666 = vcmp.gt.f32.partialorder %v554, 0.0
        %vm667 = vcmp.gt.f32.partialorder %v559, 0.0
        %vm668 = vcmp.gt.f32.partialorder %v562, 0.0
        %vm669 = vcmp.gt.f32.partialorder %v567, 0.0
        %vm670 = vcmp.gt.f32.partialorder %v570, 0.0
        %vm671 = vcmp.gt.f32.partialorder %v575, 0.0
        %vm672 = vcmp.gt.f32.partialorder %v578, 0.0
        %vm673 = vcmp.gt.f32.partialorder %v583, 0.0
        %vm674 = vcmp.gt.f32.partialorder %v586, 0.0
        %vm675 = vcmp.gt.f32.partialorder %v591, 0.0
        %vm676 = vcmp.gt.f32.partialorder %v594, 0.0
        %vm677 = vcmp.gt.f32.partialorder %v599, 0.0
        %vm678 = vcmp.gt.f32.partialorder %v602, 0.0
        %vm679 = vcmp.gt.f32.partialorder %v607, 0.0
        %vm680 = vcmp.gt.f32.partialorder %v610, 0.0
        %vm681 = vcmp.gt.f32.partialorder %v615, 0.0
        %vm682 = vcmp.gt.f32.partialorder %v618, 0.0
        %vm683 = vcmp.gt.f32.partialorder %v623, 0.0
        %vm684 = vcmp.gt.f32.partialorder %v626, 0.0
        %vm685 = vcmp.gt.f32.partialorder %v631, 0.0
        %vm686 = vcmp.gt.f32.partialorder %v634, 0.0
        %vm687 = vcmp.gt.f32.partialorder %v639, 0.0
        %vm688 = vcmp.gt.f32.partialorder %v642, 0.0
        %vm689 = vcmp.gt.f32.partialorder %v647, 0.0
        %vm690 = vcmp.gt.f32.partialorder %v650, 0.0
        %vm691 = vcmp.gt.f32.partialorder %v655, 0.0
        %vm692 = vcmp.gt.f32.partialorder %v658, 0.0
        %v693 = vmul.f32 %v535, 0.1
        %v694 = vmul.f32 %v538, 0.1
        %v695 = vmul.f32 %v543, 0.1
        %v696 = vmul.f32 %v546, 0.1
        %v697 = vmul.f32 %v551, 0.1
        %v698 = vmul.f32 %v554, 0.1
        %v699 = vmul.f32 %v559, 0.1
        %v700 = vmul.f32 %v562, 0.1
        %v701 = vmul.f32 %v567, 0.1
        %v702 = vmul.f32 %v570, 0.1
        %v703 = vmul.f32 %v575, 0.1
        %v704 = vmul.f32 %v578, 0.1
        %v705 = vmul.f32 %v583, 0.1
        %v706 = vmul.f32 %v586, 0.1
        %v707 = vmul.f32 %v591, 0.1
        %v708 = vmul.f32 %v594, 0.1
        %v709 = vmul.f32 %v599, 0.1
        %v710 = vmul.f32 %v602, 0.1
        %v711 = vmul.f32 %v607, 0.1
        %v712 = vmul.f32 %v610, 0.1
        %v713 = vmul.f32 %v615, 0.1
        %v714 = vmul.f32 %v618, 0.1
        %v715 = vmul.f32 %v623, 0.1
        %v716 = vmul.f32 %v626, 0.1
        %v717 = vmul.f32 %v631, 0.1
        %v718 = vmul.f32 %v634, 0.1
        %v719 = vmul.f32 %v639, 0.1
        %v720 = vmul.f32 %v642, 0.1
        %v721 = vmul.f32 %v647, 0.1
        %v722 = vmul.f32 %v650, 0.1
        %v723 = vmul.f32 %v655, 0.1
        %v724 = vmul.f32 %v658, 0.1
        %v725 = vsel %vm661, %v535, %v693
        %v726 = vsel %vm662, %v538, %v694
        %v727 = vsel %vm663, %v543, %v695
        %v728 = vsel %vm664, %v546, %v696
        %v729 = vsel %vm665, %v551, %v697
        %v730 = vsel %vm666, %v554, %v698
        %v731 = vsel %vm667, %v559, %v699
        %v732 = vsel %vm668, %v562, %v700
        %v733 = vsel %vm669, %v567, %v701
        %v734 = vsel %vm670, %v570, %v702
        %v735 = vsel %vm671, %v575, %v703
        %v736 = vsel %vm672, %v578, %v704
        %v737 = vsel %vm673, %v583, %v705
        %v738 = vsel %vm674, %v586, %v706
        %v739 = vsel %vm675, %v591, %v707
        %v740 = vsel %vm676, %v594, %v708
        %v741 = vsel %vm677, %v599, %v709
        %v742 = vsel %vm678, %v602, %v710
        %v743 = vsel %vm679, %v607, %v711
        %v744 = vsel %vm680, %v610, %v712
        %v745 = vsel %vm681, %v615, %v713
        %v746 = vsel %vm682, %v618, %v714
        %v747 = vsel %vm683, %v623, %v715
        %v748 = vsel %vm684, %v626, %v716
        %v749 = vsel %vm685, %v631, %v717
        %v750 = vsel %vm686, %v634, %v718
        %v751 = vsel %vm687, %v639, %v719
        %v752 = vsel %vm688, %v642, %v720
        %v753 = vsel %vm689, %v647, %v721
        %v754 = vsel %vm690, %v650, %v722
        %v755 = vsel %vm691, %v655, %v723
        %v756 = vsel %vm692, %v658, %v724
        %757 = vst [vmem:[%s217] sm:$0xff] %v725
        %758 = vst [vmem:[%s217 + $0x10] sm:$0xff] %v726
        %759 = vst [vmem:[%s217 + $0x20] sm:$0xff] %v727
        %760 = vst [vmem:[%s217 + $0x30] sm:$0xff] %v728
        %761 = vst [vmem:[%s217 + $0x40] sm:$0xff] %v729
        %762 = vst [vmem:[%s217 + $0x50] sm:$0xff] %v730
        %763 = vst [vmem:[%s217 + $0x60] sm:$0xff] %v731
        %764 = vst [vmem:[%s217 + $0x70] sm:$0xff] %v732
        %765 = vst [vmem:[%s217 + $0x80] sm:$0xff] %v733
        %766 = vst [vmem:[%s217 + $0x90] sm:$0xff] %v734
        %767 = vst [vmem:[%s217 + $0xa0] sm:$0xff] %v735
        %768 = vst [vmem:[%s217 + $0xb0] sm:$0xff] %v736
        %769 = vst [vmem:[%s217 + $0xc0] sm:$0xff] %v737
        %770 = vst [vmem:[%s217 + $0xd0] sm:$0xff] %v738
        %771 = vst [vmem:[%s217 + $0xe0] sm:$0xff] %v739
        %772 = vst [vmem:[%s217 + $0xf0] sm:$0xff] %v740
        %773 = vst [vmem:[%s217 + $0x100] sm:$0xff] %v741
        %774 = vst [vmem:[%s217 + $0x110] sm:$0xff] %v742
        %775 = vst [vmem:[%s217 + $0x120] sm:$0xff] %v743
        %776 = vst [vmem:[%s217 + $0x130] sm:$0xff] %v744
        %777 = vst [vmem:[%s217 + $0x140] sm:$0xff] %v745
        %778 = vst [vmem:[%s217 + $0x150] sm:$0xff] %v746
        %779 = vst [vmem:[%s217 + $0x160] sm:$0xff] %v747
        %780 = vst [vmem:[%s217 + $0x170] sm:$0xff] %v748
        %781 = vst [vmem:[%s217 + $0x180] sm:$0xff] %v749
        %782 = vst [vmem:[%s217 + $0x190] sm:$0xff] %v750
        %783 = vst [vmem:[%s217 + $0x1a0] sm:$0xff] %v751
        %784 = vst [vmem:[%s217 + $0x1b0] sm:$0xff] %v752
        %785 = vst [vmem:[%s217 + $0x1c0] sm:$0xff] %v753
        %786 = vst [vmem:[%s217 + $0x1d0] sm:$0xff] %v754
        %787 = vst [vmem:[%s217 + $0x1e0] sm:$0xff] %v755
        %788 = vst [vmem:[%s217 + $0x1f0] sm:$0xff] %v756
        %v789 = vld [vmem:[#allocation2] sm:$0xff]
        %v790 = vld [vmem:[#allocation2 + $0x8] sm:$0xff]
        %v791 = vld [vmem:[#allocation2 + $0x18] sm:$0xff]
        %v792 = vld [vmem:[#allocation2 + $0x20] sm:$0xff]
        %v793 = vld [vmem:[#allocation2 + $0x30] sm:$0xff]
        %v794 = vld [vmem:[#allocation2 + $0x38] sm:$0xff]
        %v795 = vld [vmem:[#allocation2 + $0x48] sm:$0xff]
        %v796 = vld [vmem:[#allocation2 + $0x50] sm:$0xff]
        %v797 = vld [vmem:[#allocation2 + $0x60] sm:$0xff]
        %v798 = vld [vmem:[#allocation2 + $0x68] sm:$0xff]
        %v799 = vld [vmem:[#allocation2 + $0x78] sm:$0xff]
        %v800 = vld [vmem:[#allocation2 + $0x80] sm:$0xff]
        %v801 = vld [vmem:[#allocation2 + $0x90] sm:$0xff]
        %v802 = vld [vmem:[#allocation2 + $0x98] sm:$0xff]
        %v803 = vld [vmem:[#allocation2 + $0xa8] sm:$0xff]
        %v804 = vld [vmem:[#allocation2 + $0xb0] sm:$0xff]
        %v805 = vld [vmem:[#allocation2 + $0xc0] sm:$0xff]
        %v806 = vld [vmem:[#allocation2 + $0xc8] sm:$0xff]
        %v807 = vld [vmem:[#allocation2 + $0xd8] sm:$0xff]
        %v808 = vld [vmem:[#allocation2 + $0xe0] sm:$0xff]
        %v809 = vld [vmem:[#allocation2 + $0xf0] sm:$0xff]
        %v810 = vld [vmem:[#allocation2 + $0xf8] sm:$0xff]
        %v811 = vld [vmem:[#allocation2 + $0x108] sm:$0xff]
        %v812 = vld [vmem:[#allocation2 + $0x110] sm:$0xff]
        %v813 = vld [vmem:[#allocation2 + $0x120] sm:$0xff]
        %v814 = vld [vmem:[#allocation2 + $0x128] sm:$0xff]
        %v815 = vld [vmem:[#allocation2 + $0x138] sm:$0xff]
        %v816 = vld [vmem:[#allocation2 + $0x140] sm:$0xff]
        %v817 = vld [vmem:[#allocation2 + $0x150] sm:$0xff]
        %v818 = vld [vmem:[#allocation2 + $0x158] sm:$0xff]
        %v819 = vld [vmem:[#allocation2 + $0x168] sm:$0xff]
        %v820 = vld [vmem:[#allocation2 + $0x170] sm:$0xff]
        %v821 = vpack.c.bf16 %v790, %v789
        %v822 = vpack.c.bf16 %v792, %v791
        %v823 = vpack.c.bf16 %v794, %v793
        %v824 = vpack.c.bf16 %v796, %v795
        %v825 = vpack.c.bf16 %v798, %v797
        %v826 = vpack.c.bf16 %v800, %v799
        %v827 = vpack.c.bf16 %v802, %v801
        %v828 = vpack.c.bf16 %v804, %v803
        %v829 = vpack.c.bf16 %v806, %v805
        %v830 = vpack.c.bf16 %v808, %v807
        %v831 = vpack.c.bf16 %v810, %v809
        %v832 = vpack.c.bf16 %v812, %v811
        %v833 = vpack.c.bf16 %v814, %v813
        %v834 = vpack.c.bf16 %v816, %v815
        %v835 = vpack.c.bf16 %v818, %v817
        %v836 = vpack.c.bf16 %v820, %v819
        %v837 = vld [vmem:[%s2] sm:$0xf]
        %v838 = vld [vmem:[%s2 + $0x4] sm:$0xf]
        %v839 = vld [vmem:[#allocation2 + $0x1] sm:$0xff]
        %v840 = vld [vmem:[#allocation2 + $0x9] sm:$0xff]
        %v841 = vld [vmem:[#allocation2 + $0x19] sm:$0xff]
        %v842 = vld [vmem:[#allocation2 + $0x21] sm:$0xff]
        %v843 = vld [vmem:[#allocation2 + $0x31] sm:$0xff]
        %v844 = vld [vmem:[#allocation2 + $0x39] sm:$0xff]
        %v845 = vld [vmem:[#allocation2 + $0x49] sm:$0xff]
        %v846 = vld [vmem:[#allocation2 + $0x51] sm:$0xff]
        %v847 = vld [vmem:[#allocation2 + $0x61] sm:$0xff]
        %v848 = vld [vmem:[#allocation2 + $0x69] sm:$0xff]
        %v849 = vld [vmem:[#allocation2 + $0x79] sm:$0xff]
        %v850 = vld [vmem:[#allocation2 + $0x81] sm:$0xff]
        %v851 = vld [vmem:[#allocation2 + $0x91] sm:$0xff]
        %v852 = vld [vmem:[#allocation2 + $0x99] sm:$0xff]
        %v853 = vld [vmem:[#allocation2 + $0xa9] sm:$0xff]
        %v854 = vld [vmem:[#allocation2 + $0xb1] sm:$0xff]
        %v855 = vld [vmem:[#allocation2 + $0xc1] sm:$0xff]
        %v856 = vld [vmem:[#allocation2 + $0xc9] sm:$0xff]
        %v857 = vld [vmem:[#allocation2 + $0xd9] sm:$0xff]
        %v858 = vld [vmem:[#allocation2 + $0xe1] sm:$0xff]
        %v859 = vld [vmem:[#allocation2 + $0xf1] sm:$0xff]
        %v860 = vld [vmem:[#allocation2 + $0xf9] sm:$0xff]
        %v861 = vld [vmem:[#allocation2 + $0x109] sm:$0xff]
        %v862 = vld [vmem:[#allocation2 + $0x111] sm:$0xff]
        %v863 = vld [vmem:[#allocation2 + $0x121] sm:$0xff]
        %v864 = vld [vmem:[#allocation2 + $0x129] sm:$0xff]
        %v865 = vld [vmem:[#allocation2 + $0x139] sm:$0xff]
        %v866 = vld [vmem:[#allocation2 + $0x141] sm:$0xff]
        %v867 = vld [vmem:[#allocation2 + $0x151] sm:$0xff]
        %v868 = vld [vmem:[#allocation2 + $0x159] sm:$0xff]
        %v869 = vld [vmem:[#allocation2 + $0x169] sm:$0xff]
        %v870 = vld [vmem:[#allocation2 + $0x171] sm:$0xff]
        %v871 = vpack.c.bf16 %v840, %v839
        %v872 = vpack.c.bf16 %v842, %v841
        %v873 = vpack.c.bf16 %v844, %v843
        %v874 = vpack.c.bf16 %v846, %v845
        %v875 = vpack.c.bf16 %v848, %v847
        %v876 = vpack.c.bf16 %v850, %v849
        %v877 = vpack.c.bf16 %v852, %v851
        %v878 = vpack.c.bf16 %v854, %v853
        %v879 = vpack.c.bf16 %v856, %v855
        %v880 = vpack.c.bf16 %v858, %v857
        %v881 = vpack.c.bf16 %v860, %v859
        %v882 = vpack.c.bf16 %v862, %v861
        %v883 = vpack.c.bf16 %v864, %v863
        %v884 = vpack.c.bf16 %v866, %v865
        %v885 = vpack.c.bf16 %v868, %v867
        %v886 = vpack.c.bf16 %v870, %v869
        %s887 = scalar_lea.vmem %s2, 8
        %v888 = vld [vmem:[%s887] sm:$0xf]
        %v889 = vld [vmem:[%s887 + $0x4] sm:$0xf]
        %v892 = vunpack.c.l.b16 %v888
        %v893 = vunpack.c.l.b16 %v889
        %v894 = vpack.c.b16 %v893, %v892
        %v897 = vsel %vm332, %v871, 0
        %v900 = vsel %vm332, %v872, 0
        %v903 = vsel %vm332, %v873, 0
        %v906 = vsel %vm332, %v874, 0
        %v909 = vsel %vm332, %v875, 0
        %v912 = vsel %vm332, %v876, 0
        %v915 = vsel %vm332, %v877, 0
        %v918 = vsel %vm332, %v878, 0
        %v921 = vsel %vm332, %v879, 0
        %v924 = vsel %vm332, %v880, 0
        %v927 = vsel %vm332, %v881, 0
        %v930 = vsel %vm332, %v882, 0
        %v933 = vsel %vm332, %v883, 0
        %v936 = vsel %vm332, %v884, 0
        %v939 = vsel %vm332, %v885, 0
        %v942 = vsel %vm332, %v886, 0
        %944 = vmatprep.subr.bf16.mxu0 0
        %945 = vmatpush1.bf16.msra.mxu0 0
        %946 = vmatprep.subr.bf16.mxu0 0
        %947 = vmatpush1.bf16.msra.mxu0 0
        %948 = vmatprep.subr.bf16.mxu0 0
        %949 = vmatpush1.bf16.msra.mxu0 0
        %950 = vmatprep.subr.bf16.mxu0 0
        %951 = vmatpush1.bf16.msra.mxu0 0
        %952 = vmatprep.subr.bf16.mxu0 0
        %953 = vmatpush1.bf16.msra.mxu0 0
        %954 = vmatprep.subr.bf16.mxu0 0
        %955 = vmatpush1.bf16.msra.mxu0 0
        %956 = vmatprep.subr.bf16.mxu0 0
        %957 = vmatpush1.bf16.msra.mxu0 0
        %958 = vmatprep.subr.bf16.mxu0 0
        %959 = vmatpush1.bf16.msra.mxu0 %v894
        %960 = vmatprep.subr.bf16.mxu0 0
        %961 = vmatpush2.bf16.msra.mxu0 0
        %962 = vmatprep.subr.bf16.mxu0 0
        %963 = vmatpush2.bf16.msra.mxu0 0
        %964 = vmatprep.subr.bf16.mxu0 0
        %965 = vmatpush2.bf16.msra.mxu0 0
        %966 = vmatprep.subr.bf16.mxu0 0
        %967 = vmatpush2.bf16.msra.mxu0 0
        %968 = vmatprep.subr.bf16.mxu0 0
        %969 = vmatpush2.bf16.msra.mxu0 0
        %970 = vmatprep.subr.bf16.mxu0 0
        %971 = vmatpush2.bf16.msra.mxu0 0
        %972 = vmatprep.subr.bf16.mxu0 0
        %973 = vmatpush2.bf16.msra.mxu0 0
        %974 = vmatprep.subr.bf16.mxu0 0
        %975 = vmatpush2.bf16.msra.mxu0 0
        %976 = vmatprep.mubr.bf16.mxu0 0
        %977 = vmatmul.mubr.bf16.gmra.mxu0 %v897
        %v978 = vpop.f32.mrf.mxu0
        %v979 = vadd.f32 0.0, %v978
        %v980 = vpop.f32.mrf.mxu0
        %v981 = vpop.f32.mrf.mxu0
        %v982 = vadd.f32 0.0, %v981
        %v983 = vpop.f32.mrf.mxu0
        %984 = vmatprep.mubr.bf16.mxu0 0
        %985 = vmatmul.mubr.bf16.gmra.mxu0 %v900
        %v986 = vpop.f32.mrf.mxu0
        %v987 = vadd.f32 0.0, %v986
        %v988 = vpop.f32.mrf.mxu0
        %v989 = vpop.f32.mrf.mxu0
        %v990 = vadd.f32 0.0, %v989
        %v991 = vpop.f32.mrf.mxu0
        %992 = vmatprep.mubr.bf16.mxu0 0
        %993 = vmatmul.mubr.bf16.gmra.mxu0 %v903
        %v994 = vpop.f32.mrf.mxu0
        %v995 = vadd.f32 0.0, %v994
        %v996 = vpop.f32.mrf.mxu0
        %v997 = vpop.f32.mrf.mxu0
        %v998 = vadd.f32 0.0, %v997
        %v999 = vpop.f32.mrf.mxu0
        %1000 = vmatprep.mubr.bf16.mxu0 0
        %1001 = vmatmul.mubr.bf16.gmra.mxu0 %v906
        %v1002 = vpop.f32.mrf.mxu0
        %v1003 = vadd.f32 0.0, %v1002
        %v1004 = vpop.f32.mrf.mxu0
        %v1005 = vpop.f32.mrf.mxu0
        %v1006 = vadd.f32 0.0, %v1005
        %v1007 = vpop.f32.mrf.mxu0
        %1008 = vmatprep.mubr.bf16.mxu0 0
        %1009 = vmatmul.mubr.bf16.gmra.mxu0 %v909
        %v1010 = vpop.f32.mrf.mxu0
        %v1011 = vadd.f32 0.0, %v1010
        %v1012 = vpop.f32.mrf.mxu0
        %v1013 = vpop.f32.mrf.mxu0
        %v1014 = vadd.f32 0.0, %v1013
        %v1015 = vpop.f32.mrf.mxu0
        %1016 = vmatprep.mubr.bf16.mxu0 0
        %1017 = vmatmul.mubr.bf16.gmra.mxu0 %v912
        %v1018 = vpop.f32.mrf.mxu0
        %v1019 = vadd.f32 0.0, %v1018
        %v1020 = vpop.f32.mrf.mxu0
        %v1021 = vpop.f32.mrf.mxu0
        %v1022 = vadd.f32 0.0, %v1021
        %v1023 = vpop.f32.mrf.mxu0
        %1024 = vmatprep.mubr.bf16.mxu0 0
        %1025 = vmatmul.mubr.bf16.gmra.mxu0 %v915
        %v1026 = vpop.f32.mrf.mxu0
        %v1027 = vadd.f32 0.0, %v1026
        %v1028 = vpop.f32.mrf.mxu0
        %v1029 = vpop.f32.mrf.mxu0
        %v1030 = vadd.f32 0.0, %v1029
        %v1031 = vpop.f32.mrf.mxu0
        %1032 = vmatprep.mubr.bf16.mxu0 0
        %1033 = vmatmul.mubr.bf16.gmra.mxu0 %v918
        %v1034 = vpop.f32.mrf.mxu0
        %v1035 = vadd.f32 0.0, %v1034
        %v1036 = vpop.f32.mrf.mxu0
        %v1037 = vpop.f32.mrf.mxu0
        %v1038 = vadd.f32 0.0, %v1037
        %v1039 = vpop.f32.mrf.mxu0
        %1040 = vmatprep.mubr.bf16.mxu0 0
        %1041 = vmatmul.mubr.bf16.gmra.mxu0 %v921
        %v1042 = vpop.f32.mrf.mxu0
        %v1043 = vadd.f32 0.0, %v1042
        %v1044 = vpop.f32.mrf.mxu0
        %v1045 = vpop.f32.mrf.mxu0
        %v1046 = vadd.f32 0.0, %v1045
        %v1047 = vpop.f32.mrf.mxu0
        %1048 = vmatprep.mubr.bf16.mxu0 0
        %1049 = vmatmul.mubr.bf16.gmra.mxu0 %v924
        %v1050 = vpop.f32.mrf.mxu0
        %v1051 = vadd.f32 0.0, %v1050
        %v1052 = vpop.f32.mrf.mxu0
        %v1053 = vpop.f32.mrf.mxu0
        %v1054 = vadd.f32 0.0, %v1053
        %v1055 = vpop.f32.mrf.mxu0
        %1056 = vmatprep.mubr.bf16.mxu0 0
        %1057 = vmatmul.mubr.bf16.gmra.mxu0 %v927
        %v1058 = vpop.f32.mrf.mxu0
        %v1059 = vadd.f32 0.0, %v1058
        %v1060 = vpop.f32.mrf.mxu0
        %v1061 = vpop.f32.mrf.mxu0
        %v1062 = vadd.f32 0.0, %v1061
        %v1063 = vpop.f32.mrf.mxu0
        %1064 = vmatprep.mubr.bf16.mxu0 0
        %1065 = vmatmul.mubr.bf16.gmra.mxu0 %v930
        %v1066 = vpop.f32.mrf.mxu0
        %v1067 = vadd.f32 0.0, %v1066
        %v1068 = vpop.f32.mrf.mxu0
        %v1069 = vpop.f32.mrf.mxu0
        %v1070 = vadd.f32 0.0, %v1069
        %v1071 = vpop.f32.mrf.mxu0
        %1072 = vmatprep.mubr.bf16.mxu0 0
        %1073 = vmatmul.mubr.bf16.gmra.mxu0 %v933
        %v1074 = vpop.f32.mrf.mxu0
        %v1075 = vadd.f32 0.0, %v1074
        %v1076 = vpop.f32.mrf.mxu0
        %v1077 = vpop.f32.mrf.mxu0
        %v1078 = vadd.f32 0.0, %v1077
        %v1079 = vpop.f32.mrf.mxu0
        %1080 = vmatprep.mubr.bf16.mxu0 0
        %1081 = vmatmul.mubr.bf16.gmra.mxu0 %v936
        %v1082 = vpop.f32.mrf.mxu0
        %v1083 = vadd.f32 0.0, %v1082
        %v1084 = vpop.f32.mrf.mxu0
        %v1085 = vpop.f32.mrf.mxu0
        %v1086 = vadd.f32 0.0, %v1085
        %v1087 = vpop.f32.mrf.mxu0
        %1088 = vmatprep.mubr.bf16.mxu0 0
        %1089 = vmatmul.mubr.bf16.gmra.mxu0 %v939
        %v1090 = vpop.f32.mrf.mxu0
        %v1091 = vadd.f32 0.0, %v1090
        %v1092 = vpop.f32.mrf.mxu0
        %v1093 = vpop.f32.mrf.mxu0
        %v1094 = vadd.f32 0.0, %v1093
        %v1095 = vpop.f32.mrf.mxu0
        %1096 = vmatprep.mubr.bf16.mxu0 0
        %1097 = vmatmul.mubr.bf16.gmra.mxu0 %v942
        %v1098 = vpop.f32.mrf.mxu0
        %v1099 = vadd.f32 0.0, %v1098
        %v1100 = vpop.f32.mrf.mxu0
        %v1101 = vpop.f32.mrf.mxu0
        %v1102 = vadd.f32 0.0, %v1101
        %v1103 = vpop.f32.mrf.mxu0
        %1104 = vdwg.mxu0
        %v1107 = vunpack.c.l.b16 %v837
        %v1108 = vunpack.c.l.b16 %v838
        %v1109 = vpack.c.b16 %v1108, %v1107
        %v1112 = vsel %vm332, %v821, 0
        %v1115 = vsel %vm332, %v822, 0
        %v1118 = vsel %vm332, %v823, 0
        %v1121 = vsel %vm332, %v824, 0
        %v1124 = vsel %vm332, %v825, 0
        %v1127 = vsel %vm332, %v826, 0
        %v1130 = vsel %vm332, %v827, 0
        %v1133 = vsel %vm332, %v828, 0
        %v1136 = vsel %vm332, %v829, 0
        %v1139 = vsel %vm332, %v830, 0
        %v1142 = vsel %vm332, %v831, 0
        %v1145 = vsel %vm332, %v832, 0
        %v1148 = vsel %vm332, %v833, 0
        %v1151 = vsel %vm332, %v834, 0
        %v1154 = vsel %vm332, %v835, 0
        %v1157 = vsel %vm332, %v836, 0
        %1159 = vmatprep.subr.bf16.mxu0 0
        %1160 = vmatpush1.bf16.msra.mxu0 0
        %1161 = vmatprep.subr.bf16.mxu0 0
        %1162 = vmatpush1.bf16.msra.mxu0 0
        %1163 = vmatprep.subr.bf16.mxu0 0
        %1164 = vmatpush1.bf16.msra.mxu0 0
        %1165 = vmatprep.subr.bf16.mxu0 0
        %1166 = vmatpush1.bf16.msra.mxu0 0
        %1167 = vmatprep.subr.bf16.mxu0 0
        %1168 = vmatpush1.bf16.msra.mxu0 0
        %1169 = vmatprep.subr.bf16.mxu0 0
        %1170 = vmatpush1.bf16.msra.mxu0 0
        %1171 = vmatprep.subr.bf16.mxu0 0
        %1172 = vmatpush1.bf16.msra.mxu0 0
        %1173 = vmatprep.subr.bf16.mxu0 0
        %1174 = vmatpush1.bf16.msra.mxu0 %v1109
        %1175 = vmatprep.subr.bf16.mxu0 0
        %1176 = vmatpush2.bf16.msra.mxu0 0
        %1177 = vmatprep.subr.bf16.mxu0 0
        %1178 = vmatpush2.bf16.msra.mxu0 0
        %1179 = vmatprep.subr.bf16.mxu0 0
        %1180 = vmatpush2.bf16.msra.mxu0 0
        %1181 = vmatprep.subr.bf16.mxu0 0
        %1182 = vmatpush2.bf16.msra.mxu0 0
        %1183 = vmatprep.subr.bf16.mxu0 0
        %1184 = vmatpush2.bf16.msra.mxu0 0
        %1185 = vmatprep.subr.bf16.mxu0 0
        %1186 = vmatpush2.bf16.msra.mxu0 0
        %1187 = vmatprep.subr.bf16.mxu0 0
        %1188 = vmatpush2.bf16.msra.mxu0 0
        %1189 = vmatprep.subr.bf16.mxu0 0
        %1190 = vmatpush2.bf16.msra.mxu0 0
        %1191 = vmatprep.mubr.bf16.mxu0 0
        %1192 = vmatmul.mubr.bf16.gmra.mxu0 %v1112
        %v1193 = vpop.f32.mrf.mxu0
        %v1194 = vadd.f32 %v979, %v1193
        %v1195 = vpop.f32.mrf.mxu0
        %v1196 = vpop.f32.mrf.mxu0
        %v1197 = vadd.f32 %v982, %v1196
        %v1198 = vpop.f32.mrf.mxu0
        %1199 = vmatprep.mubr.bf16.mxu0 0
        %1200 = vmatmul.mubr.bf16.gmra.mxu0 %v1115
        %v1201 = vpop.f32.mrf.mxu0
        %v1202 = vadd.f32 %v987, %v1201
        %v1203 = vpop.f32.mrf.mxu0
        %v1204 = vpop.f32.mrf.mxu0
        %v1205 = vadd.f32 %v990, %v1204
        %v1206 = vpop.f32.mrf.mxu0
        %1207 = vmatprep.mubr.bf16.mxu0 0
        %1208 = vmatmul.mubr.bf16.gmra.mxu0 %v1118
        %v1209 = vpop.f32.mrf.mxu0
        %v1210 = vadd.f32 %v995, %v1209
        %v1211 = vpop.f32.mrf.mxu0
        %v1212 = vpop.f32.mrf.mxu0
        %v1213 = vadd.f32 %v998, %v1212
        %v1214 = vpop.f32.mrf.mxu0
        %1215 = vmatprep.mubr.bf16.mxu0 0
        %1216 = vmatmul.mubr.bf16.gmra.mxu0 %v1121
        %v1217 = vpop.f32.mrf.mxu0
        %v1218 = vadd.f32 %v1003, %v1217
        %v1219 = vpop.f32.mrf.mxu0
        %v1220 = vpop.f32.mrf.mxu0
        %v1221 = vadd.f32 %v1006, %v1220
        %v1222 = vpop.f32.mrf.mxu0
        %1223 = vmatprep.mubr.bf16.mxu0 0
        %1224 = vmatmul.mubr.bf16.gmra.mxu0 %v1124
        %v1225 = vpop.f32.mrf.mxu0
        %v1226 = vadd.f32 %v1011, %v1225
        %v1227 = vpop.f32.mrf.mxu0
        %v1228 = vpop.f32.mrf.mxu0
        %v1229 = vadd.f32 %v1014, %v1228
        %v1230 = vpop.f32.mrf.mxu0
        %1231 = vmatprep.mubr.bf16.mxu0 0
        %1232 = vmatmul.mubr.bf16.gmra.mxu0 %v1127
        %v1233 = vpop.f32.mrf.mxu0
        %v1234 = vadd.f32 %v1019, %v1233
        %v1235 = vpop.f32.mrf.mxu0
        %v1236 = vpop.f32.mrf.mxu0
        %v1237 = vadd.f32 %v1022, %v1236
        %v1238 = vpop.f32.mrf.mxu0
        %1239 = vmatprep.mubr.bf16.mxu0 0
        %1240 = vmatmul.mubr.bf16.gmra.mxu0 %v1130
        %v1241 = vpop.f32.mrf.mxu0
        %v1242 = vadd.f32 %v1027, %v1241
        %v1243 = vpop.f32.mrf.mxu0
        %v1244 = vpop.f32.mrf.mxu0
        %v1245 = vadd.f32 %v1030, %v1244
        %v1246 = vpop.f32.mrf.mxu0
        %1247 = vmatprep.mubr.bf16.mxu0 0
        %1248 = vmatmul.mubr.bf16.gmra.mxu0 %v1133
        %v1249 = vpop.f32.mrf.mxu0
        %v1250 = vadd.f32 %v1035, %v1249
        %v1251 = vpop.f32.mrf.mxu0
        %v1252 = vpop.f32.mrf.mxu0
        %v1253 = vadd.f32 %v1038, %v1252
        %v1254 = vpop.f32.mrf.mxu0
        %1255 = vmatprep.mubr.bf16.mxu0 0
        %1256 = vmatmul.mubr.bf16.gmra.mxu0 %v1136
        %v1257 = vpop.f32.mrf.mxu0
        %v1258 = vadd.f32 %v1043, %v1257
        %v1259 = vpop.f32.mrf.mxu0
        %v1260 = vpop.f32.mrf.mxu0
        %v1261 = vadd.f32 %v1046, %v1260
        %v1262 = vpop.f32.mrf.mxu0
        %1263 = vmatprep.mubr.bf16.mxu0 0
        %1264 = vmatmul.mubr.bf16.gmra.mxu0 %v1139
        %v1265 = vpop.f32.mrf.mxu0
        %v1266 = vadd.f32 %v1051, %v1265
        %v1267 = vpop.f32.mrf.mxu0
        %v1268 = vpop.f32.mrf.mxu0
        %v1269 = vadd.f32 %v1054, %v1268
        %v1270 = vpop.f32.mrf.mxu0
        %1271 = vmatprep.mubr.bf16.mxu0 0
        %1272 = vmatmul.mubr.bf16.gmra.mxu0 %v1142
        %v1273 = vpop.f32.mrf.mxu0
        %v1274 = vadd.f32 %v1059, %v1273
        %v1275 = vpop.f32.mrf.mxu0
        %v1276 = vpop.f32.mrf.mxu0
        %v1277 = vadd.f32 %v1062, %v1276
        %v1278 = vpop.f32.mrf.mxu0
        %1279 = vmatprep.mubr.bf16.mxu0 0
        %1280 = vmatmul.mubr.bf16.gmra.mxu0 %v1145
        %v1281 = vpop.f32.mrf.mxu0
        %v1282 = vadd.f32 %v1067, %v1281
        %v1283 = vpop.f32.mrf.mxu0
        %v1284 = vpop.f32.mrf.mxu0
        %v1285 = vadd.f32 %v1070, %v1284
        %v1286 = vpop.f32.mrf.mxu0
        %1287 = vmatprep.mubr.bf16.mxu0 0
        %1288 = vmatmul.mubr.bf16.gmra.mxu0 %v1148
        %v1289 = vpop.f32.mrf.mxu0
        %v1290 = vadd.f32 %v1075, %v1289
        %v1291 = vpop.f32.mrf.mxu0
        %v1292 = vpop.f32.mrf.mxu0
        %v1293 = vadd.f32 %v1078, %v1292
        %v1294 = vpop.f32.mrf.mxu0
        %1295 = vmatprep.mubr.bf16.mxu0 0
        %1296 = vmatmul.mubr.bf16.gmra.mxu0 %v1151
        %v1297 = vpop.f32.mrf.mxu0
        %v1298 = vadd.f32 %v1083, %v1297
        %v1299 = vpop.f32.mrf.mxu0
        %v1300 = vpop.f32.mrf.mxu0
        %v1301 = vadd.f32 %v1086, %v1300
        %v1302 = vpop.f32.mrf.mxu0
        %1303 = vmatprep.mubr.bf16.mxu0 0
        %1304 = vmatmul.mubr.bf16.gmra.mxu0 %v1154
        %v1305 = vpop.f32.mrf.mxu0
        %v1306 = vadd.f32 %v1091, %v1305
        %v1307 = vpop.f32.mrf.mxu0
        %v1308 = vpop.f32.mrf.mxu0
        %v1309 = vadd.f32 %v1094, %v1308
        %v1310 = vpop.f32.mrf.mxu0
        %1311 = vmatprep.mubr.bf16.mxu0 0
        %1312 = vmatmul.mubr.bf16.gmra.mxu0 %v1157
        %v1313 = vpop.f32.mrf.mxu0
        %v1314 = vadd.f32 %v1099, %v1313
        %v1315 = vpop.f32.mrf.mxu0
        %v1316 = vpop.f32.mrf.mxu0
        %v1317 = vadd.f32 %v1102, %v1316
        %v1318 = vpop.f32.mrf.mxu0
        %1319 = vdwg.mxu0
        %v1320 = vld [vmem:[#allocation2 + $0x2] sm:$0xff]
        %v1321 = vld [vmem:[#allocation2 + $0xa] sm:$0xff]
        %v1322 = vld [vmem:[#allocation2 + $0x1a] sm:$0xff]
        %v1323 = vld [vmem:[#allocation2 + $0x22] sm:$0xff]
        %v1324 = vld [vmem:[#allocation2 + $0x32] sm:$0xff]
        %v1325 = vld [vmem:[#allocation2 + $0x3a] sm:$0xff]
        %v1326 = vld [vmem:[#allocation2 + $0x4a] sm:$0xff]
        %v1327 = vld [vmem:[#allocation2 + $0x52] sm:$0xff]
        %v1328 = vld [vmem:[#allocation2 + $0x62] sm:$0xff]
        %v1329 = vld [vmem:[#allocation2 + $0x6a] sm:$0xff]
        %v1330 = vld [vmem:[#allocation2 + $0x7a] sm:$0xff]
        %v1331 = vld [vmem:[#allocation2 + $0x82] sm:$0xff]
        %v1332 = vld [vmem:[#allocation2 + $0x92] sm:$0xff]
        %v1333 = vld [vmem:[#allocation2 + $0x9a] sm:$0xff]
        %v1334 = vld [vmem:[#allocation2 + $0xaa] sm:$0xff]
        %v1335 = vld [vmem:[#allocation2 + $0xb2] sm:$0xff]
        %v1336 = vld [vmem:[#allocation2 + $0xc2] sm:$0xff]
        %v1337 = vld [vmem:[#allocation2 + $0xca] sm:$0xff]
        %v1338 = vld [vmem:[#allocation2 + $0xda] sm:$0xff]
        %v1339 = vld [vmem:[#allocation2 + $0xe2] sm:$0xff]
        %v1340 = vld [vmem:[#allocation2 + $0xf2] sm:$0xff]
        %v1341 = vld [vmem:[#allocation2 + $0xfa] sm:$0xff]
        %v1342 = vld [vmem:[#allocation2 + $0x10a] sm:$0xff]
        %v1343 = vld [vmem:[#allocation2 + $0x112] sm:$0xff]
        %v1344 = vld [vmem:[#allocation2 + $0x122] sm:$0xff]
        %v1345 = vld [vmem:[#allocation2 + $0x12a] sm:$0xff]
        %v1346 = vld [vmem:[#allocation2 + $0x13a] sm:$0xff]
        %v1347 = vld [vmem:[#allocation2 + $0x142] sm:$0xff]
        %v1348 = vld [vmem:[#allocation2 + $0x152] sm:$0xff]
        %v1349 = vld [vmem:[#allocation2 + $0x15a] sm:$0xff]
        %v1350 = vld [vmem:[#allocation2 + $0x16a] sm:$0xff]
        %v1351 = vld [vmem:[#allocation2 + $0x172] sm:$0xff]
        %v1352 = vpack.c.bf16 %v1321, %v1320
        %v1353 = vpack.c.bf16 %v1323, %v1322
        %v1354 = vpack.c.bf16 %v1325, %v1324
        %v1355 = vpack.c.bf16 %v1327, %v1326
        %v1356 = vpack.c.bf16 %v1329, %v1328
        %v1357 = vpack.c.bf16 %v1331, %v1330
        %v1358 = vpack.c.bf16 %v1333, %v1332
        %v1359 = vpack.c.bf16 %v1335, %v1334
        %v1360 = vpack.c.bf16 %v1337, %v1336
        %v1361 = vpack.c.bf16 %v1339, %v1338
        %v1362 = vpack.c.bf16 %v1341, %v1340
        %v1363 = vpack.c.bf16 %v1343, %v1342
        %v1364 = vpack.c.bf16 %v1345, %v1344
        %v1365 = vpack.c.bf16 %v1347, %v1346
        %v1366 = vpack.c.bf16 %v1349, %v1348
        %v1367 = vpack.c.bf16 %v1351, %v1350
        %s1368 = scalar_lea.vmem %s2, 16
        %v1369 = vld [vmem:[%s1368] sm:$0xf]
        %v1370 = vld [vmem:[%s1368 + $0x4] sm:$0xf]
        %v1373 = vunpack.c.l.b16 %v1369
        %v1374 = vunpack.c.l.b16 %v1370
        %v1375 = vpack.c.b16 %v1374, %v1373
        %v1378 = vsel %vm332, %v1352, 0
        %v1381 = vsel %vm332, %v1353, 0
        %v1384 = vsel %vm332, %v1354, 0
        %v1387 = vsel %vm332, %v1355, 0
        %v1390 = vsel %vm332, %v1356, 0
        %v1393 = vsel %vm332, %v1357, 0
        %v1396 = vsel %vm332, %v1358, 0
        %v1399 = vsel %vm332, %v1359, 0
        %v1402 = vsel %vm332, %v1360, 0
        %v1405 = vsel %vm332, %v1361, 0
        %v1408 = vsel %vm332, %v1362, 0
        %v1411 = vsel %vm332, %v1363, 0
        %v1414 = vsel %vm332, %v1364, 0
        %v1417 = vsel %vm332, %v1365, 0
        %v1420 = vsel %vm332, %v1366, 0
        %v1423 = vsel %vm332, %v1367, 0
        %1425 = vmatprep.subr.bf16.mxu0 0
        %1426 = vmatpush1.bf16.msra.mxu0 0
        %1427 = vmatprep.subr.bf16.mxu0 0
        %1428 = vmatpush1.bf16.msra.mxu0 0
        %1429 = vmatprep.subr.bf16.mxu0 0
        %1430 = vmatpush1.bf16.msra.mxu0 0
        %1431 = vmatprep.subr.bf16.mxu0 0
        %1432 = vmatpush1.bf16.msra.mxu0 0
        %1433 = vmatprep.subr.bf16.mxu0 0
        %1434 = vmatpush1.bf16.msra.mxu0 0
        %1435 = vmatprep.subr.bf16.mxu0 0
        %1436 = vmatpush1.bf16.msra.mxu0 0
        %1437 = vmatprep.subr.bf16.mxu0 0
        %1438 = vmatpush1.bf16.msra.mxu0 0
        %1439 = vmatprep.subr.bf16.mxu0 0
        %1440 = vmatpush1.bf16.msra.mxu0 %v1375
        %1441 = vmatprep.subr.bf16.mxu0 0
        %1442 = vmatpush2.bf16.msra.mxu0 0
        %1443 = vmatprep.subr.bf16.mxu0 0
        %1444 = vmatpush2.bf16.msra.mxu0 0
        %1445 = vmatprep.subr.bf16.mxu0 0
        %1446 = vmatpush2.bf16.msra.mxu0 0
        %1447 = vmatprep.subr.bf16.mxu0 0
        %1448 = vmatpush2.bf16.msra.mxu0 0
        %1449 = vmatprep.subr.bf16.mxu0 0
        %1450 = vmatpush2.bf16.msra.mxu0 0
        %1451 = vmatprep.subr.bf16.mxu0 0
        %1452 = vmatpush2.bf16.msra.mxu0 0
        %1453 = vmatprep.subr.bf16.mxu0 0
        %1454 = vmatpush2.bf16.msra.mxu0 0
        %1455 = vmatprep.subr.bf16.mxu0 0
        %1456 = vmatpush2.bf16.msra.mxu0 0
        %1457 = vmatprep.mubr.bf16.mxu0 0
        %1458 = vmatmul.mubr.bf16.gmra.mxu0 %v1378
        %v1459 = vpop.f32.mrf.mxu0
        %v1460 = vadd.f32 0.0, %v1459
        %v1461 = vpop.f32.mrf.mxu0
        %v1462 = vpop.f32.mrf.mxu0
        %v1463 = vadd.f32 0.0, %v1462
        %v1464 = vpop.f32.mrf.mxu0
        %1465 = vmatprep.mubr.bf16.mxu0 0
        %1466 = vmatmul.mubr.bf16.gmra.mxu0 %v1381
        %v1467 = vpop.f32.mrf.mxu0
        %v1468 = vadd.f32 0.0, %v1467
        %v1469 = vpop.f32.mrf.mxu0
        %v1470 = vpop.f32.mrf.mxu0
        %v1471 = vadd.f32 0.0, %v1470
        %v1472 = vpop.f32.mrf.mxu0
        %1473 = vmatprep.mubr.bf16.mxu0 0
        %1474 = vmatmul.mubr.bf16.gmra.mxu0 %v1384
        %v1475 = vpop.f32.mrf.mxu0
        %v1476 = vadd.f32 0.0, %v1475
        %v1477 = vpop.f32.mrf.mxu0
        %v1478 = vpop.f32.mrf.mxu0
        %v1479 = vadd.f32 0.0, %v1478
        %v1480 = vpop.f32.mrf.mxu0
        %1481 = vmatprep.mubr.bf16.mxu0 0
        %1482 = vmatmul.mubr.bf16.gmra.mxu0 %v1387
        %v1483 = vpop.f32.mrf.mxu0
        %v1484 = vadd.f32 0.0, %v1483
        %v1485 = vpop.f32.mrf.mxu0
        %v1486 = vpop.f32.mrf.mxu0
        %v1487 = vadd.f32 0.0, %v1486
        %v1488 = vpop.f32.mrf.mxu0
        %1489 = vmatprep.mubr.bf16.mxu0 0
        %1490 = vmatmul.mubr.bf16.gmra.mxu0 %v1390
        %v1491 = vpop.f32.mrf.mxu0
        %v1492 = vadd.f32 0.0, %v1491
        %v1493 = vpop.f32.mrf.mxu0
        %v1494 = vpop.f32.mrf.mxu0
        %v1495 = vadd.f32 0.0, %v1494
        %v1496 = vpop.f32.mrf.mxu0
        %1497 = vmatprep.mubr.bf16.mxu0 0
        %1498 = vmatmul.mubr.bf16.gmra.mxu0 %v1393
        %v1499 = vpop.f32.mrf.mxu0
        %v1500 = vadd.f32 0.0, %v1499
        %v1501 = vpop.f32.mrf.mxu0
        %v1502 = vpop.f32.mrf.mxu0
        %v1503 = vadd.f32 0.0, %v1502
        %v1504 = vpop.f32.mrf.mxu0
        %1505 = vmatprep.mubr.bf16.mxu0 0
        %1506 = vmatmul.mubr.bf16.gmra.mxu0 %v1396
        %v1507 = vpop.f32.mrf.mxu0
        %v1508 = vadd.f32 0.0, %v1507
        %v1509 = vpop.f32.mrf.mxu0
        %v1510 = vpop.f32.mrf.mxu0
        %v1511 = vadd.f32 0.0, %v1510
        %v1512 = vpop.f32.mrf.mxu0
        %1513 = vmatprep.mubr.bf16.mxu0 0
        %1514 = vmatmul.mubr.bf16.gmra.mxu0 %v1399
        %v1515 = vpop.f32.mrf.mxu0
        %v1516 = vadd.f32 0.0, %v1515
        %v1517 = vpop.f32.mrf.mxu0
        %v1518 = vpop.f32.mrf.mxu0
        %v1519 = vadd.f32 0.0, %v1518
        %v1520 = vpop.f32.mrf.mxu0
        %1521 = vmatprep.mubr.bf16.mxu0 0
        %1522 = vmatmul.mubr.bf16.gmra.mxu0 %v1402
        %v1523 = vpop.f32.mrf.mxu0
        %v1524 = vadd.f32 0.0, %v1523
        %v1525 = vpop.f32.mrf.mxu0
        %v1526 = vpop.f32.mrf.mxu0
        %v1527 = vadd.f32 0.0, %v1526
        %v1528 = vpop.f32.mrf.mxu0
        %1529 = vmatprep.mubr.bf16.mxu0 0
        %1530 = vmatmul.mubr.bf16.gmra.mxu0 %v1405
        %v1531 = vpop.f32.mrf.mxu0
        %v1532 = vadd.f32 0.0, %v1531
        %v1533 = vpop.f32.mrf.mxu0
        %v1534 = vpop.f32.mrf.mxu0
        %v1535 = vadd.f32 0.0, %v1534
        %v1536 = vpop.f32.mrf.mxu0
        %1537 = vmatprep.mubr.bf16.mxu0 0
        %1538 = vmatmul.mubr.bf16.gmra.mxu0 %v1408
        %v1539 = vpop.f32.mrf.mxu0
        %v1540 = vadd.f32 0.0, %v1539
        %v1541 = vpop.f32.mrf.mxu0
        %v1542 = vpop.f32.mrf.mxu0
        %v1543 = vadd.f32 0.0, %v1542
        %v1544 = vpop.f32.mrf.mxu0
        %1545 = vmatprep.mubr.bf16.mxu0 0
        %1546 = vmatmul.mubr.bf16.gmra.mxu0 %v1411
        %v1547 = vpop.f32.mrf.mxu0
        %v1548 = vadd.f32 0.0, %v1547
        %v1549 = vpop.f32.mrf.mxu0
        %v1550 = vpop.f32.mrf.mxu0
        %v1551 = vadd.f32 0.0, %v1550
        %v1552 = vpop.f32.mrf.mxu0
        %1553 = vmatprep.mubr.bf16.mxu0 0
        %1554 = vmatmul.mubr.bf16.gmra.mxu0 %v1414
        %v1555 = vpop.f32.mrf.mxu0
        %v1556 = vadd.f32 0.0, %v1555
        %v1557 = vpop.f32.mrf.mxu0
        %v1558 = vpop.f32.mrf.mxu0
        %v1559 = vadd.f32 0.0, %v1558
        %v1560 = vpop.f32.mrf.mxu0
        %1561 = vmatprep.mubr.bf16.mxu0 0
        %1562 = vmatmul.mubr.bf16.gmra.mxu0 %v1417
        %v1563 = vpop.f32.mrf.mxu0
        %v1564 = vadd.f32 0.0, %v1563
        %v1565 = vpop.f32.mrf.mxu0
        %v1566 = vpop.f32.mrf.mxu0
        %v1567 = vadd.f32 0.0, %v1566
        %v1568 = vpop.f32.mrf.mxu0
        %1569 = vmatprep.mubr.bf16.mxu0 0
        %1570 = vmatmul.mubr.bf16.gmra.mxu0 %v1420
        %v1571 = vpop.f32.mrf.mxu0
        %v1572 = vadd.f32 0.0, %v1571
        %v1573 = vpop.f32.mrf.mxu0
        %v1574 = vpop.f32.mrf.mxu0
        %v1575 = vadd.f32 0.0, %v1574
        %v1576 = vpop.f32.mrf.mxu0
        %1577 = vmatprep.mubr.bf16.mxu0 0
        %1578 = vmatmul.mubr.bf16.gmra.mxu0 %v1423
        %v1579 = vpop.f32.mrf.mxu0
        %v1580 = vadd.f32 0.0, %v1579
        %v1581 = vpop.f32.mrf.mxu0
        %v1582 = vpop.f32.mrf.mxu0
        %v1583 = vadd.f32 0.0, %v1582
        %v1584 = vpop.f32.mrf.mxu0
        %1585 = vdwg.mxu0
        %v1586 = vadd.f32 %v1194, %v1460
        %v1587 = vadd.f32 %v1197, %v1463
        %v1588 = vadd.f32 %v1202, %v1468
        %v1589 = vadd.f32 %v1205, %v1471
        %v1590 = vadd.f32 %v1210, %v1476
        %v1591 = vadd.f32 %v1213, %v1479
        %v1592 = vadd.f32 %v1218, %v1484
        %v1593 = vadd.f32 %v1221, %v1487
        %v1594 = vadd.f32 %v1226, %v1492
        %v1595 = vadd.f32 %v1229, %v1495
        %v1596 = vadd.f32 %v1234, %v1500
        %v1597 = vadd.f32 %v1237, %v1503
        %v1598 = vadd.f32 %v1242, %v1508
        %v1599 = vadd.f32 %v1245, %v1511
        %v1600 = vadd.f32 %v1250, %v1516
        %v1601 = vadd.f32 %v1253, %v1519
        %v1602 = vadd.f32 %v1258, %v1524
        %v1603 = vadd.f32 %v1261, %v1527
        %v1604 = vadd.f32 %v1266, %v1532
        %v1605 = vadd.f32 %v1269, %v1535
        %v1606 = vadd.f32 %v1274, %v1540
        %v1607 = vadd.f32 %v1277, %v1543
        %v1608 = vadd.f32 %v1282, %v1548
        %v1609 = vadd.f32 %v1285, %v1551
        %v1610 = vadd.f32 %v1290, %v1556
        %v1611 = vadd.f32 %v1293, %v1559
        %v1612 = vadd.f32 %v1298, %v1564
        %v1613 = vadd.f32 %v1301, %v1567
        %v1614 = vadd.f32 %v1306, %v1572
        %v1615 = vadd.f32 %v1309, %v1575
        %v1616 = vadd.f32 %v1314, %v1580
        %v1617 = vadd.f32 %v1317, %v1583
        %v1618 = vld [vmem:[%s388] sm:$0xff]
        %v1619 = vld [vmem:[%s388 + $0x8] sm:$0xff]
        %v1620 = vld [vmem:[%s388 + $0x18] sm:$0xff]
        %v1621 = vld [vmem:[%s388 + $0x20] sm:$0xff]
        %v1622 = vld [vmem:[%s388 + $0x30] sm:$0xff]
        %v1623 = vld [vmem:[%s388 + $0x38] sm:$0xff]
        %v1624 = vld [vmem:[%s388 + $0x48] sm:$0xff]
        %v1625 = vld [vmem:[%s388 + $0x50] sm:$0xff]
        %v1626 = vld [vmem:[%s388 + $0x60] sm:$0xff]
        %v1627 = vld [vmem:[%s388 + $0x68] sm:$0xff]
        %v1628 = vld [vmem:[%s388 + $0x78] sm:$0xff]
        %v1629 = vld [vmem:[%s388 + $0x80] sm:$0xff]
        %v1630 = vld [vmem:[%s388 + $0x90] sm:$0xff]
        %v1631 = vld [vmem:[%s388 + $0x98] sm:$0xff]
        %v1632 = vld [vmem:[%s388 + $0xa8] sm:$0xff]
        %v1633 = vld [vmem:[%s388 + $0xb0] sm:$0xff]
        %v1634 = vld [vmem:[%s388 + $0xc0] sm:$0xff]
        %v1635 = vld [vmem:[%s388 + $0xc8] sm:$0xff]
        %v1636 = vld [vmem:[%s388 + $0xd8] sm:$0xff]
        %v1637 = vld [vmem:[%s388 + $0xe0] sm:$0xff]
        %v1638 = vld [vmem:[%s388 + $0xf0] sm:$0xff]
        %v1639 = vld [vmem:[%s388 + $0xf8] sm:$0xff]
        %v1640 = vld [vmem:[%s388 + $0x108] sm:$0xff]
        %v1641 = vld [vmem:[%s388 + $0x110] sm:$0xff]
        %v1642 = vld [vmem:[%s388 + $0x120] sm:$0xff]
        %v1643 = vld [vmem:[%s388 + $0x128] sm:$0xff]
        %v1644 = vld [vmem:[%s388 + $0x138] sm:$0xff]
        %v1645 = vld [vmem:[%s388 + $0x140] sm:$0xff]
        %v1646 = vld [vmem:[%s388 + $0x150] sm:$0xff]
        %v1647 = vld [vmem:[%s388 + $0x158] sm:$0xff]
        %v1648 = vld [vmem:[%s388 + $0x168] sm:$0xff]
        %v1649 = vld [vmem:[%s388 + $0x170] sm:$0xff]
        %v1650 = vpack.c.bf16 %v1619, %v1618
        %v1651 = vpack.c.bf16 %v1621, %v1620
        %v1652 = vpack.c.bf16 %v1623, %v1622
        %v1653 = vpack.c.bf16 %v1625, %v1624
        %v1654 = vpack.c.bf16 %v1627, %v1626
        %v1655 = vpack.c.bf16 %v1629, %v1628
        %v1656 = vpack.c.bf16 %v1631, %v1630
        %v1657 = vpack.c.bf16 %v1633, %v1632
        %v1658 = vpack.c.bf16 %v1635, %v1634
        %v1659 = vpack.c.bf16 %v1637, %v1636
        %v1660 = vpack.c.bf16 %v1639, %v1638
        %v1661 = vpack.c.bf16 %v1641, %v1640
        %v1662 = vpack.c.bf16 %v1643, %v1642
        %v1663 = vpack.c.bf16 %v1645, %v1644
        %v1664 = vpack.c.bf16 %v1647, %v1646
        %v1665 = vpack.c.bf16 %v1649, %v1648
        %s1666 = scalar_lea.vmem %s2, 24
        %v1667 = vld [vmem:[%s1666] sm:$0xf]
        %v1668 = vld [vmem:[%s1666 + $0x4] sm:$0xf]
        %v1671 = vunpack.c.l.b16 %v1667
        %v1672 = vunpack.c.l.b16 %v1668
        %v1673 = vpack.c.b16 %v1672, %v1671
        %v1676 = vsel %vm332, %v1650, 0
        %v1679 = vsel %vm332, %v1651, 0
        %v1682 = vsel %vm332, %v1652, 0
        %v1685 = vsel %vm332, %v1653, 0
        %v1688 = vsel %vm332, %v1654, 0
        %v1691 = vsel %vm332, %v1655, 0
        %v1694 = vsel %vm332, %v1656, 0
        %v1697 = vsel %vm332, %v1657, 0
        %v1700 = vsel %vm332, %v1658, 0
        %v1703 = vsel %vm332, %v1659, 0
        %v1706 = vsel %vm332, %v1660, 0
        %v1709 = vsel %vm332, %v1661, 0
        %v1712 = vsel %vm332, %v1662, 0
        %v1715 = vsel %vm332, %v1663, 0
        %v1718 = vsel %vm332, %v1664, 0
        %v1721 = vsel %vm332, %v1665, 0
        %1723 = vmatprep.subr.bf16.mxu0 0
        %1724 = vmatpush1.bf16.msra.mxu0 0
        %1725 = vmatprep.subr.bf16.mxu0 0
        %1726 = vmatpush1.bf16.msra.mxu0 0
        %1727 = vmatprep.subr.bf16.mxu0 0
        %1728 = vmatpush1.bf16.msra.mxu0 0
        %1729 = vmatprep.subr.bf16.mxu0 0
        %1730 = vmatpush1.bf16.msra.mxu0 0
        %1731 = vmatprep.subr.bf16.mxu0 0
        %1732 = vmatpush1.bf16.msra.mxu0 0
        %1733 = vmatprep.subr.bf16.mxu0 0
        %1734 = vmatpush1.bf16.msra.mxu0 0
        %1735 = vmatprep.subr.bf16.mxu0 0
        %1736 = vmatpush1.bf16.msra.mxu0 0
        %1737 = vmatprep.subr.bf16.mxu0 0
        %1738 = vmatpush1.bf16.msra.mxu0 %v1673
        %1739 = vmatprep.subr.bf16.mxu0 0
        %1740 = vmatpush2.bf16.msra.mxu0 0
        %1741 = vmatprep.subr.bf16.mxu0 0
        %1742 = vmatpush2.bf16.msra.mxu0 0
        %1743 = vmatprep.subr.bf16.mxu0 0
        %1744 = vmatpush2.bf16.msra.mxu0 0
        %1745 = vmatprep.subr.bf16.mxu0 0
        %1746 = vmatpush2.bf16.msra.mxu0 0
        %1747 = vmatprep.subr.bf16.mxu0 0
        %1748 = vmatpush2.bf16.msra.mxu0 0
        %1749 = vmatprep.subr.bf16.mxu0 0
        %1750 = vmatpush2.bf16.msra.mxu0 0
        %1751 = vmatprep.subr.bf16.mxu0 0
        %1752 = vmatpush2.bf16.msra.mxu0 0
        %1753 = vmatprep.subr.bf16.mxu0 0
        %1754 = vmatpush2.bf16.msra.mxu0 0
        %1755 = vmatprep.mubr.bf16.mxu0 0
        %1756 = vmatmul.mubr.bf16.gmra.mxu0 %v1676
        %v1757 = vpop.f32.mrf.mxu0
        %v1758 = vadd.f32 0.0, %v1757
        %v1759 = vpop.f32.mrf.mxu0
        %v1760 = vpop.f32.mrf.mxu0
        %v1761 = vadd.f32 0.0, %v1760
        %v1762 = vpop.f32.mrf.mxu0
        %1763 = vmatprep.mubr.bf16.mxu0 0
        %1764 = vmatmul.mubr.bf16.gmra.mxu0 %v1679
        %v1765 = vpop.f32.mrf.mxu0
        %v1766 = vadd.f32 0.0, %v1765
        %v1767 = vpop.f32.mrf.mxu0
        %v1768 = vpop.f32.mrf.mxu0
        %v1769 = vadd.f32 0.0, %v1768
        %v1770 = vpop.f32.mrf.mxu0
        %1771 = vmatprep.mubr.bf16.mxu0 0
        %1772 = vmatmul.mubr.bf16.gmra.mxu0 %v1682
        %v1773 = vpop.f32.mrf.mxu0
        %v1774 = vadd.f32 0.0, %v1773
        %v1775 = vpop.f32.mrf.mxu0
        %v1776 = vpop.f32.mrf.mxu0
        %v1777 = vadd.f32 0.0, %v1776
        %v1778 = vpop.f32.mrf.mxu0
        %1779 = vmatprep.mubr.bf16.mxu0 0
        %1780 = vmatmul.mubr.bf16.gmra.mxu0 %v1685
        %v1781 = vpop.f32.mrf.mxu0
        %v1782 = vadd.f32 0.0, %v1781
        %v1783 = vpop.f32.mrf.mxu0
        %v1784 = vpop.f32.mrf.mxu0
        %v1785 = vadd.f32 0.0, %v1784
        %v1786 = vpop.f32.mrf.mxu0
        %1787 = vmatprep.mubr.bf16.mxu0 0
        %1788 = vmatmul.mubr.bf16.gmra.mxu0 %v1688
        %v1789 = vpop.f32.mrf.mxu0
        %v1790 = vadd.f32 0.0, %v1789
        %v1791 = vpop.f32.mrf.mxu0
        %v1792 = vpop.f32.mrf.mxu0
        %v1793 = vadd.f32 0.0, %v1792
        %v1794 = vpop.f32.mrf.mxu0
        %1795 = vmatprep.mubr.bf16.mxu0 0
        %1796 = vmatmul.mubr.bf16.gmra.mxu0 %v1691
        %v1797 = vpop.f32.mrf.mxu0
        %v1798 = vadd.f32 0.0, %v1797
        %v1799 = vpop.f32.mrf.mxu0
        %v1800 = vpop.f32.mrf.mxu0
        %v1801 = vadd.f32 0.0, %v1800
        %v1802 = vpop.f32.mrf.mxu0
        %1803 = vmatprep.mubr.bf16.mxu0 0
        %1804 = vmatmul.mubr.bf16.gmra.mxu0 %v1694
        %v1805 = vpop.f32.mrf.mxu0
        %v1806 = vadd.f32 0.0, %v1805
        %v1807 = vpop.f32.mrf.mxu0
        %v1808 = vpop.f32.mrf.mxu0
        %v1809 = vadd.f32 0.0, %v1808
        %v1810 = vpop.f32.mrf.mxu0
        %1811 = vmatprep.mubr.bf16.mxu0 0
        %1812 = vmatmul.mubr.bf16.gmra.mxu0 %v1697
        %v1813 = vpop.f32.mrf.mxu0
        %v1814 = vadd.f32 0.0, %v1813
        %v1815 = vpop.f32.mrf.mxu0
        %v1816 = vpop.f32.mrf.mxu0
        %v1817 = vadd.f32 0.0, %v1816
        %v1818 = vpop.f32.mrf.mxu0
        %1819 = vmatprep.mubr.bf16.mxu0 0
        %1820 = vmatmul.mubr.bf16.gmra.mxu0 %v1700
        %v1821 = vpop.f32.mrf.mxu0
        %v1822 = vadd.f32 0.0, %v1821
        %v1823 = vpop.f32.mrf.mxu0
        %v1824 = vpop.f32.mrf.mxu0
        %v1825 = vadd.f32 0.0, %v1824
        %v1826 = vpop.f32.mrf.mxu0
        %1827 = vmatprep.mubr.bf16.mxu0 0
        %1828 = vmatmul.mubr.bf16.gmra.mxu0 %v1703
        %v1829 = vpop.f32.mrf.mxu0
        %v1830 = vadd.f32 0.0, %v1829
        %v1831 = vpop.f32.mrf.mxu0
        %v1832 = vpop.f32.mrf.mxu0
        %v1833 = vadd.f32 0.0, %v1832
        %v1834 = vpop.f32.mrf.mxu0
        %1835 = vmatprep.mubr.bf16.mxu0 0
        %1836 = vmatmul.mubr.bf16.gmra.mxu0 %v1706
        %v1837 = vpop.f32.mrf.mxu0
        %v1838 = vadd.f32 0.0, %v1837
        %v1839 = vpop.f32.mrf.mxu0
        %v1840 = vpop.f32.mrf.mxu0
        %v1841 = vadd.f32 0.0, %v1840
        %v1842 = vpop.f32.mrf.mxu0
        %1843 = vmatprep.mubr.bf16.mxu0 0
        %1844 = vmatmul.mubr.bf16.gmra.mxu0 %v1709
        %v1845 = vpop.f32.mrf.mxu0
        %v1846 = vadd.f32 0.0, %v1845
        %v1847 = vpop.f32.mrf.mxu0
        %v1848 = vpop.f32.mrf.mxu0
        %v1849 = vadd.f32 0.0, %v1848
        %v1850 = vpop.f32.mrf.mxu0
        %1851 = vmatprep.mubr.bf16.mxu0 0
        %1852 = vmatmul.mubr.bf16.gmra.mxu0 %v1712
        %v1853 = vpop.f32.mrf.mxu0
        %v1854 = vadd.f32 0.0, %v1853
        %v1855 = vpop.f32.mrf.mxu0
        %v1856 = vpop.f32.mrf.mxu0
        %v1857 = vadd.f32 0.0, %v1856
        %v1858 = vpop.f32.mrf.mxu0
        %1859 = vmatprep.mubr.bf16.mxu0 0
        %1860 = vmatmul.mubr.bf16.gmra.mxu0 %v1715
        %v1861 = vpop.f32.mrf.mxu0
        %v1862 = vadd.f32 0.0, %v1861
        %v1863 = vpop.f32.mrf.mxu0
        %v1864 = vpop.f32.mrf.mxu0
        %v1865 = vadd.f32 0.0, %v1864
        %v1866 = vpop.f32.mrf.mxu0
        %1867 = vmatprep.mubr.bf16.mxu0 0
        %1868 = vmatmul.mubr.bf16.gmra.mxu0 %v1718
        %v1869 = vpop.f32.mrf.mxu0
        %v1870 = vadd.f32 0.0, %v1869
        %v1871 = vpop.f32.mrf.mxu0
        %v1872 = vpop.f32.mrf.mxu0
        %v1873 = vadd.f32 0.0, %v1872
        %v1874 = vpop.f32.mrf.mxu0
        %1875 = vmatprep.mubr.bf16.mxu0 0
        %1876 = vmatmul.mubr.bf16.gmra.mxu0 %v1721
        %v1877 = vpop.f32.mrf.mxu0
        %v1878 = vadd.f32 0.0, %v1877
        %v1879 = vpop.f32.mrf.mxu0
        %v1880 = vpop.f32.mrf.mxu0
        %v1881 = vadd.f32 0.0, %v1880
        %v1882 = vpop.f32.mrf.mxu0
        %1883 = vdwg.mxu0
        %v1884 = vadd.f32 %v1586, %v1758
        %v1885 = vadd.f32 %v1587, %v1761
        %v1886 = vadd.f32 %v1588, %v1766
        %v1887 = vadd.f32 %v1589, %v1769
        %v1888 = vadd.f32 %v1590, %v1774
        %v1889 = vadd.f32 %v1591, %v1777
        %v1890 = vadd.f32 %v1592, %v1782
        %v1891 = vadd.f32 %v1593, %v1785
        %v1892 = vadd.f32 %v1594, %v1790
        %v1893 = vadd.f32 %v1595, %v1793
        %v1894 = vadd.f32 %v1596, %v1798
        %v1895 = vadd.f32 %v1597, %v1801
        %v1896 = vadd.f32 %v1598, %v1806
        %v1897 = vadd.f32 %v1599, %v1809
        %v1898 = vadd.f32 %v1600, %v1814
        %v1899 = vadd.f32 %v1601, %v1817
        %v1900 = vadd.f32 %v1602, %v1822
        %v1901 = vadd.f32 %v1603, %v1825
        %v1902 = vadd.f32 %v1604, %v1830
        %v1903 = vadd.f32 %v1605, %v1833
        %v1904 = vadd.f32 %v1606, %v1838
        %v1905 = vadd.f32 %v1607, %v1841
        %v1906 = vadd.f32 %v1608, %v1846
        %v1907 = vadd.f32 %v1609, %v1849
        %v1908 = vadd.f32 %v1610, %v1854
        %v1909 = vadd.f32 %v1611, %v1857
        %v1910 = vadd.f32 %v1612, %v1862
        %v1911 = vadd.f32 %v1613, %v1865
        %v1912 = vadd.f32 %v1614, %v1870
        %v1913 = vadd.f32 %v1615, %v1873
        %v1914 = vadd.f32 %v1616, %v1878
        %v1915 = vadd.f32 %v1617, %v1881
        %v1916 = vld [vmem:[%s388 + $0x1] sm:$0xff]
        %v1917 = vld [vmem:[%s388 + $0x9] sm:$0xff]
        %v1918 = vld [vmem:[%s388 + $0x19] sm:$0xff]
        %v1919 = vld [vmem:[%s388 + $0x21] sm:$0xff]
        %v1920 = vld [vmem:[%s388 + $0x31] sm:$0xff]
        %v1921 = vld [vmem:[%s388 + $0x39] sm:$0xff]
        %v1922 = vld [vmem:[%s388 + $0x49] sm:$0xff]
        %v1923 = vld [vmem:[%s388 + $0x51] sm:$0xff]
        %v1924 = vld [vmem:[%s388 + $0x61] sm:$0xff]
        %v1925 = vld [vmem:[%s388 + $0x69] sm:$0xff]
        %v1926 = vld [vmem:[%s388 + $0x79] sm:$0xff]
        %v1927 = vld [vmem:[%s388 + $0x81] sm:$0xff]
        %v1928 = vld [vmem:[%s388 + $0x91] sm:$0xff]
        %v1929 = vld [vmem:[%s388 + $0x99] sm:$0xff]
        %v1930 = vld [vmem:[%s388 + $0xa9] sm:$0xff]
        %v1931 = vld [vmem:[%s388 + $0xb1] sm:$0xff]
        %v1932 = vld [vmem:[%s388 + $0xc1] sm:$0xff]
        %v1933 = vld [vmem:[%s388 + $0xc9] sm:$0xff]
        %v1934 = vld [vmem:[%s388 + $0xd9] sm:$0xff]
        %v1935 = vld [vmem:[%s388 + $0xe1] sm:$0xff]
        %v1936 = vld [vmem:[%s388 + $0xf1] sm:$0xff]
        %v1937 = vld [vmem:[%s388 + $0xf9] sm:$0xff]
        %v1938 = vld [vmem:[%s388 + $0x109] sm:$0xff]
        %v1939 = vld [vmem:[%s388 + $0x111] sm:$0xff]
        %v1940 = vld [vmem:[%s388 + $0x121] sm:$0xff]
        %v1941 = vld [vmem:[%s388 + $0x129] sm:$0xff]
        %v1942 = vld [vmem:[%s388 + $0x139] sm:$0xff]
        %v1943 = vld [vmem:[%s388 + $0x141] sm:$0xff]
        %v1944 = vld [vmem:[%s388 + $0x151] sm:$0xff]
        %v1945 = vld [vmem:[%s388 + $0x159] sm:$0xff]
        %v1946 = vld [vmem:[%s388 + $0x169] sm:$0xff]
        %v1947 = vld [vmem:[%s388 + $0x171] sm:$0xff]
        %v1948 = vpack.c.bf16 %v1917, %v1916
        %v1949 = vpack.c.bf16 %v1919, %v1918
        %v1950 = vpack.c.bf16 %v1921, %v1920
        %v1951 = vpack.c.bf16 %v1923, %v1922
        %v1952 = vpack.c.bf16 %v1925, %v1924
        %v1953 = vpack.c.bf16 %v1927, %v1926
        %v1954 = vpack.c.bf16 %v1929, %v1928
        %v1955 = vpack.c.bf16 %v1931, %v1930
        %v1956 = vpack.c.bf16 %v1933, %v1932
        %v1957 = vpack.c.bf16 %v1935, %v1934
        %v1958 = vpack.c.bf16 %v1937, %v1936
        %v1959 = vpack.c.bf16 %v1939, %v1938
        %v1960 = vpack.c.bf16 %v1941, %v1940
        %v1961 = vpack.c.bf16 %v1943, %v1942
        %v1962 = vpack.c.bf16 %v1945, %v1944
        %v1963 = vpack.c.bf16 %v1947, %v1946
        %s1964 = scalar_lea.vmem %s2, 32
        %v1965 = vld [vmem:[%s1964] sm:$0xf]
        %v1966 = vld [vmem:[%s1964 + $0x4] sm:$0xf]
        %v1969 = vunpack.c.l.b16 %v1965
        %v1970 = vunpack.c.l.b16 %v1966
        %v1971 = vpack.c.b16 %v1970, %v1969
        %v1974 = vsel %vm332, %v1948, 0
        %v1977 = vsel %vm332, %v1949, 0
        %v1980 = vsel %vm332, %v1950, 0
        %v1983 = vsel %vm332, %v1951, 0
        %v1986 = vsel %vm332, %v1952, 0
        %v1989 = vsel %vm332, %v1953, 0
        %v1992 = vsel %vm332, %v1954, 0
        %v1995 = vsel %vm332, %v1955, 0
        %v1998 = vsel %vm332, %v1956, 0
        %v2001 = vsel %vm332, %v1957, 0
        %v2004 = vsel %vm332, %v1958, 0
        %v2007 = vsel %vm332, %v1959, 0
        %v2010 = vsel %vm332, %v1960, 0
        %v2013 = vsel %vm332, %v1961, 0
        %v2016 = vsel %vm332, %v1962, 0
        %v2019 = vsel %vm332, %v1963, 0
        %2021 = vmatprep.subr.bf16.mxu0 0
        %2022 = vmatpush1.bf16.msra.mxu0 0
        %2023 = vmatprep.subr.bf16.mxu0 0
        %2024 = vmatpush1.bf16.msra.mxu0 0
        %2025 = vmatprep.subr.bf16.mxu0 0
        %2026 = vmatpush1.bf16.msra.mxu0 0
        %2027 = vmatprep.subr.bf16.mxu0 0
        %2028 = vmatpush1.bf16.msra.mxu0 0
        %2029 = vmatprep.subr.bf16.mxu0 0
        %2030 = vmatpush1.bf16.msra.mxu0 0
        %2031 = vmatprep.subr.bf16.mxu0 0
        %2032 = vmatpush1.bf16.msra.mxu0 0
        %2033 = vmatprep.subr.bf16.mxu0 0
        %2034 = vmatpush1.bf16.msra.mxu0 0
        %2035 = vmatprep.subr.bf16.mxu0 0
        %2036 = vmatpush1.bf16.msra.mxu0 %v1971
        %2037 = vmatprep.subr.bf16.mxu0 0
        %2038 = vmatpush2.bf16.msra.mxu0 0
        %2039 = vmatprep.subr.bf16.mxu0 0
        %2040 = vmatpush2.bf16.msra.mxu0 0
        %2041 = vmatprep.subr.bf16.mxu0 0
        %2042 = vmatpush2.bf16.msra.mxu0 0
        %2043 = vmatprep.subr.bf16.mxu0 0
        %2044 = vmatpush2.bf16.msra.mxu0 0
        %2045 = vmatprep.subr.bf16.mxu0 0
        %2046 = vmatpush2.bf16.msra.mxu0 0
        %2047 = vmatprep.subr.bf16.mxu0 0
        %2048 = vmatpush2.bf16.msra.mxu0 0
        %2049 = vmatprep.subr.bf16.mxu0 0
        %2050 = vmatpush2.bf16.msra.mxu0 0
        %2051 = vmatprep.subr.bf16.mxu0 0
        %2052 = vmatpush2.bf16.msra.mxu0 0
        %2053 = vmatprep.mubr.bf16.mxu0 0
        %2054 = vmatmul.mubr.bf16.gmra.mxu0 %v1974
        %v2055 = vpop.f32.mrf.mxu0
        %v2056 = vadd.f32 0.0, %v2055
        %v2057 = vpop.f32.mrf.mxu0
        %v2058 = vpop.f32.mrf.mxu0
        %v2059 = vadd.f32 0.0, %v2058
        %v2060 = vpop.f32.mrf.mxu0
        %2061 = vmatprep.mubr.bf16.mxu0 0
        %2062 = vmatmul.mubr.bf16.gmra.mxu0 %v1977
        %v2063 = vpop.f32.mrf.mxu0
        %v2064 = vadd.f32 0.0, %v2063
        %v2065 = vpop.f32.mrf.mxu0
        %v2066 = vpop.f32.mrf.mxu0
        %v2067 = vadd.f32 0.0, %v2066
        %v2068 = vpop.f32.mrf.mxu0
        %2069 = vmatprep.mubr.bf16.mxu0 0
        %2070 = vmatmul.mubr.bf16.gmra.mxu0 %v1980
        %v2071 = vpop.f32.mrf.mxu0
        %v2072 = vadd.f32 0.0, %v2071
        %v2073 = vpop.f32.mrf.mxu0
        %v2074 = vpop.f32.mrf.mxu0
        %v2075 = vadd.f32 0.0, %v2074
        %v2076 = vpop.f32.mrf.mxu0
        %2077 = vmatprep.mubr.bf16.mxu0 0
        %2078 = vmatmul.mubr.bf16.gmra.mxu0 %v1983
        %v2079 = vpop.f32.mrf.mxu0
        %v2080 = vadd.f32 0.0, %v2079
        %v2081 = vpop.f32.mrf.mxu0
        %v2082 = vpop.f32.mrf.mxu0
        %v2083 = vadd.f32 0.0, %v2082
        %v2084 = vpop.f32.mrf.mxu0
        %2085 = vmatprep.mubr.bf16.mxu0 0
        %2086 = vmatmul.mubr.bf16.gmra.mxu0 %v1986
        %v2087 = vpop.f32.mrf.mxu0
        %v2088 = vadd.f32 0.0, %v2087
        %v2089 = vpop.f32.mrf.mxu0
        %v2090 = vpop.f32.mrf.mxu0
        %v2091 = vadd.f32 0.0, %v2090
        %v2092 = vpop.f32.mrf.mxu0
        %2093 = vmatprep.mubr.bf16.mxu0 0
        %2094 = vmatmul.mubr.bf16.gmra.mxu0 %v1989
        %v2095 = vpop.f32.mrf.mxu0
        %v2096 = vadd.f32 0.0, %v2095
        %v2097 = vpop.f32.mrf.mxu0
        %v2098 = vpop.f32.mrf.mxu0
        %v2099 = vadd.f32 0.0, %v2098
        %v2100 = vpop.f32.mrf.mxu0
        %2101 = vmatprep.mubr.bf16.mxu0 0
        %2102 = vmatmul.mubr.bf16.gmra.mxu0 %v1992
        %v2103 = vpop.f32.mrf.mxu0
        %v2104 = vadd.f32 0.0, %v2103
        %v2105 = vpop.f32.mrf.mxu0
        %v2106 = vpop.f32.mrf.mxu0
        %v2107 = vadd.f32 0.0, %v2106
        %v2108 = vpop.f32.mrf.mxu0
        %2109 = vmatprep.mubr.bf16.mxu0 0
        %2110 = vmatmul.mubr.bf16.gmra.mxu0 %v1995
        %v2111 = vpop.f32.mrf.mxu0
        %v2112 = vadd.f32 0.0, %v2111
        %v2113 = vpop.f32.mrf.mxu0
        %v2114 = vpop.f32.mrf.mxu0
        %v2115 = vadd.f32 0.0, %v2114
        %v2116 = vpop.f32.mrf.mxu0
        %2117 = vmatprep.mubr.bf16.mxu0 0
        %2118 = vmatmul.mubr.bf16.gmra.mxu0 %v1998
        %v2119 = vpop.f32.mrf.mxu0
        %v2120 = vadd.f32 0.0, %v2119
        %v2121 = vpop.f32.mrf.mxu0
        %v2122 = vpop.f32.mrf.mxu0
        %v2123 = vadd.f32 0.0, %v2122
        %v2124 = vpop.f32.mrf.mxu0
        %2125 = vmatprep.mubr.bf16.mxu0 0
        %2126 = vmatmul.mubr.bf16.gmra.mxu0 %v2001
        %v2127 = vpop.f32.mrf.mxu0
        %v2128 = vadd.f32 0.0, %v2127
        %v2129 = vpop.f32.mrf.mxu0
        %v2130 = vpop.f32.mrf.mxu0
        %v2131 = vadd.f32 0.0, %v2130
        %v2132 = vpop.f32.mrf.mxu0
        %2133 = vmatprep.mubr.bf16.mxu0 0
        %2134 = vmatmul.mubr.bf16.gmra.mxu0 %v2004
        %v2135 = vpop.f32.mrf.mxu0
        %v2136 = vadd.f32 0.0, %v2135
        %v2137 = vpop.f32.mrf.mxu0
        %v2138 = vpop.f32.mrf.mxu0
        %v2139 = vadd.f32 0.0, %v2138
        %v2140 = vpop.f32.mrf.mxu0
        %2141 = vmatprep.mubr.bf16.mxu0 0
        %2142 = vmatmul.mubr.bf16.gmra.mxu0 %v2007
        %v2143 = vpop.f32.mrf.mxu0
        %v2144 = vadd.f32 0.0, %v2143
        %v2145 = vpop.f32.mrf.mxu0
        %v2146 = vpop.f32.mrf.mxu0
        %v2147 = vadd.f32 0.0, %v2146
        %v2148 = vpop.f32.mrf.mxu0
        %2149 = vmatprep.mubr.bf16.mxu0 0
        %2150 = vmatmul.mubr.bf16.gmra.mxu0 %v2010
        %v2151 = vpop.f32.mrf.mxu0
        %v2152 = vadd.f32 0.0, %v2151
        %v2153 = vpop.f32.mrf.mxu0
        %v2154 = vpop.f32.mrf.mxu0
        %v2155 = vadd.f32 0.0, %v2154
        %v2156 = vpop.f32.mrf.mxu0
        %2157 = vmatprep.mubr.bf16.mxu0 0
        %2158 = vmatmul.mubr.bf16.gmra.mxu0 %v2013
        %v2159 = vpop.f32.mrf.mxu0
        %v2160 = vadd.f32 0.0, %v2159
        %v2161 = vpop.f32.mrf.mxu0
        %v2162 = vpop.f32.mrf.mxu0
        %v2163 = vadd.f32 0.0, %v2162
        %v2164 = vpop.f32.mrf.mxu0
        %2165 = vmatprep.mubr.bf16.mxu0 0
        %2166 = vmatmul.mubr.bf16.gmra.mxu0 %v2016
        %v2167 = vpop.f32.mrf.mxu0
        %v2168 = vadd.f32 0.0, %v2167
        %v2169 = vpop.f32.mrf.mxu0
        %v2170 = vpop.f32.mrf.mxu0
        %v2171 = vadd.f32 0.0, %v2170
        %v2172 = vpop.f32.mrf.mxu0
        %2173 = vmatprep.mubr.bf16.mxu0 0
        %2174 = vmatmul.mubr.bf16.gmra.mxu0 %v2019
        %v2175 = vpop.f32.mrf.mxu0
        %v2176 = vadd.f32 0.0, %v2175
        %v2177 = vpop.f32.mrf.mxu0
        %v2178 = vpop.f32.mrf.mxu0
        %v2179 = vadd.f32 0.0, %v2178
        %v2180 = vpop.f32.mrf.mxu0
        %2181 = vdwg.mxu0
        %v2182 = vadd.f32 %v1884, %v2056
        %v2183 = vadd.f32 %v1885, %v2059
        %v2184 = vadd.f32 %v1886, %v2064
        %v2185 = vadd.f32 %v1887, %v2067
        %v2186 = vadd.f32 %v1888, %v2072
        %v2187 = vadd.f32 %v1889, %v2075
        %v2188 = vadd.f32 %v1890, %v2080
        %v2189 = vadd.f32 %v1891, %v2083
        %v2190 = vadd.f32 %v1892, %v2088
        %v2191 = vadd.f32 %v1893, %v2091
        %v2192 = vadd.f32 %v1894, %v2096
        %v2193 = vadd.f32 %v1895, %v2099
        %v2194 = vadd.f32 %v1896, %v2104
        %v2195 = vadd.f32 %v1897, %v2107
        %v2196 = vadd.f32 %v1898, %v2112
        %v2197 = vadd.f32 %v1899, %v2115
        %v2198 = vadd.f32 %v1900, %v2120
        %v2199 = vadd.f32 %v1901, %v2123
        %v2200 = vadd.f32 %v1902, %v2128
        %v2201 = vadd.f32 %v1903, %v2131
        %v2202 = vadd.f32 %v1904, %v2136
        %v2203 = vadd.f32 %v1905, %v2139
        %v2204 = vadd.f32 %v1906, %v2144
        %v2205 = vadd.f32 %v1907, %v2147
        %v2206 = vadd.f32 %v1908, %v2152
        %v2207 = vadd.f32 %v1909, %v2155
        %v2208 = vadd.f32 %v1910, %v2160
        %v2209 = vadd.f32 %v1911, %v2163
        %v2210 = vadd.f32 %v1912, %v2168
        %v2211 = vadd.f32 %v1913, %v2171
        %v2212 = vadd.f32 %v1914, %v2176
        %v2213 = vadd.f32 %v1915, %v2179
        %v2214 = vld [vmem:[%s388 + $0x2] sm:$0xff]
        %v2215 = vld [vmem:[%s388 + $0xa] sm:$0xff]
        %v2216 = vld [vmem:[%s388 + $0x1a] sm:$0xff]
        %v2217 = vld [vmem:[%s388 + $0x22] sm:$0xff]
        %v2218 = vld [vmem:[%s388 + $0x32] sm:$0xff]
        %v2219 = vld [vmem:[%s388 + $0x3a] sm:$0xff]
        %v2220 = vld [vmem:[%s388 + $0x4a] sm:$0xff]
        %v2221 = vld [vmem:[%s388 + $0x52] sm:$0xff]
        %v2222 = vld [vmem:[%s388 + $0x62] sm:$0xff]
        %v2223 = vld [vmem:[%s388 + $0x6a] sm:$0xff]
        %v2224 = vld [vmem:[%s388 + $0x7a] sm:$0xff]
        %v2225 = vld [vmem:[%s388 + $0x82] sm:$0xff]
        %v2226 = vld [vmem:[%s388 + $0x92] sm:$0xff]
        %v2227 = vld [vmem:[%s388 + $0x9a] sm:$0xff]
        %v2228 = vld [vmem:[%s388 + $0xaa] sm:$0xff]
        %v2229 = vld [vmem:[%s388 + $0xb2] sm:$0xff]
        %v2230 = vld [vmem:[%s388 + $0xc2] sm:$0xff]
        %v2231 = vld [vmem:[%s388 + $0xca] sm:$0xff]
        %v2232 = vld [vmem:[%s388 + $0xda] sm:$0xff]
        %v2233 = vld [vmem:[%s388 + $0xe2] sm:$0xff]
        %v2234 = vld [vmem:[%s388 + $0xf2] sm:$0xff]
        %v2235 = vld [vmem:[%s388 + $0xfa] sm:$0xff]
        %v2236 = vld [vmem:[%s388 + $0x10a] sm:$0xff]
        %v2237 = vld [vmem:[%s388 + $0x112] sm:$0xff]
        %v2238 = vld [vmem:[%s388 + $0x122] sm:$0xff]
        %v2239 = vld [vmem:[%s388 + $0x12a] sm:$0xff]
        %v2240 = vld [vmem:[%s388 + $0x13a] sm:$0xff]
        %v2241 = vld [vmem:[%s388 + $0x142] sm:$0xff]
        %v2242 = vld [vmem:[%s388 + $0x152] sm:$0xff]
        %v2243 = vld [vmem:[%s388 + $0x15a] sm:$0xff]
        %v2244 = vld [vmem:[%s388 + $0x16a] sm:$0xff]
        %v2245 = vld [vmem:[%s388 + $0x172] sm:$0xff]
        %v2246 = vpack.c.bf16 %v2215, %v2214
        %v2247 = vpack.c.bf16 %v2217, %v2216
        %v2248 = vpack.c.bf16 %v2219, %v2218
        %v2249 = vpack.c.bf16 %v2221, %v2220
        %v2250 = vpack.c.bf16 %v2223, %v2222
        %v2251 = vpack.c.bf16 %v2225, %v2224
        %v2252 = vpack.c.bf16 %v2227, %v2226
        %v2253 = vpack.c.bf16 %v2229, %v2228
        %v2254 = vpack.c.bf16 %v2231, %v2230
        %v2255 = vpack.c.bf16 %v2233, %v2232
        %v2256 = vpack.c.bf16 %v2235, %v2234
        %v2257 = vpack.c.bf16 %v2237, %v2236
        %v2258 = vpack.c.bf16 %v2239, %v2238
        %v2259 = vpack.c.bf16 %v2241, %v2240
        %v2260 = vpack.c.bf16 %v2243, %v2242
        %v2261 = vpack.c.bf16 %v2245, %v2244
        %s2262 = scalar_lea.vmem %s2, 40
        %v2263 = vld [vmem:[%s2262] sm:$0xf]
        %v2264 = vld [vmem:[%s2262 + $0x4] sm:$0xf]
        %v2267 = vunpack.c.l.b16 %v2263
        %v2268 = vunpack.c.l.b16 %v2264
        %v2269 = vpack.c.b16 %v2268, %v2267
        %v2272 = vsel %vm332, %v2246, 0
        %v2275 = vsel %vm332, %v2247, 0
        %v2278 = vsel %vm332, %v2248, 0
        %v2281 = vsel %vm332, %v2249, 0
        %v2284 = vsel %vm332, %v2250, 0
        %v2287 = vsel %vm332, %v2251, 0
        %v2290 = vsel %vm332, %v2252, 0
        %v2293 = vsel %vm332, %v2253, 0
        %v2296 = vsel %vm332, %v2254, 0
        %v2299 = vsel %vm332, %v2255, 0
        %v2302 = vsel %vm332, %v2256, 0
        %v2305 = vsel %vm332, %v2257, 0
        %v2308 = vsel %vm332, %v2258, 0
        %v2311 = vsel %vm332, %v2259, 0
        %v2314 = vsel %vm332, %v2260, 0
        %v2317 = vsel %vm332, %v2261, 0
        %2319 = vmatprep.subr.bf16.mxu0 0
        %2320 = vmatpush1.bf16.msra.mxu0 0
        %2321 = vmatprep.subr.bf16.mxu0 0
        %2322 = vmatpush1.bf16.msra.mxu0 0
        %2323 = vmatprep.subr.bf16.mxu0 0
        %2324 = vmatpush1.bf16.msra.mxu0 0
        %2325 = vmatprep.subr.bf16.mxu0 0
        %2326 = vmatpush1.bf16.msra.mxu0 0
        %2327 = vmatprep.subr.bf16.mxu0 0
        %2328 = vmatpush1.bf16.msra.mxu0 0
        %2329 = vmatprep.subr.bf16.mxu0 0
        %2330 = vmatpush1.bf16.msra.mxu0 0
        %2331 = vmatprep.subr.bf16.mxu0 0
        %2332 = vmatpush1.bf16.msra.mxu0 0
        %2333 = vmatprep.subr.bf16.mxu0 0
        %2334 = vmatpush1.bf16.msra.mxu0 %v2269
        %2335 = vmatprep.subr.bf16.mxu0 0
        %2336 = vmatpush2.bf16.msra.mxu0 0
        %2337 = vmatprep.subr.bf16.mxu0 0
        %2338 = vmatpush2.bf16.msra.mxu0 0
        %2339 = vmatprep.subr.bf16.mxu0 0
        %2340 = vmatpush2.bf16.msra.mxu0 0
        %2341 = vmatprep.subr.bf16.mxu0 0
        %2342 = vmatpush2.bf16.msra.mxu0 0
        %2343 = vmatprep.subr.bf16.mxu0 0
        %2344 = vmatpush2.bf16.msra.mxu0 0
        %2345 = vmatprep.subr.bf16.mxu0 0
        %2346 = vmatpush2.bf16.msra.mxu0 0
        %2347 = vmatprep.subr.bf16.mxu0 0
        %2348 = vmatpush2.bf16.msra.mxu0 0
        %2349 = vmatprep.subr.bf16.mxu0 0
        %2350 = vmatpush2.bf16.msra.mxu0 0
        %2351 = vmatprep.mubr.bf16.mxu0 0
        %2352 = vmatmul.mubr.bf16.gmra.mxu0 %v2272
        %v2353 = vpop.f32.mrf.mxu0
        %v2354 = vadd.f32 0.0, %v2353
        %v2355 = vpop.f32.mrf.mxu0
        %v2356 = vpop.f32.mrf.mxu0
        %v2357 = vadd.f32 0.0, %v2356
        %v2358 = vpop.f32.mrf.mxu0
        %2359 = vmatprep.mubr.bf16.mxu0 0
        %2360 = vmatmul.mubr.bf16.gmra.mxu0 %v2275
        %v2361 = vpop.f32.mrf.mxu0
        %v2362 = vadd.f32 0.0, %v2361
        %v2363 = vpop.f32.mrf.mxu0
        %v2364 = vpop.f32.mrf.mxu0
        %v2365 = vadd.f32 0.0, %v2364
        %v2366 = vpop.f32.mrf.mxu0
        %2367 = vmatprep.mubr.bf16.mxu0 0
        %2368 = vmatmul.mubr.bf16.gmra.mxu0 %v2278
        %v2369 = vpop.f32.mrf.mxu0
        %v2370 = vadd.f32 0.0, %v2369
        %v2371 = vpop.f32.mrf.mxu0
        %v2372 = vpop.f32.mrf.mxu0
        %v2373 = vadd.f32 0.0, %v2372
        %v2374 = vpop.f32.mrf.mxu0
        %2375 = vmatprep.mubr.bf16.mxu0 0
        %2376 = vmatmul.mubr.bf16.gmra.mxu0 %v2281
        %v2377 = vpop.f32.mrf.mxu0
        %v2378 = vadd.f32 0.0, %v2377
        %v2379 = vpop.f32.mrf.mxu0
        %v2380 = vpop.f32.mrf.mxu0
        %v2381 = vadd.f32 0.0, %v2380
        %v2382 = vpop.f32.mrf.mxu0
        %2383 = vmatprep.mubr.bf16.mxu0 0
        %2384 = vmatmul.mubr.bf16.gmra.mxu0 %v2284
        %v2385 = vpop.f32.mrf.mxu0
        %v2386 = vadd.f32 0.0, %v2385
        %v2387 = vpop.f32.mrf.mxu0
        %v2388 = vpop.f32.mrf.mxu0
        %v2389 = vadd.f32 0.0, %v2388
        %v2390 = vpop.f32.mrf.mxu0
        %2391 = vmatprep.mubr.bf16.mxu0 0
        %2392 = vmatmul.mubr.bf16.gmra.mxu0 %v2287
        %v2393 = vpop.f32.mrf.mxu0
        %v2394 = vadd.f32 0.0, %v2393
        %v2395 = vpop.f32.mrf.mxu0
        %v2396 = vpop.f32.mrf.mxu0
        %v2397 = vadd.f32 0.0, %v2396
        %v2398 = vpop.f32.mrf.mxu0
        %2399 = vmatprep.mubr.bf16.mxu0 0
        %2400 = vmatmul.mubr.bf16.gmra.mxu0 %v2290
        %v2401 = vpop.f32.mrf.mxu0
        %v2402 = vadd.f32 0.0, %v2401
        %v2403 = vpop.f32.mrf.mxu0
        %v2404 = vpop.f32.mrf.mxu0
        %v2405 = vadd.f32 0.0, %v2404
        %v2406 = vpop.f32.mrf.mxu0
        %2407 = vmatprep.mubr.bf16.mxu0 0
        %2408 = vmatmul.mubr.bf16.gmra.mxu0 %v2293
        %v2409 = vpop.f32.mrf.mxu0
        %v2410 = vadd.f32 0.0, %v2409
        %v2411 = vpop.f32.mrf.mxu0
        %v2412 = vpop.f32.mrf.mxu0
        %v2413 = vadd.f32 0.0, %v2412
        %v2414 = vpop.f32.mrf.mxu0
        %2415 = vmatprep.mubr.bf16.mxu0 0
        %2416 = vmatmul.mubr.bf16.gmra.mxu0 %v2296
        %v2417 = vpop.f32.mrf.mxu0
        %v2418 = vadd.f32 0.0, %v2417
        %v2419 = vpop.f32.mrf.mxu0
        %v2420 = vpop.f32.mrf.mxu0
        %v2421 = vadd.f32 0.0, %v2420
        %v2422 = vpop.f32.mrf.mxu0
        %2423 = vmatprep.mubr.bf16.mxu0 0
        %2424 = vmatmul.mubr.bf16.gmra.mxu0 %v2299
        %v2425 = vpop.f32.mrf.mxu0
        %v2426 = vadd.f32 0.0, %v2425
        %v2427 = vpop.f32.mrf.mxu0
        %v2428 = vpop.f32.mrf.mxu0
        %v2429 = vadd.f32 0.0, %v2428
        %v2430 = vpop.f32.mrf.mxu0
        %2431 = vmatprep.mubr.bf16.mxu0 0
        %2432 = vmatmul.mubr.bf16.gmra.mxu0 %v2302
        %v2433 = vpop.f32.mrf.mxu0
        %v2434 = vadd.f32 0.0, %v2433
        %v2435 = vpop.f32.mrf.mxu0
        %v2436 = vpop.f32.mrf.mxu0
        %v2437 = vadd.f32 0.0, %v2436
        %v2438 = vpop.f32.mrf.mxu0
        %2439 = vmatprep.mubr.bf16.mxu0 0
        %2440 = vmatmul.mubr.bf16.gmra.mxu0 %v2305
        %v2441 = vpop.f32.mrf.mxu0
        %v2442 = vadd.f32 0.0, %v2441
        %v2443 = vpop.f32.mrf.mxu0
        %v2444 = vpop.f32.mrf.mxu0
        %v2445 = vadd.f32 0.0, %v2444
        %v2446 = vpop.f32.mrf.mxu0
        %2447 = vmatprep.mubr.bf16.mxu0 0
        %2448 = vmatmul.mubr.bf16.gmra.mxu0 %v2308
        %v2449 = vpop.f32.mrf.mxu0
        %v2450 = vadd.f32 0.0, %v2449
        %v2451 = vpop.f32.mrf.mxu0
        %v2452 = vpop.f32.mrf.mxu0
        %v2453 = vadd.f32 0.0, %v2452
        %v2454 = vpop.f32.mrf.mxu0
        %2455 = vmatprep.mubr.bf16.mxu0 0
        %2456 = vmatmul.mubr.bf16.gmra.mxu0 %v2311
        %v2457 = vpop.f32.mrf.mxu0
        %v2458 = vadd.f32 0.0, %v2457
        %v2459 = vpop.f32.mrf.mxu0
        %v2460 = vpop.f32.mrf.mxu0
        %v2461 = vadd.f32 0.0, %v2460
        %v2462 = vpop.f32.mrf.mxu0
        %2463 = vmatprep.mubr.bf16.mxu0 0
        %2464 = vmatmul.mubr.bf16.gmra.mxu0 %v2314
        %v2465 = vpop.f32.mrf.mxu0
        %v2466 = vadd.f32 0.0, %v2465
        %v2467 = vpop.f32.mrf.mxu0
        %v2468 = vpop.f32.mrf.mxu0
        %v2469 = vadd.f32 0.0, %v2468
        %v2470 = vpop.f32.mrf.mxu0
        %2471 = vmatprep.mubr.bf16.mxu0 0
        %2472 = vmatmul.mubr.bf16.gmra.mxu0 %v2317
        %v2473 = vpop.f32.mrf.mxu0
        %v2474 = vadd.f32 0.0, %v2473
        %v2475 = vpop.f32.mrf.mxu0
        %v2476 = vpop.f32.mrf.mxu0
        %v2477 = vadd.f32 0.0, %v2476
        %v2478 = vpop.f32.mrf.mxu0
        %2479 = vdwg.mxu0
        %v2480 = vadd.f32 %v2182, %v2354
        %v2481 = vadd.f32 %v2183, %v2357
        %v2482 = vadd.f32 %v2184, %v2362
        %v2483 = vadd.f32 %v2185, %v2365
        %v2484 = vadd.f32 %v2186, %v2370
        %v2485 = vadd.f32 %v2187, %v2373
        %v2486 = vadd.f32 %v2188, %v2378
        %v2487 = vadd.f32 %v2189, %v2381
        %v2488 = vadd.f32 %v2190, %v2386
        %v2489 = vadd.f32 %v2191, %v2389
        %v2490 = vadd.f32 %v2192, %v2394
        %v2491 = vadd.f32 %v2193, %v2397
        %v2492 = vadd.f32 %v2194, %v2402
        %v2493 = vadd.f32 %v2195, %v2405
        %v2494 = vadd.f32 %v2196, %v2410
        %v2495 = vadd.f32 %v2197, %v2413
        %v2496 = vadd.f32 %v2198, %v2418
        %v2497 = vadd.f32 %v2199, %v2421
        %v2498 = vadd.f32 %v2200, %v2426
        %v2499 = vadd.f32 %v2201, %v2429
        %v2500 = vadd.f32 %v2202, %v2434
        %v2501 = vadd.f32 %v2203, %v2437
        %v2502 = vadd.f32 %v2204, %v2442
        %v2503 = vadd.f32 %v2205, %v2445
        %v2504 = vadd.f32 %v2206, %v2450
        %v2505 = vadd.f32 %v2207, %v2453
        %v2506 = vadd.f32 %v2208, %v2458
        %v2507 = vadd.f32 %v2209, %v2461
        %v2508 = vadd.f32 %v2210, %v2466
        %v2509 = vadd.f32 %v2211, %v2469
        %v2510 = vadd.f32 %v2212, %v2474
        %v2511 = vadd.f32 %v2213, %v2477
        %s2512 = scalar_lea.vmem [#allocation2], 48
        %v2513 = vld [vmem:[%s2512] sm:$0xff]
        %v2514 = vld [vmem:[%s2512 + $0x8] sm:$0xff]
        %v2515 = vld [vmem:[%s2512 + $0x18] sm:$0xff]
        %v2516 = vld [vmem:[%s2512 + $0x20] sm:$0xff]
        %v2517 = vld [vmem:[%s2512 + $0x30] sm:$0xff]
        %v2518 = vld [vmem:[%s2512 + $0x38] sm:$0xff]
        %v2519 = vld [vmem:[%s2512 + $0x48] sm:$0xff]
        %v2520 = vld [vmem:[%s2512 + $0x50] sm:$0xff]
        %v2521 = vld [vmem:[%s2512 + $0x60] sm:$0xff]
        %v2522 = vld [vmem:[%s2512 + $0x68] sm:$0xff]
        %v2523 = vld [vmem:[%s2512 + $0x78] sm:$0xff]
        %v2524 = vld [vmem:[%s2512 + $0x80] sm:$0xff]
        %v2525 = vld [vmem:[%s2512 + $0x90] sm:$0xff]
        %v2526 = vld [vmem:[%s2512 + $0x98] sm:$0xff]
        %v2527 = vld [vmem:[%s2512 + $0xa8] sm:$0xff]
        %v2528 = vld [vmem:[%s2512 + $0xb0] sm:$0xff]
        %v2529 = vld [vmem:[%s2512 + $0xc0] sm:$0xff]
        %v2530 = vld [vmem:[%s2512 + $0xc8] sm:$0xff]
        %v2531 = vld [vmem:[%s2512 + $0xd8] sm:$0xff]
        %v2532 = vld [vmem:[%s2512 + $0xe0] sm:$0xff]
        %v2533 = vld [vmem:[%s2512 + $0xf0] sm:$0xff]
        %v2534 = vld [vmem:[%s2512 + $0xf8] sm:$0xff]
        %v2535 = vld [vmem:[%s2512 + $0x108] sm:$0xff]
        %v2536 = vld [vmem:[%s2512 + $0x110] sm:$0xff]
        %v2537 = vld [vmem:[%s2512 + $0x120] sm:$0xff]
        %v2538 = vld [vmem:[%s2512 + $0x128] sm:$0xff]
        %v2539 = vld [vmem:[%s2512 + $0x138] sm:$0xff]
        %v2540 = vld [vmem:[%s2512 + $0x140] sm:$0xff]
        %v2541 = vld [vmem:[%s2512 + $0x150] sm:$0xff]
        %v2542 = vld [vmem:[%s2512 + $0x158] sm:$0xff]
        %v2543 = vld [vmem:[%s2512 + $0x168] sm:$0xff]
        %v2544 = vld [vmem:[%s2512 + $0x170] sm:$0xff]
        %v2545 = vpack.c.bf16 %v2514, %v2513
        %v2546 = vpack.c.bf16 %v2516, %v2515
        %v2547 = vpack.c.bf16 %v2518, %v2517
        %v2548 = vpack.c.bf16 %v2520, %v2519
        %v2549 = vpack.c.bf16 %v2522, %v2521
        %v2550 = vpack.c.bf16 %v2524, %v2523
        %v2551 = vpack.c.bf16 %v2526, %v2525
        %v2552 = vpack.c.bf16 %v2528, %v2527
        %v2553 = vpack.c.bf16 %v2530, %v2529
        %v2554 = vpack.c.bf16 %v2532, %v2531
        %v2555 = vpack.c.bf16 %v2534, %v2533
        %v2556 = vpack.c.bf16 %v2536, %v2535
        %v2557 = vpack.c.bf16 %v2538, %v2537
        %v2558 = vpack.c.bf16 %v2540, %v2539
        %v2559 = vpack.c.bf16 %v2542, %v2541
        %v2560 = vpack.c.bf16 %v2544, %v2543
        %s2561 = scalar_lea.vmem %s2, 48
        %v2562 = vld [vmem:[%s2561] sm:$0xf]
        %v2563 = vld [vmem:[%s2561 + $0x4] sm:$0xf]
        %v2566 = vunpack.c.l.b16 %v2562
        %v2567 = vunpack.c.l.b16 %v2563
        %v2568 = vpack.c.b16 %v2567, %v2566
        %v2571 = vsel %vm332, %v2545, 0
        %v2574 = vsel %vm332, %v2546, 0
        %v2577 = vsel %vm332, %v2547, 0
        %v2580 = vsel %vm332, %v2548, 0
        %v2583 = vsel %vm332, %v2549, 0
        %v2586 = vsel %vm332, %v2550, 0
        %v2589 = vsel %vm332, %v2551, 0
        %v2592 = vsel %vm332, %v2552, 0
        %v2595 = vsel %vm332, %v2553, 0
        %v2598 = vsel %vm332, %v2554, 0
        %v2601 = vsel %vm332, %v2555, 0
        %v2604 = vsel %vm332, %v2556, 0
        %v2607 = vsel %vm332, %v2557, 0
        %v2610 = vsel %vm332, %v2558, 0
        %v2613 = vsel %vm332, %v2559, 0
        %v2616 = vsel %vm332, %v2560, 0
        %2618 = vmatprep.subr.bf16.mxu0 0
        %2619 = vmatpush1.bf16.msra.mxu0 0
        %2620 = vmatprep.subr.bf16.mxu0 0
        %2621 = vmatpush1.bf16.msra.mxu0 0
        %2622 = vmatprep.subr.bf16.mxu0 0
        %2623 = vmatpush1.bf16.msra.mxu0 0
        %2624 = vmatprep.subr.bf16.mxu0 0
        %2625 = vmatpush1.bf16.msra.mxu0 0
        %2626 = vmatprep.subr.bf16.mxu0 0
        %2627 = vmatpush1.bf16.msra.mxu0 0
        %2628 = vmatprep.subr.bf16.mxu0 0
        %2629 = vmatpush1.bf16.msra.mxu0 0
        %2630 = vmatprep.subr.bf16.mxu0 0
        %2631 = vmatpush1.bf16.msra.mxu0 0
        %2632 = vmatprep.subr.bf16.mxu0 0
        %2633 = vmatpush1.bf16.msra.mxu0 %v2568
        %2634 = vmatprep.subr.bf16.mxu0 0
        %2635 = vmatpush2.bf16.msra.mxu0 0
        %2636 = vmatprep.subr.bf16.mxu0 0
        %2637 = vmatpush2.bf16.msra.mxu0 0
        %2638 = vmatprep.subr.bf16.mxu0 0
        %2639 = vmatpush2.bf16.msra.mxu0 0
        %2640 = vmatprep.subr.bf16.mxu0 0
        %2641 = vmatpush2.bf16.msra.mxu0 0
        %2642 = vmatprep.subr.bf16.mxu0 0
        %2643 = vmatpush2.bf16.msra.mxu0 0
        %2644 = vmatprep.subr.bf16.mxu0 0
        %2645 = vmatpush2.bf16.msra.mxu0 0
        %2646 = vmatprep.subr.bf16.mxu0 0
        %2647 = vmatpush2.bf16.msra.mxu0 0
        %2648 = vmatprep.subr.bf16.mxu0 0
        %2649 = vmatpush2.bf16.msra.mxu0 0
        %2650 = vmatprep.mubr.bf16.mxu0 0
        %2651 = vmatmul.mubr.bf16.gmra.mxu0 %v2571
        %v2652 = vpop.f32.mrf.mxu0
        %v2653 = vadd.f32 0.0, %v2652
        %v2654 = vpop.f32.mrf.mxu0
        %v2655 = vpop.f32.mrf.mxu0
        %v2656 = vadd.f32 0.0, %v2655
        %v2657 = vpop.f32.mrf.mxu0
        %2658 = vmatprep.mubr.bf16.mxu0 0
        %2659 = vmatmul.mubr.bf16.gmra.mxu0 %v2574
        %v2660 = vpop.f32.mrf.mxu0
        %v2661 = vadd.f32 0.0, %v2660
        %v2662 = vpop.f32.mrf.mxu0
        %v2663 = vpop.f32.mrf.mxu0
        %v2664 = vadd.f32 0.0, %v2663
        %v2665 = vpop.f32.mrf.mxu0
        %2666 = vmatprep.mubr.bf16.mxu0 0
        %2667 = vmatmul.mubr.bf16.gmra.mxu0 %v2577
        %v2668 = vpop.f32.mrf.mxu0
        %v2669 = vadd.f32 0.0, %v2668
        %v2670 = vpop.f32.mrf.mxu0
        %v2671 = vpop.f32.mrf.mxu0
        %v2672 = vadd.f32 0.0, %v2671
        %v2673 = vpop.f32.mrf.mxu0
        %2674 = vmatprep.mubr.bf16.mxu0 0
        %2675 = vmatmul.mubr.bf16.gmra.mxu0 %v2580
        %v2676 = vpop.f32.mrf.mxu0
        %v2677 = vadd.f32 0.0, %v2676
        %v2678 = vpop.f32.mrf.mxu0
        %v2679 = vpop.f32.mrf.mxu0
        %v2680 = vadd.f32 0.0, %v2679
        %v2681 = vpop.f32.mrf.mxu0
        %2682 = vmatprep.mubr.bf16.mxu0 0
        %2683 = vmatmul.mubr.bf16.gmra.mxu0 %v2583
        %v2684 = vpop.f32.mrf.mxu0
        %v2685 = vadd.f32 0.0, %v2684
        %v2686 = vpop.f32.mrf.mxu0
        %v2687 = vpop.f32.mrf.mxu0
        %v2688 = vadd.f32 0.0, %v2687
        %v2689 = vpop.f32.mrf.mxu0
        %2690 = vmatprep.mubr.bf16.mxu0 0
        %2691 = vmatmul.mubr.bf16.gmra.mxu0 %v2586
        %v2692 = vpop.f32.mrf.mxu0
        %v2693 = vadd.f32 0.0, %v2692
        %v2694 = vpop.f32.mrf.mxu0
        %v2695 = vpop.f32.mrf.mxu0
        %v2696 = vadd.f32 0.0, %v2695
        %v2697 = vpop.f32.mrf.mxu0
        %2698 = vmatprep.mubr.bf16.mxu0 0
        %2699 = vmatmul.mubr.bf16.gmra.mxu0 %v2589
        %v2700 = vpop.f32.mrf.mxu0
        %v2701 = vadd.f32 0.0, %v2700
        %v2702 = vpop.f32.mrf.mxu0
        %v2703 = vpop.f32.mrf.mxu0
        %v2704 = vadd.f32 0.0, %v2703
        %v2705 = vpop.f32.mrf.mxu0
        %2706 = vmatprep.mubr.bf16.mxu0 0
        %2707 = vmatmul.mubr.bf16.gmra.mxu0 %v2592
        %v2708 = vpop.f32.mrf.mxu0
        %v2709 = vadd.f32 0.0, %v2708
        %v2710 = vpop.f32.mrf.mxu0
        %v2711 = vpop.f32.mrf.mxu0
        %v2712 = vadd.f32 0.0, %v2711
        %v2713 = vpop.f32.mrf.mxu0
        %2714 = vmatprep.mubr.bf16.mxu0 0
        %2715 = vmatmul.mubr.bf16.gmra.mxu0 %v2595
        %v2716 = vpop.f32.mrf.mxu0
        %v2717 = vadd.f32 0.0, %v2716
        %v2718 = vpop.f32.mrf.mxu0
        %v2719 = vpop.f32.mrf.mxu0
        %v2720 = vadd.f32 0.0, %v2719
        %v2721 = vpop.f32.mrf.mxu0
        %2722 = vmatprep.mubr.bf16.mxu0 0
        %2723 = vmatmul.mubr.bf16.gmra.mxu0 %v2598
        %v2724 = vpop.f32.mrf.mxu0
        %v2725 = vadd.f32 0.0, %v2724
        %v2726 = vpop.f32.mrf.mxu0
        %v2727 = vpop.f32.mrf.mxu0
        %v2728 = vadd.f32 0.0, %v2727
        %v2729 = vpop.f32.mrf.mxu0
        %2730 = vmatprep.mubr.bf16.mxu0 0
        %2731 = vmatmul.mubr.bf16.gmra.mxu0 %v2601
        %v2732 = vpop.f32.mrf.mxu0
        %v2733 = vadd.f32 0.0, %v2732
        %v2734 = vpop.f32.mrf.mxu0
        %v2735 = vpop.f32.mrf.mxu0
        %v2736 = vadd.f32 0.0, %v2735
        %v2737 = vpop.f32.mrf.mxu0
        %2738 = vmatprep.mubr.bf16.mxu0 0
        %2739 = vmatmul.mubr.bf16.gmra.mxu0 %v2604
        %v2740 = vpop.f32.mrf.mxu0
        %v2741 = vadd.f32 0.0, %v2740
        %v2742 = vpop.f32.mrf.mxu0
        %v2743 = vpop.f32.mrf.mxu0
        %v2744 = vadd.f32 0.0, %v2743
        %v2745 = vpop.f32.mrf.mxu0
        %2746 = vmatprep.mubr.bf16.mxu0 0
        %2747 = vmatmul.mubr.bf16.gmra.mxu0 %v2607
        %v2748 = vpop.f32.mrf.mxu0
        %v2749 = vadd.f32 0.0, %v2748
        %v2750 = vpop.f32.mrf.mxu0
        %v2751 = vpop.f32.mrf.mxu0
        %v2752 = vadd.f32 0.0, %v2751
        %v2753 = vpop.f32.mrf.mxu0
        %2754 = vmatprep.mubr.bf16.mxu0 0
        %2755 = vmatmul.mubr.bf16.gmra.mxu0 %v2610
        %v2756 = vpop.f32.mrf.mxu0
        %v2757 = vadd.f32 0.0, %v2756
        %v2758 = vpop.f32.mrf.mxu0
        %v2759 = vpop.f32.mrf.mxu0
        %v2760 = vadd.f32 0.0, %v2759
        %v2761 = vpop.f32.mrf.mxu0
        %2762 = vmatprep.mubr.bf16.mxu0 0
        %2763 = vmatmul.mubr.bf16.gmra.mxu0 %v2613
        %v2764 = vpop.f32.mrf.mxu0
        %v2765 = vadd.f32 0.0, %v2764
        %v2766 = vpop.f32.mrf.mxu0
        %v2767 = vpop.f32.mrf.mxu0
        %v2768 = vadd.f32 0.0, %v2767
        %v2769 = vpop.f32.mrf.mxu0
        %2770 = vmatprep.mubr.bf16.mxu0 0
        %2771 = vmatmul.mubr.bf16.gmra.mxu0 %v2616
        %v2772 = vpop.f32.mrf.mxu0
        %v2773 = vadd.f32 0.0, %v2772
        %v2774 = vpop.f32.mrf.mxu0
        %v2775 = vpop.f32.mrf.mxu0
        %v2776 = vadd.f32 0.0, %v2775
        %v2777 = vpop.f32.mrf.mxu0
        %2778 = vdwg.mxu0
        %v2779 = vadd.f32 %v2480, %v2653
        %v2780 = vadd.f32 %v2481, %v2656
        %v2781 = vadd.f32 %v2482, %v2661
        %v2782 = vadd.f32 %v2483, %v2664
        %v2783 = vadd.f32 %v2484, %v2669
        %v2784 = vadd.f32 %v2485, %v2672
        %v2785 = vadd.f32 %v2486, %v2677
        %v2786 = vadd.f32 %v2487, %v2680
        %v2787 = vadd.f32 %v2488, %v2685
        %v2788 = vadd.f32 %v2489, %v2688
        %v2789 = vadd.f32 %v2490, %v2693
        %v2790 = vadd.f32 %v2491, %v2696
        %v2791 = vadd.f32 %v2492, %v2701
        %v2792 = vadd.f32 %v2493, %v2704
        %v2793 = vadd.f32 %v2494, %v2709
        %v2794 = vadd.f32 %v2495, %v2712
        %v2795 = vadd.f32 %v2496, %v2717
        %v2796 = vadd.f32 %v2497, %v2720
        %v2797 = vadd.f32 %v2498, %v2725
        %v2798 = vadd.f32 %v2499, %v2728
        %v2799 = vadd.f32 %v2500, %v2733
        %v2800 = vadd.f32 %v2501, %v2736
        %v2801 = vadd.f32 %v2502, %v2741
        %v2802 = vadd.f32 %v2503, %v2744
        %v2803 = vadd.f32 %v2504, %v2749
        %v2804 = vadd.f32 %v2505, %v2752
        %v2805 = vadd.f32 %v2506, %v2757
        %v2806 = vadd.f32 %v2507, %v2760
        %v2807 = vadd.f32 %v2508, %v2765
        %v2808 = vadd.f32 %v2509, %v2768
        %v2809 = vadd.f32 %v2510, %v2773
        %v2810 = vadd.f32 %v2511, %v2776
        %v2811 = vld [vmem:[%s2512 + $0x1] sm:$0xff]
        %v2812 = vld [vmem:[%s2512 + $0x9] sm:$0xff]
        %v2813 = vld [vmem:[%s2512 + $0x19] sm:$0xff]
        %v2814 = vld [vmem:[%s2512 + $0x21] sm:$0xff]
        %v2815 = vld [vmem:[%s2512 + $0x31] sm:$0xff]
        %v2816 = vld [vmem:[%s2512 + $0x39] sm:$0xff]
        %v2817 = vld [vmem:[%s2512 + $0x49] sm:$0xff]
        %v2818 = vld [vmem:[%s2512 + $0x51] sm:$0xff]
        %v2819 = vld [vmem:[%s2512 + $0x61] sm:$0xff]
        %v2820 = vld [vmem:[%s2512 + $0x69] sm:$0xff]
        %v2821 = vld [vmem:[%s2512 + $0x79] sm:$0xff]
        %v2822 = vld [vmem:[%s2512 + $0x81] sm:$0xff]
        %v2823 = vld [vmem:[%s2512 + $0x91] sm:$0xff]
        %v2824 = vld [vmem:[%s2512 + $0x99] sm:$0xff]
        %v2825 = vld [vmem:[%s2512 + $0xa9] sm:$0xff]
        %v2826 = vld [vmem:[%s2512 + $0xb1] sm:$0xff]
        %v2827 = vld [vmem:[%s2512 + $0xc1] sm:$0xff]
        %v2828 = vld [vmem:[%s2512 + $0xc9] sm:$0xff]
        %v2829 = vld [vmem:[%s2512 + $0xd9] sm:$0xff]
        %v2830 = vld [vmem:[%s2512 + $0xe1] sm:$0xff]
        %v2831 = vld [vmem:[%s2512 + $0xf1] sm:$0xff]
        %v2832 = vld [vmem:[%s2512 + $0xf9] sm:$0xff]
        %v2833 = vld [vmem:[%s2512 + $0x109] sm:$0xff]
        %v2834 = vld [vmem:[%s2512 + $0x111] sm:$0xff]
        %v2835 = vld [vmem:[%s2512 + $0x121] sm:$0xff]
        %v2836 = vld [vmem:[%s2512 + $0x129] sm:$0xff]
        %v2837 = vld [vmem:[%s2512 + $0x139] sm:$0xff]
        %v2838 = vld [vmem:[%s2512 + $0x141] sm:$0xff]
        %v2839 = vld [vmem:[%s2512 + $0x151] sm:$0xff]
        %v2840 = vld [vmem:[%s2512 + $0x159] sm:$0xff]
        %v2841 = vld [vmem:[%s2512 + $0x169] sm:$0xff]
        %v2842 = vld [vmem:[%s2512 + $0x171] sm:$0xff]
        %v2843 = vpack.c.bf16 %v2812, %v2811
        %v2844 = vpack.c.bf16 %v2814, %v2813
        %v2845 = vpack.c.bf16 %v2816, %v2815
        %v2846 = vpack.c.bf16 %v2818, %v2817
        %v2847 = vpack.c.bf16 %v2820, %v2819
        %v2848 = vpack.c.bf16 %v2822, %v2821
        %v2849 = vpack.c.bf16 %v2824, %v2823
        %v2850 = vpack.c.bf16 %v2826, %v2825
        %v2851 = vpack.c.bf16 %v2828, %v2827
        %v2852 = vpack.c.bf16 %v2830, %v2829
        %v2853 = vpack.c.bf16 %v2832, %v2831
        %v2854 = vpack.c.bf16 %v2834, %v2833
        %v2855 = vpack.c.bf16 %v2836, %v2835
        %v2856 = vpack.c.bf16 %v2838, %v2837
        %v2857 = vpack.c.bf16 %v2840, %v2839
        %v2858 = vpack.c.bf16 %v2842, %v2841
        %s2859 = scalar_lea.vmem %s2, 56
        %v2860 = vld [vmem:[%s2859] sm:$0xf]
        %v2861 = vld [vmem:[%s2859 + $0x4] sm:$0xf]
        %v2864 = vunpack.c.l.b16 %v2860
        %v2865 = vunpack.c.l.b16 %v2861
        %v2866 = vpack.c.b16 %v2865, %v2864
        %v2869 = vsel %vm332, %v2843, 0
        %v2872 = vsel %vm332, %v2844, 0
        %v2875 = vsel %vm332, %v2845, 0
        %v2878 = vsel %vm332, %v2846, 0
        %v2881 = vsel %vm332, %v2847, 0
        %v2884 = vsel %vm332, %v2848, 0
        %v2887 = vsel %vm332, %v2849, 0
        %v2890 = vsel %vm332, %v2850, 0
        %v2893 = vsel %vm332, %v2851, 0
        %v2896 = vsel %vm332, %v2852, 0
        %v2899 = vsel %vm332, %v2853, 0
        %v2902 = vsel %vm332, %v2854, 0
        %v2905 = vsel %vm332, %v2855, 0
        %v2908 = vsel %vm332, %v2856, 0
        %v2911 = vsel %vm332, %v2857, 0
        %v2914 = vsel %vm332, %v2858, 0
        %2916 = vmatprep.subr.bf16.mxu0 0
        %2917 = vmatpush1.bf16.msra.mxu0 0
        %2918 = vmatprep.subr.bf16.mxu0 0
        %2919 = vmatpush1.bf16.msra.mxu0 0
        %2920 = vmatprep.subr.bf16.mxu0 0
        %2921 = vmatpush1.bf16.msra.mxu0 0
        %2922 = vmatprep.subr.bf16.mxu0 0
        %2923 = vmatpush1.bf16.msra.mxu0 0
        %2924 = vmatprep.subr.bf16.mxu0 0
        %2925 = vmatpush1.bf16.msra.mxu0 0
        %2926 = vmatprep.subr.bf16.mxu0 0
        %2927 = vmatpush1.bf16.msra.mxu0 0
        %2928 = vmatprep.subr.bf16.mxu0 0
        %2929 = vmatpush1.bf16.msra.mxu0 0
        %2930 = vmatprep.subr.bf16.mxu0 0
        %2931 = vmatpush1.bf16.msra.mxu0 %v2866
        %2932 = vmatprep.subr.bf16.mxu0 0
        %2933 = vmatpush2.bf16.msra.mxu0 0
        %2934 = vmatprep.subr.bf16.mxu0 0
        %2935 = vmatpush2.bf16.msra.mxu0 0
        %2936 = vmatprep.subr.bf16.mxu0 0
        %2937 = vmatpush2.bf16.msra.mxu0 0
        %2938 = vmatprep.subr.bf16.mxu0 0
        %2939 = vmatpush2.bf16.msra.mxu0 0
        %2940 = vmatprep.subr.bf16.mxu0 0
        %2941 = vmatpush2.bf16.msra.mxu0 0
        %2942 = vmatprep.subr.bf16.mxu0 0
        %2943 = vmatpush2.bf16.msra.mxu0 0
        %2944 = vmatprep.subr.bf16.mxu0 0
        %2945 = vmatpush2.bf16.msra.mxu0 0
        %2946 = vmatprep.subr.bf16.mxu0 0
        %2947 = vmatpush2.bf16.msra.mxu0 0
        %2948 = vmatprep.mubr.bf16.mxu0 0
        %2949 = vmatmul.mubr.bf16.gmra.mxu0 %v2869
        %v2950 = vpop.f32.mrf.mxu0
        %v2951 = vadd.f32 0.0, %v2950
        %v2952 = vpop.f32.mrf.mxu0
        %v2953 = vpop.f32.mrf.mxu0
        %v2954 = vadd.f32 0.0, %v2953
        %v2955 = vpop.f32.mrf.mxu0
        %2956 = vmatprep.mubr.bf16.mxu0 0
        %2957 = vmatmul.mubr.bf16.gmra.mxu0 %v2872
        %v2958 = vpop.f32.mrf.mxu0
        %v2959 = vadd.f32 0.0, %v2958
        %v2960 = vpop.f32.mrf.mxu0
        %v2961 = vpop.f32.mrf.mxu0
        %v2962 = vadd.f32 0.0, %v2961
        %v2963 = vpop.f32.mrf.mxu0
        %2964 = vmatprep.mubr.bf16.mxu0 0
        %2965 = vmatmul.mubr.bf16.gmra.mxu0 %v2875
        %v2966 = vpop.f32.mrf.mxu0
        %v2967 = vadd.f32 0.0, %v2966
        %v2968 = vpop.f32.mrf.mxu0
        %v2969 = vpop.f32.mrf.mxu0
        %v2970 = vadd.f32 0.0, %v2969
        %v2971 = vpop.f32.mrf.mxu0
        %2972 = vmatprep.mubr.bf16.mxu0 0
        %2973 = vmatmul.mubr.bf16.gmra.mxu0 %v2878
        %v2974 = vpop.f32.mrf.mxu0
        %v2975 = vadd.f32 0.0, %v2974
        %v2976 = vpop.f32.mrf.mxu0
        %v2977 = vpop.f32.mrf.mxu0
        %v2978 = vadd.f32 0.0, %v2977
        %v2979 = vpop.f32.mrf.mxu0
        %2980 = vmatprep.mubr.bf16.mxu0 0
        %2981 = vmatmul.mubr.bf16.gmra.mxu0 %v2881
        %v2982 = vpop.f32.mrf.mxu0
        %v2983 = vadd.f32 0.0, %v2982
        %v2984 = vpop.f32.mrf.mxu0
        %v2985 = vpop.f32.mrf.mxu0
        %v2986 = vadd.f32 0.0, %v2985
        %v2987 = vpop.f32.mrf.mxu0
        %2988 = vmatprep.mubr.bf16.mxu0 0
        %2989 = vmatmul.mubr.bf16.gmra.mxu0 %v2884
        %v2990 = vpop.f32.mrf.mxu0
        %v2991 = vadd.f32 0.0, %v2990
        %v2992 = vpop.f32.mrf.mxu0
        %v2993 = vpop.f32.mrf.mxu0
        %v2994 = vadd.f32 0.0, %v2993
        %v2995 = vpop.f32.mrf.mxu0
        %2996 = vmatprep.mubr.bf16.mxu0 0
        %2997 = vmatmul.mubr.bf16.gmra.mxu0 %v2887
        %v2998 = vpop.f32.mrf.mxu0
        %v2999 = vadd.f32 0.0, %v2998
        %v3000 = vpop.f32.mrf.mxu0
        %v3001 = vpop.f32.mrf.mxu0
        %v3002 = vadd.f32 0.0, %v3001
        %v3003 = vpop.f32.mrf.mxu0
        %3004 = vmatprep.mubr.bf16.mxu0 0
        %3005 = vmatmul.mubr.bf16.gmra.mxu0 %v2890
        %v3006 = vpop.f32.mrf.mxu0
        %v3007 = vadd.f32 0.0, %v3006
        %v3008 = vpop.f32.mrf.mxu0
        %v3009 = vpop.f32.mrf.mxu0
        %v3010 = vadd.f32 0.0, %v3009
        %v3011 = vpop.f32.mrf.mxu0
        %3012 = vmatprep.mubr.bf16.mxu0 0
        %3013 = vmatmul.mubr.bf16.gmra.mxu0 %v2893
        %v3014 = vpop.f32.mrf.mxu0
        %v3015 = vadd.f32 0.0, %v3014
        %v3016 = vpop.f32.mrf.mxu0
        %v3017 = vpop.f32.mrf.mxu0
        %v3018 = vadd.f32 0.0, %v3017
        %v3019 = vpop.f32.mrf.mxu0
        %3020 = vmatprep.mubr.bf16.mxu0 0
        %3021 = vmatmul.mubr.bf16.gmra.mxu0 %v2896
        %v3022 = vpop.f32.mrf.mxu0
        %v3023 = vadd.f32 0.0, %v3022
        %v3024 = vpop.f32.mrf.mxu0
        %v3025 = vpop.f32.mrf.mxu0
        %v3026 = vadd.f32 0.0, %v3025
        %v3027 = vpop.f32.mrf.mxu0
        %3028 = vmatprep.mubr.bf16.mxu0 0
        %3029 = vmatmul.mubr.bf16.gmra.mxu0 %v2899
        %v3030 = vpop.f32.mrf.mxu0
        %v3031 = vadd.f32 0.0, %v3030
        %v3032 = vpop.f32.mrf.mxu0
        %v3033 = vpop.f32.mrf.mxu0
        %v3034 = vadd.f32 0.0, %v3033
        %v3035 = vpop.f32.mrf.mxu0
        %3036 = vmatprep.mubr.bf16.mxu0 0
        %3037 = vmatmul.mubr.bf16.gmra.mxu0 %v2902
        %v3038 = vpop.f32.mrf.mxu0
        %v3039 = vadd.f32 0.0, %v3038
        %v3040 = vpop.f32.mrf.mxu0
        %v3041 = vpop.f32.mrf.mxu0
        %v3042 = vadd.f32 0.0, %v3041
        %v3043 = vpop.f32.mrf.mxu0
        %3044 = vmatprep.mubr.bf16.mxu0 0
        %3045 = vmatmul.mubr.bf16.gmra.mxu0 %v2905
        %v3046 = vpop.f32.mrf.mxu0
        %v3047 = vadd.f32 0.0, %v3046
        %v3048 = vpop.f32.mrf.mxu0
        %v3049 = vpop.f32.mrf.mxu0
        %v3050 = vadd.f32 0.0, %v3049
        %v3051 = vpop.f32.mrf.mxu0
        %3052 = vmatprep.mubr.bf16.mxu0 0
        %3053 = vmatmul.mubr.bf16.gmra.mxu0 %v2908
        %v3054 = vpop.f32.mrf.mxu0
        %v3055 = vadd.f32 0.0, %v3054
        %v3056 = vpop.f32.mrf.mxu0
        %v3057 = vpop.f32.mrf.mxu0
        %v3058 = vadd.f32 0.0, %v3057
        %v3059 = vpop.f32.mrf.mxu0
        %3060 = vmatprep.mubr.bf16.mxu0 0
        %3061 = vmatmul.mubr.bf16.gmra.mxu0 %v2911
        %v3062 = vpop.f32.mrf.mxu0
        %v3063 = vadd.f32 0.0, %v3062
        %v3064 = vpop.f32.mrf.mxu0
        %v3065 = vpop.f32.mrf.mxu0
        %v3066 = vadd.f32 0.0, %v3065
        %v3067 = vpop.f32.mrf.mxu0
        %3068 = vmatprep.mubr.bf16.mxu0 0
        %3069 = vmatmul.mubr.bf16.gmra.mxu0 %v2914
        %v3070 = vpop.f32.mrf.mxu0
        %v3071 = vadd.f32 0.0, %v3070
        %v3072 = vpop.f32.mrf.mxu0
        %v3073 = vpop.f32.mrf.mxu0
        %v3074 = vadd.f32 0.0, %v3073
        %v3075 = vpop.f32.mrf.mxu0
        %3076 = vdwg.mxu0
        %v3077 = vadd.f32 %v2779, %v2951
        %v3078 = vadd.f32 %v2780, %v2954
        %v3079 = vadd.f32 %v2781, %v2959
        %v3080 = vadd.f32 %v2782, %v2962
        %v3081 = vadd.f32 %v2783, %v2967
        %v3082 = vadd.f32 %v2784, %v2970
        %v3083 = vadd.f32 %v2785, %v2975
        %v3084 = vadd.f32 %v2786, %v2978
        %v3085 = vadd.f32 %v2787, %v2983
        %v3086 = vadd.f32 %v2788, %v2986
        %v3087 = vadd.f32 %v2789, %v2991
        %v3088 = vadd.f32 %v2790, %v2994
        %v3089 = vadd.f32 %v2791, %v2999
        %v3090 = vadd.f32 %v2792, %v3002
        %v3091 = vadd.f32 %v2793, %v3007
        %v3092 = vadd.f32 %v2794, %v3010
        %v3093 = vadd.f32 %v2795, %v3015
        %v3094 = vadd.f32 %v2796, %v3018
        %v3095 = vadd.f32 %v2797, %v3023
        %v3096 = vadd.f32 %v2798, %v3026
        %v3097 = vadd.f32 %v2799, %v3031
        %v3098 = vadd.f32 %v2800, %v3034
        %v3099 = vadd.f32 %v2801, %v3039
        %v3100 = vadd.f32 %v2802, %v3042
        %v3101 = vadd.f32 %v2803, %v3047
        %v3102 = vadd.f32 %v2804, %v3050
        %v3103 = vadd.f32 %v2805, %v3055
        %v3104 = vadd.f32 %v2806, %v3058
        %v3105 = vadd.f32 %v2807, %v3063
        %v3106 = vadd.f32 %v2808, %v3066
        %v3107 = vadd.f32 %v2809, %v3071
        %v3108 = vadd.f32 %v2810, %v3074
        %v3109 = vld [vmem:[%s2512 + $0x2] sm:$0xff]
        %v3110 = vld [vmem:[%s2512 + $0xa] sm:$0xff]
        %v3111 = vld [vmem:[%s2512 + $0x1a] sm:$0xff]
        %v3112 = vld [vmem:[%s2512 + $0x22] sm:$0xff]
        %v3113 = vld [vmem:[%s2512 + $0x32] sm:$0xff]
        %v3114 = vld [vmem:[%s2512 + $0x3a] sm:$0xff]
        %v3115 = vld [vmem:[%s2512 + $0x4a] sm:$0xff]
        %v3116 = vld [vmem:[%s2512 + $0x52] sm:$0xff]
        %v3117 = vld [vmem:[%s2512 + $0x62] sm:$0xff]
        %v3118 = vld [vmem:[%s2512 + $0x6a] sm:$0xff]
        %v3119 = vld [vmem:[%s2512 + $0x7a] sm:$0xff]
        %v3120 = vld [vmem:[%s2512 + $0x82] sm:$0xff]
        %v3121 = vld [vmem:[%s2512 + $0x92] sm:$0xff]
        %v3122 = vld [vmem:[%s2512 + $0x9a] sm:$0xff]
        %v3123 = vld [vmem:[%s2512 + $0xaa] sm:$0xff]
        %v3124 = vld [vmem:[%s2512 + $0xb2] sm:$0xff]
        %v3125 = vld [vmem:[%s2512 + $0xc2] sm:$0xff]
        %v3126 = vld [vmem:[%s2512 + $0xca] sm:$0xff]
        %v3127 = vld [vmem:[%s2512 + $0xda] sm:$0xff]
        %v3128 = vld [vmem:[%s2512 + $0xe2] sm:$0xff]
        %v3129 = vld [vmem:[%s2512 + $0xf2] sm:$0xff]
        %v3130 = vld [vmem:[%s2512 + $0xfa] sm:$0xff]
        %v3131 = vld [vmem:[%s2512 + $0x10a] sm:$0xff]
        %v3132 = vld [vmem:[%s2512 + $0x112] sm:$0xff]
        %v3133 = vld [vmem:[%s2512 + $0x122] sm:$0xff]
        %v3134 = vld [vmem:[%s2512 + $0x12a] sm:$0xff]
        %v3135 = vld [vmem:[%s2512 + $0x13a] sm:$0xff]
        %v3136 = vld [vmem:[%s2512 + $0x142] sm:$0xff]
        %v3137 = vld [vmem:[%s2512 + $0x152] sm:$0xff]
        %v3138 = vld [vmem:[%s2512 + $0x15a] sm:$0xff]
        %v3139 = vld [vmem:[%s2512 + $0x16a] sm:$0xff]
        %v3140 = vld [vmem:[%s2512 + $0x172] sm:$0xff]
        %v3141 = vpack.c.bf16 %v3110, %v3109
        %v3142 = vpack.c.bf16 %v3112, %v3111
        %v3143 = vpack.c.bf16 %v3114, %v3113
        %v3144 = vpack.c.bf16 %v3116, %v3115
        %v3145 = vpack.c.bf16 %v3118, %v3117
        %v3146 = vpack.c.bf16 %v3120, %v3119
        %v3147 = vpack.c.bf16 %v3122, %v3121
        %v3148 = vpack.c.bf16 %v3124, %v3123
        %v3149 = vpack.c.bf16 %v3126, %v3125
        %v3150 = vpack.c.bf16 %v3128, %v3127
        %v3151 = vpack.c.bf16 %v3130, %v3129
        %v3152 = vpack.c.bf16 %v3132, %v3131
        %v3153 = vpack.c.bf16 %v3134, %v3133
        %v3154 = vpack.c.bf16 %v3136, %v3135
        %v3155 = vpack.c.bf16 %v3138, %v3137
        %v3156 = vpack.c.bf16 %v3140, %v3139
        %s3157 = scalar_lea.vmem %s2, 64
        %v3158 = vld [vmem:[%s3157] sm:$0xf]
        %v3159 = vld [vmem:[%s3157 + $0x4] sm:$0xf]
        %v3162 = vunpack.c.l.b16 %v3158
        %v3163 = vunpack.c.l.b16 %v3159
        %v3164 = vpack.c.b16 %v3163, %v3162
        %v3167 = vsel %vm332, %v3141, 0
        %v3170 = vsel %vm332, %v3142, 0
        %v3173 = vsel %vm332, %v3143, 0
        %v3176 = vsel %vm332, %v3144, 0
        %v3179 = vsel %vm332, %v3145, 0
        %v3182 = vsel %vm332, %v3146, 0
        %v3185 = vsel %vm332, %v3147, 0
        %v3188 = vsel %vm332, %v3148, 0
        %v3191 = vsel %vm332, %v3149, 0
        %v3194 = vsel %vm332, %v3150, 0
        %v3197 = vsel %vm332, %v3151, 0
        %v3200 = vsel %vm332, %v3152, 0
        %v3203 = vsel %vm332, %v3153, 0
        %v3206 = vsel %vm332, %v3154, 0
        %v3209 = vsel %vm332, %v3155, 0
        %v3212 = vsel %vm332, %v3156, 0
        %3214 = vmatprep.subr.bf16.mxu0 0
        %3215 = vmatpush1.bf16.msra.mxu0 0
        %3216 = vmatprep.subr.bf16.mxu0 0
        %3217 = vmatpush1.bf16.msra.mxu0 0
        %3218 = vmatprep.subr.bf16.mxu0 0
        %3219 = vmatpush1.bf16.msra.mxu0 0
        %3220 = vmatprep.subr.bf16.mxu0 0
        %3221 = vmatpush1.bf16.msra.mxu0 0
        %3222 = vmatprep.subr.bf16.mxu0 0
        %3223 = vmatpush1.bf16.msra.mxu0 0
        %3224 = vmatprep.subr.bf16.mxu0 0
        %3225 = vmatpush1.bf16.msra.mxu0 0
        %3226 = vmatprep.subr.bf16.mxu0 0
        %3227 = vmatpush1.bf16.msra.mxu0 0
        %3228 = vmatprep.subr.bf16.mxu0 0
        %3229 = vmatpush1.bf16.msra.mxu0 %v3164
        %3230 = vmatprep.subr.bf16.mxu0 0
        %3231 = vmatpush2.bf16.msra.mxu0 0
        %3232 = vmatprep.subr.bf16.mxu0 0
        %3233 = vmatpush2.bf16.msra.mxu0 0
        %3234 = vmatprep.subr.bf16.mxu0 0
        %3235 = vmatpush2.bf16.msra.mxu0 0
        %3236 = vmatprep.subr.bf16.mxu0 0
        %3237 = vmatpush2.bf16.msra.mxu0 0
        %3238 = vmatprep.subr.bf16.mxu0 0
        %3239 = vmatpush2.bf16.msra.mxu0 0
        %3240 = vmatprep.subr.bf16.mxu0 0
        %3241 = vmatpush2.bf16.msra.mxu0 0
        %3242 = vmatprep.subr.bf16.mxu0 0
        %3243 = vmatpush2.bf16.msra.mxu0 0
        %3244 = vmatprep.subr.bf16.mxu0 0
        %3245 = vmatpush2.bf16.msra.mxu0 0
        %3246 = vmatprep.mubr.bf16.mxu0 0
        %3247 = vmatmul.mubr.bf16.gmra.mxu0 %v3167
        %v3248 = vpop.f32.mrf.mxu0
        %v3249 = vadd.f32 0.0, %v3248
        %v3250 = vpop.f32.mrf.mxu0
        %v3251 = vpop.f32.mrf.mxu0
        %v3252 = vadd.f32 0.0, %v3251
        %v3253 = vpop.f32.mrf.mxu0
        %3254 = vmatprep.mubr.bf16.mxu0 0
        %3255 = vmatmul.mubr.bf16.gmra.mxu0 %v3170
        %v3256 = vpop.f32.mrf.mxu0
        %v3257 = vadd.f32 0.0, %v3256
        %v3258 = vpop.f32.mrf.mxu0
        %v3259 = vpop.f32.mrf.mxu0
        %v3260 = vadd.f32 0.0, %v3259
        %v3261 = vpop.f32.mrf.mxu0
        %3262 = vmatprep.mubr.bf16.mxu0 0
        %3263 = vmatmul.mubr.bf16.gmra.mxu0 %v3173
        %v3264 = vpop.f32.mrf.mxu0
        %v3265 = vadd.f32 0.0, %v3264
        %v3266 = vpop.f32.mrf.mxu0
        %v3267 = vpop.f32.mrf.mxu0
        %v3268 = vadd.f32 0.0, %v3267
        %v3269 = vpop.f32.mrf.mxu0
        %3270 = vmatprep.mubr.bf16.mxu0 0
        %3271 = vmatmul.mubr.bf16.gmra.mxu0 %v3176
        %v3272 = vpop.f32.mrf.mxu0
        %v3273 = vadd.f32 0.0, %v3272
        %v3274 = vpop.f32.mrf.mxu0
        %v3275 = vpop.f32.mrf.mxu0
        %v3276 = vadd.f32 0.0, %v3275
        %v3277 = vpop.f32.mrf.mxu0
        %3278 = vmatprep.mubr.bf16.mxu0 0
        %3279 = vmatmul.mubr.bf16.gmra.mxu0 %v3179
        %v3280 = vpop.f32.mrf.mxu0
        %v3281 = vadd.f32 0.0, %v3280
        %v3282 = vpop.f32.mrf.mxu0
        %v3283 = vpop.f32.mrf.mxu0
        %v3284 = vadd.f32 0.0, %v3283
        %v3285 = vpop.f32.mrf.mxu0
        %3286 = vmatprep.mubr.bf16.mxu0 0
        %3287 = vmatmul.mubr.bf16.gmra.mxu0 %v3182
        %v3288 = vpop.f32.mrf.mxu0
        %v3289 = vadd.f32 0.0, %v3288
        %v3290 = vpop.f32.mrf.mxu0
        %v3291 = vpop.f32.mrf.mxu0
        %v3292 = vadd.f32 0.0, %v3291
        %v3293 = vpop.f32.mrf.mxu0
        %3294 = vmatprep.mubr.bf16.mxu0 0
        %3295 = vmatmul.mubr.bf16.gmra.mxu0 %v3185
        %v3296 = vpop.f32.mrf.mxu0
        %v3297 = vadd.f32 0.0, %v3296
        %v3298 = vpop.f32.mrf.mxu0
        %v3299 = vpop.f32.mrf.mxu0
        %v3300 = vadd.f32 0.0, %v3299
        %v3301 = vpop.f32.mrf.mxu0
        %3302 = vmatprep.mubr.bf16.mxu0 0
        %3303 = vmatmul.mubr.bf16.gmra.mxu0 %v3188
        %v3304 = vpop.f32.mrf.mxu0
        %v3305 = vadd.f32 0.0, %v3304
        %v3306 = vpop.f32.mrf.mxu0
        %v3307 = vpop.f32.mrf.mxu0
        %v3308 = vadd.f32 0.0, %v3307
        %v3309 = vpop.f32.mrf.mxu0
        %3310 = vmatprep.mubr.bf16.mxu0 0
        %3311 = vmatmul.mubr.bf16.gmra.mxu0 %v3191
        %v3312 = vpop.f32.mrf.mxu0
        %v3313 = vadd.f32 0.0, %v3312
        %v3314 = vpop.f32.mrf.mxu0
        %v3315 = vpop.f32.mrf.mxu0
        %v3316 = vadd.f32 0.0, %v3315
        %v3317 = vpop.f32.mrf.mxu0
        %3318 = vmatprep.mubr.bf16.mxu0 0
        %3319 = vmatmul.mubr.bf16.gmra.mxu0 %v3194
        %v3320 = vpop.f32.mrf.mxu0
        %v3321 = vadd.f32 0.0, %v3320
        %v3322 = vpop.f32.mrf.mxu0
        %v3323 = vpop.f32.mrf.mxu0
        %v3324 = vadd.f32 0.0, %v3323
        %v3325 = vpop.f32.mrf.mxu0
        %3326 = vmatprep.mubr.bf16.mxu0 0
        %3327 = vmatmul.mubr.bf16.gmra.mxu0 %v3197
        %v3328 = vpop.f32.mrf.mxu0
        %v3329 = vadd.f32 0.0, %v3328
        %v3330 = vpop.f32.mrf.mxu0
        %v3331 = vpop.f32.mrf.mxu0
        %v3332 = vadd.f32 0.0, %v3331
        %v3333 = vpop.f32.mrf.mxu0
        %3334 = vmatprep.mubr.bf16.mxu0 0
        %3335 = vmatmul.mubr.bf16.gmra.mxu0 %v3200
        %v3336 = vpop.f32.mrf.mxu0
        %v3337 = vadd.f32 0.0, %v3336
        %v3338 = vpop.f32.mrf.mxu0
        %v3339 = vpop.f32.mrf.mxu0
        %v3340 = vadd.f32 0.0, %v3339
        %v3341 = vpop.f32.mrf.mxu0
        %3342 = vmatprep.mubr.bf16.mxu0 0
        %3343 = vmatmul.mubr.bf16.gmra.mxu0 %v3203
        %v3344 = vpop.f32.mrf.mxu0
        %v3345 = vadd.f32 0.0, %v3344
        %v3346 = vpop.f32.mrf.mxu0
        %v3347 = vpop.f32.mrf.mxu0
        %v3348 = vadd.f32 0.0, %v3347
        %v3349 = vpop.f32.mrf.mxu0
        %3350 = vmatprep.mubr.bf16.mxu0 0
        %3351 = vmatmul.mubr.bf16.gmra.mxu0 %v3206
        %v3352 = vpop.f32.mrf.mxu0
        %v3353 = vadd.f32 0.0, %v3352
        %v3354 = vpop.f32.mrf.mxu0
        %v3355 = vpop.f32.mrf.mxu0
        %v3356 = vadd.f32 0.0, %v3355
        %v3357 = vpop.f32.mrf.mxu0
        %3358 = vmatprep.mubr.bf16.mxu0 0
        %3359 = vmatmul.mubr.bf16.gmra.mxu0 %v3209
        %v3360 = vpop.f32.mrf.mxu0
        %v3361 = vadd.f32 0.0, %v3360
        %v3362 = vpop.f32.mrf.mxu0
        %v3363 = vpop.f32.mrf.mxu0
        %v3364 = vadd.f32 0.0, %v3363
        %v3365 = vpop.f32.mrf.mxu0
        %3366 = vmatprep.mubr.bf16.mxu0 0
        %3367 = vmatmul.mubr.bf16.gmra.mxu0 %v3212
        %v3368 = vpop.f32.mrf.mxu0
        %v3369 = vadd.f32 0.0, %v3368
        %v3370 = vpop.f32.mrf.mxu0
        %v3371 = vpop.f32.mrf.mxu0
        %v3372 = vadd.f32 0.0, %v3371
        %v3373 = vpop.f32.mrf.mxu0
        %3374 = vdwg.mxu0
        %v3375 = vadd.f32 %v3077, %v3249
        %v3376 = vadd.f32 %v3078, %v3252
        %v3377 = vadd.f32 %v3079, %v3257
        %v3378 = vadd.f32 %v3080, %v3260
        %v3379 = vadd.f32 %v3081, %v3265
        %v3380 = vadd.f32 %v3082, %v3268
        %v3381 = vadd.f32 %v3083, %v3273
        %v3382 = vadd.f32 %v3084, %v3276
        %v3383 = vadd.f32 %v3085, %v3281
        %v3384 = vadd.f32 %v3086, %v3284
        %v3385 = vadd.f32 %v3087, %v3289
        %v3386 = vadd.f32 %v3088, %v3292
        %v3387 = vadd.f32 %v3089, %v3297
        %v3388 = vadd.f32 %v3090, %v3300
        %v3389 = vadd.f32 %v3091, %v3305
        %v3390 = vadd.f32 %v3092, %v3308
        %v3391 = vadd.f32 %v3093, %v3313
        %v3392 = vadd.f32 %v3094, %v3316
        %v3393 = vadd.f32 %v3095, %v3321
        %v3394 = vadd.f32 %v3096, %v3324
        %v3395 = vadd.f32 %v3097, %v3329
        %v3396 = vadd.f32 %v3098, %v3332
        %v3397 = vadd.f32 %v3099, %v3337
        %v3398 = vadd.f32 %v3100, %v3340
        %v3399 = vadd.f32 %v3101, %v3345
        %v3400 = vadd.f32 %v3102, %v3348
        %v3401 = vadd.f32 %v3103, %v3353
        %v3402 = vadd.f32 %v3104, %v3356
        %v3403 = vadd.f32 %v3105, %v3361
        %v3404 = vadd.f32 %v3106, %v3364
        %v3405 = vadd.f32 %v3107, %v3369
        %v3406 = vadd.f32 %v3108, %v3372
        %v3407 = vld [vmem:[%s4] sm:$0x1]
        %v3409 = vlaneseq
        %v3410 = vshrl.u32 %v3409, 7
        %v3411 = vsub.s32 0, %v3410
        %v3412 = vrot.slane %v3407, %v3411
        %v3414 = vadd.f32 %v3375, %v3412
        %v3415 = vadd.f32 %v3376, %v3412
        %v3416 = vadd.f32 %v3377, %v3412
        %v3417 = vadd.f32 %v3378, %v3412
        %v3418 = vadd.f32 %v3379, %v3412
        %v3419 = vadd.f32 %v3380, %v3412
        %v3420 = vadd.f32 %v3381, %v3412
        %v3421 = vadd.f32 %v3382, %v3412
        %v3422 = vadd.f32 %v3383, %v3412
        %v3423 = vadd.f32 %v3384, %v3412
        %v3424 = vadd.f32 %v3385, %v3412
        %v3425 = vadd.f32 %v3386, %v3412
        %v3426 = vadd.f32 %v3387, %v3412
        %v3427 = vadd.f32 %v3388, %v3412
        %v3428 = vadd.f32 %v3389, %v3412
        %v3429 = vadd.f32 %v3390, %v3412
        %v3430 = vadd.f32 %v3391, %v3412
        %v3431 = vadd.f32 %v3392, %v3412
        %v3432 = vadd.f32 %v3393, %v3412
        %v3433 = vadd.f32 %v3394, %v3412
        %v3434 = vadd.f32 %v3395, %v3412
        %v3435 = vadd.f32 %v3396, %v3412
        %v3436 = vadd.f32 %v3397, %v3412
        %v3437 = vadd.f32 %v3398, %v3412
        %v3438 = vadd.f32 %v3399, %v3412
        %v3439 = vadd.f32 %v3400, %v3412
        %v3440 = vadd.f32 %v3401, %v3412
        %v3441 = vadd.f32 %v3402, %v3412
        %v3442 = vadd.f32 %v3403, %v3412
        %v3443 = vadd.f32 %v3404, %v3412
        %v3444 = vadd.f32 %v3405, %v3412
        %v3445 = vadd.f32 %v3406, %v3412
        %vm3446 = vcmp.gt.f32.partialorder %v3414, 0.0
        %vm3447 = vcmp.gt.f32.partialorder %v3415, 0.0
        %vm3448 = vcmp.gt.f32.partialorder %v3416, 0.0
        %vm3449 = vcmp.gt.f32.partialorder %v3417, 0.0
        %vm3450 = vcmp.gt.f32.partialorder %v3418, 0.0
        %vm3451 = vcmp.gt.f32.partialorder %v3419, 0.0
        %vm3452 = vcmp.gt.f32.partialorder %v3420, 0.0
        %vm3453 = vcmp.gt.f32.partialorder %v3421, 0.0
        %vm3454 = vcmp.gt.f32.partialorder %v3422, 0.0
        %vm3455 = vcmp.gt.f32.partialorder %v3423, 0.0
        %vm3456 = vcmp.gt.f32.partialorder %v3424, 0.0
        %vm3457 = vcmp.gt.f32.partialorder %v3425, 0.0
        %vm3458 = vcmp.gt.f32.partialorder %v3426, 0.0
        %vm3459 = vcmp.gt.f32.partialorder %v3427, 0.0
        %vm3460 = vcmp.gt.f32.partialorder %v3428, 0.0
        %vm3461 = vcmp.gt.f32.partialorder %v3429, 0.0
        %vm3462 = vcmp.gt.f32.partialorder %v3430, 0.0
        %vm3463 = vcmp.gt.f32.partialorder %v3431, 0.0
        %vm3464 = vcmp.gt.f32.partialorder %v3432, 0.0
        %vm3465 = vcmp.gt.f32.partialorder %v3433, 0.0
        %vm3466 = vcmp.gt.f32.partialorder %v3434, 0.0
        %vm3467 = vcmp.gt.f32.partialorder %v3435, 0.0
        %vm3468 = vcmp.gt.f32.partialorder %v3436, 0.0
        %vm3469 = vcmp.gt.f32.partialorder %v3437, 0.0
        %vm3470 = vcmp.gt.f32.partialorder %v3438, 0.0
        %vm3471 = vcmp.gt.f32.partialorder %v3439, 0.0
        %vm3472 = vcmp.gt.f32.partialorder %v3440, 0.0
        %vm3473 = vcmp.gt.f32.partialorder %v3441, 0.0
        %vm3474 = vcmp.gt.f32.partialorder %v3442, 0.0
        %vm3475 = vcmp.gt.f32.partialorder %v3443, 0.0
        %vm3476 = vcmp.gt.f32.partialorder %v3444, 0.0
        %vm3477 = vcmp.gt.f32.partialorder %v3445, 0.0
        %v3478 = vmul.f32 %v3414, 0.1
        %v3479 = vmul.f32 %v3415, 0.1
        %v3480 = vmul.f32 %v3416, 0.1
        %v3481 = vmul.f32 %v3417, 0.1
        %v3482 = vmul.f32 %v3418, 0.1
        %v3483 = vmul.f32 %v3419, 0.1
        %v3484 = vmul.f32 %v3420, 0.1
        %v3485 = vmul.f32 %v3421, 0.1
        %v3486 = vmul.f32 %v3422, 0.1
        %v3487 = vmul.f32 %v3423, 0.1
        %v3488 = vmul.f32 %v3424, 0.1
        %v3489 = vmul.f32 %v3425, 0.1
        %v3490 = vmul.f32 %v3426, 0.1
        %v3491 = vmul.f32 %v3427, 0.1
        %v3492 = vmul.f32 %v3428, 0.1
        %v3493 = vmul.f32 %v3429, 0.1
        %v3494 = vmul.f32 %v3430, 0.1
        %v3495 = vmul.f32 %v3431, 0.1
        %v3496 = vmul.f32 %v3432, 0.1
        %v3497 = vmul.f32 %v3433, 0.1
        %v3498 = vmul.f32 %v3434, 0.1
        %v3499 = vmul.f32 %v3435, 0.1
        %v3500 = vmul.f32 %v3436, 0.1
        %v3501 = vmul.f32 %v3437, 0.1
        %v3502 = vmul.f32 %v3438, 0.1
        %v3503 = vmul.f32 %v3439, 0.1
        %v3504 = vmul.f32 %v3440, 0.1
        %v3505 = vmul.f32 %v3441, 0.1
        %v3506 = vmul.f32 %v3442, 0.1
        %v3507 = vmul.f32 %v3443, 0.1
        %v3508 = vmul.f32 %v3444, 0.1
        %v3509 = vmul.f32 %v3445, 0.1
        %v3510 = vsel %vm3446, %v3414, %v3478
        %v3511 = vsel %vm3447, %v3415, %v3479
        %v3512 = vsel %vm3448, %v3416, %v3480
        %v3513 = vsel %vm3449, %v3417, %v3481
        %v3514 = vsel %vm3450, %v3418, %v3482
        %v3515 = vsel %vm3451, %v3419, %v3483
        %v3516 = vsel %vm3452, %v3420, %v3484
        %v3517 = vsel %vm3453, %v3421, %v3485
        %v3518 = vsel %vm3454, %v3422, %v3486
        %v3519 = vsel %vm3455, %v3423, %v3487
        %v3520 = vsel %vm3456, %v3424, %v3488
        %v3521 = vsel %vm3457, %v3425, %v3489
        %v3522 = vsel %vm3458, %v3426, %v3490
        %v3523 = vsel %vm3459, %v3427, %v3491
        %v3524 = vsel %vm3460, %v3428, %v3492
        %v3525 = vsel %vm3461, %v3429, %v3493
        %v3526 = vsel %vm3462, %v3430, %v3494
        %v3527 = vsel %vm3463, %v3431, %v3495
        %v3528 = vsel %vm3464, %v3432, %v3496
        %v3529 = vsel %vm3465, %v3433, %v3497
        %v3530 = vsel %vm3466, %v3434, %v3498
        %v3531 = vsel %vm3467, %v3435, %v3499
        %v3532 = vsel %vm3468, %v3436, %v3500
        %v3533 = vsel %vm3469, %v3437, %v3501
        %v3534 = vsel %vm3470, %v3438, %v3502
        %v3535 = vsel %vm3471, %v3439, %v3503
        %v3536 = vsel %vm3472, %v3440, %v3504
        %v3537 = vsel %vm3473, %v3441, %v3505
        %v3538 = vsel %vm3474, %v3442, %v3506
        %v3539 = vsel %vm3475, %v3443, %v3507
        %v3540 = vsel %vm3476, %v3444, %v3508
        %v3541 = vsel %vm3477, %v3445, %v3509
        %3542 = vst [vmem:[%s217 + $0x8] sm:$0xff] %v3510
        %3543 = vst [vmem:[%s217 + $0x18] sm:$0xff] %v3511
        %3544 = vst [vmem:[%s217 + $0x28] sm:$0xff] %v3512
        %3545 = vst [vmem:[%s217 + $0x38] sm:$0xff] %v3513
        %3546 = vst [vmem:[%s217 + $0x48] sm:$0xff] %v3514
        %3547 = vst [vmem:[%s217 + $0x58] sm:$0xff] %v3515
        %3548 = vst [vmem:[%s217 + $0x68] sm:$0xff] %v3516
        %3549 = vst [vmem:[%s217 + $0x78] sm:$0xff] %v3517
        %3550 = vst [vmem:[%s217 + $0x88] sm:$0xff] %v3518
        %3551 = vst [vmem:[%s217 + $0x98] sm:$0xff] %v3519
        %3552 = vst [vmem:[%s217 + $0xa8] sm:$0xff] %v3520
        %3553 = vst [vmem:[%s217 + $0xb8] sm:$0xff] %v3521
        %3554 = vst [vmem:[%s217 + $0xc8] sm:$0xff] %v3522
        %3555 = vst [vmem:[%s217 + $0xd8] sm:$0xff] %v3523
        %3556 = vst [vmem:[%s217 + $0xe8] sm:$0xff] %v3524
        %3557 = vst [vmem:[%s217 + $0xf8] sm:$0xff] %v3525
        %3558 = vst [vmem:[%s217 + $0x108] sm:$0xff] %v3526
        %3559 = vst [vmem:[%s217 + $0x118] sm:$0xff] %v3527
        %3560 = vst [vmem:[%s217 + $0x128] sm:$0xff] %v3528
        %3561 = vst [vmem:[%s217 + $0x138] sm:$0xff] %v3529
        %3562 = vst [vmem:[%s217 + $0x148] sm:$0xff] %v3530
        %3563 = vst [vmem:[%s217 + $0x158] sm:$0xff] %v3531
        %3564 = vst [vmem:[%s217 + $0x168] sm:$0xff] %v3532
        %3565 = vst [vmem:[%s217 + $0x178] sm:$0xff] %v3533
        %3566 = vst [vmem:[%s217 + $0x188] sm:$0xff] %v3534
        %3567 = vst [vmem:[%s217 + $0x198] sm:$0xff] %v3535
        %3568 = vst [vmem:[%s217 + $0x1a8] sm:$0xff] %v3536
        %3569 = vst [vmem:[%s217 + $0x1b8] sm:$0xff] %v3537
        %3570 = vst [vmem:[%s217 + $0x1c8] sm:$0xff] %v3538
        %3571 = vst [vmem:[%s217 + $0x1d8] sm:$0xff] %v3539
        %3572 = vst [vmem:[%s217 + $0x1e8] sm:$0xff] %v3540
        %3573 = vst [vmem:[%s217 + $0x1f8] sm:$0xff] %v3541
        %s3574 = sand.u32 %s137, 1
        %s3575 = scalar_lea.sflag [#allocation4], %s3574
        %s3576 = sand.u32 %s137, 1
        %s3577 = smul.addr %s3576, 512
        %s3578 = scalar_lea.vmem [#allocation3], %s3577
        // Predicated region
        $region41: #{fire_forward.3} parent=39 // pred_check
          %p3579 = pneg %p147
        $region42: #{fire_forward.3} parent=39 // pred_check_branch
          %3581 = sbr.rel (%p3579) target = $region44
        $region43: #{fire_forward.3} parent=39 // pred_region
          %s3583 = ssub.s32 8192, 8192
          %3584 = vsyncadd %s3575, %s3583
          %s3585 = smul.addr %s19, 64
          %s3586 = smul.addr %s3585, 128
          %s3587 = scalar_lea.hbm %s5, %s3586
          %s3588 = sshll.u32 %s3578, 4
          %s3589 = int_to_ptr.vmem [resolvable:$true] %s3588
          %3594 = dma.vmem_to_hbm [thread:$0]  %s3589, 8192, %s3587, %s3575, 256, 256, 16
        $region44: #{fire_forward.3} parent=39 // pred_fallthru
          _
      $region40: #{fire_forward.3} parent=5 // pred_fallthru
        _
      %p3595 = scmp.le.s32.totalorder 2, %s14
      // Predicated region
      $region45: #{fire_forward.3} parent=5 // pred_check
        %p3596 = pneg %p3595
      $region46: #{fire_forward.3} parent=5 // pred_check_branch
        %3598 = sbr.rel (%p3596) target = $region48
      $region47: #{fire_forward.3} parent=5 // pred_region
        %s3599 = ssub.s32 %s14, 2
        // Predicated region
        $region49: #{fire_forward.3} parent=47 // pred_check
          %p3600 = pneg %p153
        $region50: #{fire_forward.3} parent=47 // pred_check_branch
          %3602 = sbr.rel (%p3600) target = $region52
        $region51: #{fire_forward.3} parent=47 // pred_region
          %s3603 = sand.u32 %s138, 1
          %s3604 = scalar_lea.sflag [#allocation4], %s3603
          %s3605 = sand.u32 %s138, 1
          %s3606 = smul.addr %s3605, 512
          %s3607 = scalar_lea.vmem [#allocation3], %s3606
          %3608 = dma.done %s3604, 8192
        $region52: #{fire_forward.3} parent=47 // pred_fallthru
          _
      $region48: #{fire_forward.3} parent=5 // pred_fallthru
        _
    $region6: #{fire_forward.3} parent=1 // loop_footer
      %s18 = sadd.s32 1, %s14
    $region7: #{fire_forward.3} parent=1 // loop_footer_branch
      %13 = sbr.rel target = $region3
    $region8: #{fire_forward.3} parent=1 // loop_exit
      _
    %3609 = vsyncpa [#allocation4], 1
    %s3610 = scalar_lea.sflag [#allocation4], 1
    %3611 = vsyncpa %s3610, 1

</llo_original>
